<compile_context>
chip_gen: v7x
topology: tpu7x:2x2x1
jax: 0.10.0
libtpu: 0.0.40
codegen_flags: <defaults>
</compile_context>

<pallas_src>
import functools

import jax
import jax.numpy as jnp
from jax import lax
from jax.experimental import pallas as pl
from jax.experimental.pallas import tpu as pltpu


def _round_up(x, m):
    return (x + m - 1) // m * m


def _pick_vmem_limit_bytes():
    # v5e / v6e have 128 MiB physical VMEM, v7x only 64 MiB: scale the scoped
    # limit to the chip instead of hard-coding a v6e-sized number.
    try:
        cap = pltpu.get_tpu_info().vmem_capacity_bytes
        return min(int(cap) * 3 // 5, 100 * 1024 * 1024)
    except Exception:
        return 48 * 1024 * 1024


# ----------------------------------------------------------------------------
# Pallas kernel: full ConvLSTM3d_2 recurrence for ONE batch item (grid=(B,)).
# ----------------------------------------------------------------------------
def _convlstm3d_kernel(xidx_sm, use_sm,                # scalar prefetch (SMEM)
                       x_ref, w_ref, b_ref, msk_ref,   # inputs (VMEM)
                       hc_out_ref,                     # output (VMEM)
                       h_sc, c_sc, dbl_sc, col_sc,     # scratch (VMEM)
                       *, C, Hid, L, T, KD, KH, KW, H, W, Np):
    """Shapes (per grid point, batch dim squeezed):
      x_ref   : (T_in, C, Np)     zero-padded flattened x frames (whole seq)
      w_ref   : (L, 4*Hid, Kflat) bf16 conv weights, Kflat = KD*KH*KW*(C+Hid)
      b_ref   : (L, 4*Hid, 1)     conv bias (f32)
      msk_ref : (1, Np)           1.0 at valid voxels, 0.0 in halo / lane pad
      hc_out  : (T, 2*Hid, Np)    per-step [h; c] packed along sublanes
      h_sc/c_sc : (Hid, Np)       recurrent state, VMEM-resident across steps
      dbl_sc  : (C+Hid, 2*Np)     bf16 combined [x, h] stored twice side-by-side
      col_sc  : (Kflat, Np)       bf16 im2col slab
    """
    Ctot = C + Hid
    pd, ph, pw = KD // 2, KH // 2, KW // 2
    Hp, Wp = H + 2 * ph, W + 2 * pw
    Koff = KD * KH * KW

    # Static circular-shift table for the kernel offsets.
    shifts = []
    for dz in range(KD):
        for dy in range(KH):
            for dx in range(KW):
                s = (dz - pd) * Hp * Wp + (dy - ph) * Wp + (dx - pw)
                shifts.append(s % Np)

    halo = msk_ref[...]                        # (1, Np)

    # t == 0 init: c = 0, h = x[:, 0]  (mask_list[0] is asserted True upstream;
    # frame 0 is already zero in the halo and in the lane pad).
    h_sc[...] = x_ref[0]
    c_sc[...] = jnp.zeros_like(c_sc)

    @pl.loop(0, T)
    def _time_step(t):
        xi = xidx_sm[t]
        use_x = use_sm[t] > 0
        x_frame = x_ref[xi]                                  # (C, Np)
        x_in = jnp.where(use_x, x_frame, h_sc[...])          # layer_input

        # layer_input is constant across the layer stack -> write its rows of
        # the doubled buffer once per step; only the h rows change per layer.
        x_bf = x_in.astype(jnp.bfloat16)
        dbl_sc[0:C, 0:Np] = x_bf
        dbl_sc[0:C, Np:2 * Np] = x_bf

        h_cur = h_sc[...]
        c_cur = c_sc[...]

        for l in range(L):                                   # static layers
            h_bf = h_cur.astype(jnp.bfloat16)
            dbl_sc[C:Ctot, 0:Np] = h_bf
            dbl_sc[C:Ctot, Np:2 * Np] = h_bf

            # im2col slab in bf16.  A circular shift by s is the static lane
            # slice [s % Np : s % Np + Np] of the doubled buffer.  Two kernel
            # offsets are written per store so each store covers a full
            # 16-row bf16 sublane tile (Ctot == 8).
            for p in range(Koff // 2):
                o0, o1 = shifts[2 * p], shifts[2 * p + 1]
                col_sc[2 * p * Ctot:(2 * p + 2) * Ctot, :] = jnp.concatenate(
                    [dbl_sc[:, o0:o0 + Np], dbl_sc[:, o1:o1 + Np]], axis=0)
            if Koff % 2:
                o = shifts[Koff - 1]
                col_sc[(Koff - 1) * Ctot:Koff * Ctot, :] = dbl_sc[:, o:o + Np]

            # One deep MXU matmul (bf16 x bf16 -> f32 accumulation).
            gates = jnp.dot(w_ref[l], col_sc[...],
                            preferred_element_type=jnp.float32)
            gates = gates + b_ref[l]                         # (4*Hid, Np)

            # torch.split order: i, f, o, g.  Fused sigmoid over the first
            # 3*Hid rows; tanh on the last Hid rows.
            ifo = jax.nn.sigmoid(gates[0:3 * Hid, :])
            g_g = jnp.tanh(gates[3 * Hid:4 * Hid, :])
            i_g = ifo[0 * Hid:1 * Hid, :]
            f_g = ifo[1 * Hid:2 * Hid, :]
            o_g = ifo[2 * Hid:3 * Hid, :]

            c_cur = f_g * c_cur + i_g * g_g
            # Re-zero halo / lane pad of h so the next conv still sees "same"
            # zero padding.  (c never feeds the conv -> no mask needed.)
            h_cur = o_g * jnp.tanh(c_cur) * halo

        h_sc[...] = h_cur
        c_sc[...] = c_cur
        # Packed [h; c] store: one full 8-sublane, lane-dense write per step.
        hc_out_ref[t] = jnp.concatenate([h_cur, c_cur], axis=0)


# ----------------------------------------------------------------------------
# Jitted fused forward: builds the lane-dense layout and calls the kernel.
# ----------------------------------------------------------------------------
@functools.partial(jax.jit, static_argnames=("kd", "kh", "kw"))
def _convlstm3d_fused(x_seq, xidx, use_arr, w_stack, b_stack, *, kd, kh, kw):
    """x_seq: (B, T_in, D, H, W, C) channels-last f32.
    Returns (h_all, c_all), each (B, T, D, H, W, Hid), T = len(mask_list)."""
    B, T_in, D, H, W, C = x_seq.shape
    L, four_h, kflat = w_stack.shape
    Hid = four_h // 4
    assert Hid == C, "ConvLSTM3d_2 uses hidden_dim == input channels"
    Ctot = C + Hid
    assert kflat == kd * kh * kw * Ctot
    pd, ph, pw = kd // 2, kh // 2, kw // 2
    Dp, Hp, Wp = D + 2 * pd, H + 2 * ph, W + 2 * pw
    np_raw = Dp * Hp * Wp
    Np = _round_up(np_raw, 128)          # lane-dense, unmasked vector stores
    T = int(xidx.shape[0])

    # (B, T_in, D, H, W, C) -> (B, T_in, C, Dp, Hp, Wp), zero "same" halo,
    # flatten the padded volume and align to 128 lanes.  Done once for the
    # whole sequence, not per step.
    xt = jnp.transpose(x_seq, (0, 1, 5, 2, 3, 4)).astype(jnp.float32)
    xt = jnp.pad(xt, ((0, 0), (0, 0), (0, 0), (pd, pd), (ph, ph), (pw, pw)))
    xt = xt.reshape(B, T_in, C, np_raw)
    xt = jnp.pad(xt, ((0, 0), (0, 0), (0, 0), (0, Np - np_raw)))

    # Halo mask: 1 at valid voxels of the padded, flattened, aligned volume.
    m3 = jnp.zeros((Dp, Hp, Wp), jnp.float32)
    m3 = m3.at[pd:pd + D, ph:ph + H, pw:pw + W].set(1.0)
    halo = jnp.pad(m3.reshape(1, np_raw), ((0, 0), (0, Np - np_raw)))

    kernel = functools.partial(
        _convlstm3d_kernel, C=C, Hid=Hid, L=L, T=T, KD=kd, KH=kh, KW=kw,
        H=H, W=W, Np=Np)

    grid_spec = pltpu.PrefetchScalarGridSpec(
        num_scalar_prefetch=2,
        grid=(B,),
        in_specs=[
            pl.BlockSpec((None, T_in, C, Np), lambda b, xi, us: (b, 0, 0, 0)),
            pl.BlockSpec((L, four_h, kflat), lambda b, xi, us: (0, 0, 0)),
            pl.BlockSpec((L, four_h, 1), lambda b, xi, us: (0, 0, 0)),
            pl.BlockSpec((1, Np), lambda b, xi, us: (0, 0)),
        ],
        out_specs=pl.BlockSpec((None, T, 2 * Hid, Np),
                               lambda b, xi, us: (b, 0, 0, 0)),
        scratch_shapes=[
            pltpu.VMEM((Hid, Np), jnp.float32),         # h state (persistent)
            pltpu.VMEM((Hid, Np), jnp.float32),         # c state (persistent)
            pltpu.VMEM((Ctot, 2 * Np), jnp.bfloat16),   # doubled combined
            pltpu.VMEM((kflat, Np), jnp.bfloat16),      # im2col slab
        ],
    )

    hc = pl.pallas_call(
        kernel,
        out_shape=jax.ShapeDtypeStruct((B, T, 2 * Hid, Np), jnp.float32),
        grid_spec=grid_spec,
        compiler_params=pltpu.CompilerParams(
            dimension_semantics=("parallel",),
            vmem_limit_bytes=_pick_vmem_limit_bytes(),
        ),
    )(xidx, use_arr, xt, w_stack, b_stack, halo)

    def unflatten(y):                                    # (B, T, Hid, Np)
        y = y[..., :np_raw].reshape(B, T, Hid, Dp, Hp, Wp)
        y = y[:, :, :, pd:pd + D, ph:ph + H, pw:pw + W]
        return jnp.transpose(y, (0, 1, 3, 4, 5, 2))      # (B, T, D, H, W, Hid)

    return unflatten(hc[:, :, :Hid]), unflatten(hc[:, :, Hid:])


# ----------------------------------------------------------------------------
# Parameter init (deterministic, PyTorch Conv3d-like uniform init) + prep.
# ----------------------------------------------------------------------------
def init_convlstm3d_2(key, dim, kernel_size, size_layer=1, bias=True):
    params = []
    kd, kh, kw = kernel_size
    fan_in = (2 * dim) * kd * kh * kw
    bound = 1.0 / (fan_in ** 0.5)
    for _ in range(size_layer):
        key, k1, k2 = jax.random.split(key, 3)
        # torch layout: (out_ch=4*dim, in_ch=2*dim, kd, kh, kw)
        w = jax.random.uniform(k1, (4 * dim, 2 * dim, kd, kh, kw),
                               jnp.float32, -bound, bound)
        if bias:
            b = jax.random.uniform(k2, (4 * dim,), jnp.float32, -bound, bound)
        else:
            b = jnp.zeros((4 * dim,), jnp.float32)
        params.append((w, b))
    return params


def _prep_weight(w_torch_layout):
    # (4H, Ctot, kd, kh, kw) -> (4H, kd*kh*kw*Ctot), offset-major/channel-minor
    four_h, ctot, kd, kh, kw = w_torch_layout.shape
    w = jnp.transpose(w_torch_layout, (0, 2, 3, 4, 1))
    return w.reshape(four_h, kd * kh * kw * ctot)


# ----------------------------------------------------------------------------
# Public forward: same semantics as the PyTorch module (channels-last arrays).
# ----------------------------------------------------------------------------
def convlstm3d_2_forward(params, x_ndhwc, mask_list, kernel_size):
    """params: list of (w, b) with torch Conv3d layout.
    x_ndhwc: (B, T_in, D, H, W, C) float32.  Returns (output_list, state_list)
    with every tensor in channels-last (B, D, H, W, C) layout."""
    assert mask_list
    assert mask_list[0]
    kd, kh, kw = kernel_size
    L = len(params)

    w_stack = jnp.stack([_prep_weight(w) for (w, _) in params]
                        ).astype(jnp.bfloat16)                    # (L,4H,Kflat)
    b_stack = jnp.stack([b for (_, b) in params]
                        ).reshape(L, -1, 1).astype(jnp.float32)    # (L,4H,1)

    # mask_list (static Python bools) -> scalar prefetch tables.
    xidx, use = [], []
    idx = 0
    for m in mask_list:
        if m:
            xidx.append(idx)
            use.append(1)
            idx += 1
        else:
            xidx.append(max(idx - 1, 0))   # value ignored when use == 0
            use.append(0)
    assert idx <= x_ndhwc.shape[1], "mask_list consumes more frames than given"
    xidx = jnp.asarray(xidx, jnp.int32)
    use = jnp.asarray(use, jnp.int32)

    h_all, c_all = _convlstm3d_fused(x_ndhwc, xidx, use, w_stack, b_stack,
                                     kd=kd, kh=kh, kw=kw)
    T = len(mask_list)
    output_list = [h_all[:, t] for t in range(T)]
    state_list = [[h_all[:, t], c_all[:, t]] for t in range(T)]
    return output_list, state_list


# ----------------------------------------------------------------------------
# Pure-JAX reference (mirrors the PyTorch module) for correctness check.
# ----------------------------------------------------------------------------
def _ref_cell(x, h, c, w, b):
    combined = jnp.concatenate([x, h], axis=-1)
    w_dhwio = jnp.transpose(w, (2, 3, 4, 1, 0))  # (kd,kh,kw, Cin, Cout)
    conv = lax.conv_general_dilated(
        combined, w_dhwio, window_strides=(1, 1, 1), padding="SAME",
        dimension_numbers=("NDHWC", "DHWIO", "NDHWC"))
    conv = conv + b
    hid = h.shape[-1]
    i = jax.nn.sigmoid(conv[..., 0 * hid:1 * hid])
    f = jax.nn.sigmoid(conv[..., 1 * hid:2 * hid])
    o = jax.nn.sigmoid(conv[..., 2 * hid:3 * hid])
    g = jnp.tanh(conv[..., 3 * hid:4 * hid])
    c_next = f * c + i * g
    h_next = o * jnp.tanh(c_next)
    return h_next, c_next


def _ref_forward(params, x_ndhwc, mask_list):
    B, T, D, H, W, C = x_ndhwc.shape
    c = jnp.zeros((B, D, H, W, C), jnp.float32)
    h = x_ndhwc[:, 0]
    outs, cells = [], []
    idx = 0
    for mask in mask_list:
        if mask:
            layer_input = x_ndhwc[:, idx]
            idx += 1
        else:
            layer_input = h
        for (w, b) in params:
            h, c = _ref_cell(layer_input, h, c, w, b)
        outs.append(h)
        cells.append(c)
    return outs, cells


# ----------------------------------------------------------------------------
if __name__ == "__main__":
    key = jax.random.PRNGKey(0)
    k_x, k_p = jax.random.split(key)

    # PyTorch-layout input: (B, T, C, D, H, W)
    B, T, C, D, H, W = 2, 4, 4, 8, 8, 8
    kernel_size = (3, 3, 3)
    size_layer = 1
    mask_list = [True, True, False, True]

    x_torch_layout = jax.random.normal(k_x, (B, T, C, D, H, W), jnp.float32)
    # -> channels-last for the kernel: (B, T, D, H, W, C)
    x = jnp.transpose(x_torch_layout, (0, 1, 3, 4, 5, 2))

    params = init_convlstm3d_2(k_p, dim=C, kernel_size=kernel_size,
                               size_layer=size_layer, bias=True)

    output_list, state_list = convlstm3d_2_forward(params, x, mask_list,
                                                   kernel_size)
    jax.block_until_ready(output_list[-1])
    jax.block_until_ready(state_list[-1][1])

    # Check against a pure-JAX reference of the PyTorch semantics.
    # (MXU matmul runs in bf16 with f32 accumulation -> loose tolerance.)
    ref_hs, ref_cs = _ref_forward(params, x, mask_list)
    for got, want in zip(output_list, ref_hs):
        assert got.shape == (B, D, H, W, C)
        assert jnp.allclose(got, want, rtol=5e-2, atol=5e-2), "h mismatch"
    for (got_h, got_c), want_c in zip(state_list, ref_cs):
        assert jnp.allclose(got_c, want_c, rtol=5e-2, atol=5e-2), "c mismatch"

    print("KERNEL_OK")
</pallas_src>

<mosaic_0001>
module attributes {stable_mosaic.version = 11 : i64} {
  func.func @_convlstm3d_kernel(%arg0: i32, %arg1: memref<4xi32, #tpu.memory_space<smem>>, %arg2: memref<4xi32, #tpu.memory_space<smem>>, %arg3: memref<1x4x4x1024xf32, #tpu.memory_space<vmem>>, %arg4: memref<1x16x216xbf16, #tpu.memory_space<vmem>>, %arg5: memref<1x16x1xf32, #tpu.memory_space<vmem>>, %arg6: memref<1x1024xf32, #tpu.memory_space<vmem>>, %arg7: memref<1x4x8x1024xf32, #tpu.memory_space<vmem>>, %arg8: memref<4x1024xf32, #tpu.memory_space<vmem>>, %arg9: memref<4x1024xf32, #tpu.memory_space<vmem>>, %arg10: memref<8x2048xbf16, #tpu.memory_space<vmem>>, %arg11: memref<216x1024xbf16, #tpu.memory_space<vmem>>) attributes {dimension_semantics = [#tpu.dimension_semantics<parallel>], iteration_bounds = array<i64: 2>, scalar_prefetch = 2 : i64, scratch_operands = 4 : i64, tpu.core_type = #tpu.core_type<tc>, window_params = [{transform_indices = @transform_0, window_bounds = array<i64: 1, 4, 4, 1024>}, {pipeline_mode = #tpu.pipeline_mode<synchronous>, transform_indices = @transform_1, window_bounds = array<i64: 1, 16, 216>}, {pipeline_mode = #tpu.pipeline_mode<synchronous>, transform_indices = @transform_2, window_bounds = array<i64: 1, 16, 1>}, {pipeline_mode = #tpu.pipeline_mode<synchronous>, transform_indices = @transform_3, window_bounds = array<i64: 1, 1024>}, {transform_indices = @transform_4, window_bounds = array<i64: 1, 4, 8, 1024>}]} {
    %c0 = arith.constant 0 : index
    %c0_0 = arith.constant 0 : index
    %0 = vector.load %arg6[%c0, %c0_0] : memref<1x1024xf32, #tpu.memory_space<vmem>>, vector<1x1024xf32>
    %c0_1 = arith.constant 0 : index
    %c0_2 = arith.constant 0 : index
    %c0_3 = arith.constant 0 : index
    %c0_4 = arith.constant 0 : index
    %1 = vector.load %arg3[%c0_1, %c0_2, %c0_3, %c0_4] : memref<1x4x4x1024xf32, #tpu.memory_space<vmem>>, vector<1x1x4x1024xf32>
    %2 = vector.shape_cast %1 : vector<1x1x4x1024xf32> to vector<4x1024xf32>
    %c0_5 = arith.constant 0 : index
    %c0_6 = arith.constant 0 : index
    %3 = vector.load %arg8[%c0_5, %c0_6] : memref<4x1024xf32, #tpu.memory_space<vmem>>, vector<4x1024xf32>
    tpu.vector_store %arg8[%c0_5, %c0_6], %2 {strides = array<i32>} : memref<4x1024xf32, #tpu.memory_space<vmem>>, vector<4x1024xf32>,
    %cst = arith.constant 0.000000e+00 : f32
    %4 = vector.broadcast %cst : f32 to vector<4x1024xf32>
    %c0_7 = arith.constant 0 : index
    %c0_8 = arith.constant 0 : index
    %5 = vector.load %arg9[%c0_7, %c0_8] : memref<4x1024xf32, #tpu.memory_space<vmem>>, vector<4x1024xf32>
    tpu.vector_store %arg9[%c0_7, %c0_8], %4 {strides = array<i32>} : memref<4x1024xf32, #tpu.memory_space<vmem>>, vector<4x1024xf32>,
    %c0_i32 = arith.constant 0 : i32
    %c4_i32 = arith.constant 4 : i32
    %6 = arith.addi %c0_i32, %c4_i32 : i32
    %c1_i32 = arith.constant 1 : i32
    scf.for %arg12 = %c0_i32 to %6 step %c1_i32  : i32 {
      %c1_i32_10 = arith.constant 1 : i32
      %7 = arith.muli %arg12, %c1_i32_10 : i32
      %c0_i32_11 = arith.constant 0 : i32
      %8 = arith.addi %c0_i32_11, %7 : i32
      %9 = arith.index_cast %8 : i32 to index
      %10 = memref.load %arg1[%9] : memref<4xi32, #tpu.memory_space<smem>>
      %11 = arith.index_cast %8 : i32 to index
      %12 = memref.load %arg2[%11] : memref<4xi32, #tpu.memory_space<smem>>
      %c0_i32_12 = arith.constant 0 : i32
      %13 = arith.cmpi sgt, %12, %c0_i32_12 : i32
      %c0_13 = arith.constant 0 : index
      %14 = arith.index_cast %10 : i32 to index
      %c0_14 = arith.constant 0 : index
      %c0_15 = arith.constant 0 : index
      %15 = vector.load %arg3[%c0_13, %14, %c0_14, %c0_15] : memref<1x4x4x1024xf32, #tpu.memory_space<vmem>>, vector<1x1x4x1024xf32>
      %16 = vector.shape_cast %15 : vector<1x1x4x1024xf32> to vector<4x1024xf32>
      %c0_16 = arith.constant 0 : index
      %c0_17 = arith.constant 0 : index
      %17 = vector.load %arg8[%c0_16, %c0_17] : memref<4x1024xf32, #tpu.memory_space<vmem>>, vector<4x1024xf32>
      %18 = arith.select %13, %16, %17 : vector<4x1024xf32>
      %19 = arith.truncf %18 : vector<4x1024xf32> to vector<4x1024xbf16>
      %c0_18 = arith.constant 0 : index
      %c0_19 = arith.constant 0 : index
      %20 = vector.load %arg10[%c0_18, %c0_19] : memref<8x2048xbf16, #tpu.memory_space<vmem>>, vector<4x1024xbf16>
      tpu.vector_store %arg10[%c0_18, %c0_19], %19 {strides = array<i32>} : memref<8x2048xbf16, #tpu.memory_space<vmem>>, vector<4x1024xbf16>,
      %c0_20 = arith.constant 0 : index
      %c1024 = arith.constant 1024 : index
      %21 = vector.load %arg10[%c0_20, %c1024] : memref<8x2048xbf16, #tpu.memory_space<vmem>>, vector<4x1024xbf16>
      tpu.vector_store %arg10[%c0_20, %c1024], %19 {strides = array<i32>} : memref<8x2048xbf16, #tpu.memory_space<vmem>>, vector<4x1024xbf16>,
      %c0_21 = arith.constant 0 : index
      %c0_22 = arith.constant 0 : index
      %22 = vector.load %arg8[%c0_21, %c0_22] : memref<4x1024xf32, #tpu.memory_space<vmem>>, vector<4x1024xf32>
      %c0_23 = arith.constant 0 : index
      %c0_24 = arith.constant 0 : index
      %23 = vector.load %arg9[%c0_23, %c0_24] : memref<4x1024xf32, #tpu.memory_space<vmem>>, vector<4x1024xf32>
      %24 = arith.truncf %22 : vector<4x1024xf32> to vector<4x1024xbf16>
      %c4 = arith.constant 4 : index
      %c0_25 = arith.constant 0 : index
      %25 = vector.load %arg10[%c4, %c0_25] : memref<8x2048xbf16, #tpu.memory_space<vmem>>, vector<4x1024xbf16>
      tpu.vector_store %arg10[%c4, %c0_25], %24 {strides = array<i32>} : memref<8x2048xbf16, #tpu.memory_space<vmem>>, vector<4x1024xbf16>,
      %c4_26 = arith.constant 4 : index
      %c1024_27 = arith.constant 1024 : index
      %26 = vector.load %arg10[%c4_26, %c1024_27] : memref<8x2048xbf16, #tpu.memory_space<vmem>>, vector<4x1024xbf16>
      tpu.vector_store %arg10[%c4_26, %c1024_27], %24 {strides = array<i32>} : memref<8x2048xbf16, #tpu.memory_space<vmem>>, vector<4x1024xbf16>,
      %c0_28 = arith.constant 0 : index
      %c913 = arith.constant 913 : index
      %27 = vector.load %arg10[%c0_28, %c913] : memref<8x2048xbf16, #tpu.memory_space<vmem>>, vector<8x1024xbf16>
      %c0_29 = arith.constant 0 : index
      %c914 = arith.constant 914 : index
      %28 = vector.load %arg10[%c0_29, %c914] : memref<8x2048xbf16, #tpu.memory_space<vmem>>, vector<8x1024xbf16>
      %29 = tpu.concatenate %27, %28 in 0 : vector<8x1024xbf16>, vector<8x1024xbf16> -> vector<16x1024xbf16>
      %c0_30 = arith.constant 0 : index
      %c0_31 = arith.constant 0 : index
      %30 = vector.load %arg11[%c0_30, %c0_31] : memref<216x1024xbf16, #tpu.memory_space<vmem>>, vector<16x1024xbf16>
      tpu.vector_store %arg11[%c0_30, %c0_31], %29 {strides = array<i32>} : memref<216x1024xbf16, #tpu.memory_space<vmem>>, vector<16x1024xbf16>,
      %c0_32 = arith.constant 0 : index
      %c915 = arith.constant 915 : index
      %31 = vector.load %arg10[%c0_32, %c915] : memref<8x2048xbf16, #tpu.memory_space<vmem>>, vector<8x1024xbf16>
      %c0_33 = arith.constant 0 : index
      %c923 = arith.constant 923 : index
      %32 = vector.load %arg10[%c0_33, %c923] : memref<8x2048xbf16, #tpu.memory_space<vmem>>, vector<8x1024xbf16>
      %33 = tpu.concatenate %31, %32 in 0 : vector<8x1024xbf16>, vector<8x1024xbf16> -> vector<16x1024xbf16>
      %c16 = arith.constant 16 : index
      %c0_34 = arith.constant 0 : index
      %34 = vector.load %arg11[%c16, %c0_34] : memref<216x1024xbf16, #tpu.memory_space<vmem>>, vector<16x1024xbf16>
      tpu.vector_store %arg11[%c16, %c0_34], %33 {strides = array<i32>} : memref<216x1024xbf16, #tpu.memory_space<vmem>>, vector<16x1024xbf16>,
      %c0_35 = arith.constant 0 : index
      %c924 = arith.constant 924 : index
      %35 = vector.load %arg10[%c0_35, %c924] : memref<8x2048xbf16, #tpu.memory_space<vmem>>, vector<8x1024xbf16>
      %c0_36 = arith.constant 0 : index
      %c925 = arith.constant 925 : index
      %36 = vector.load %arg10[%c0_36, %c925] : memref<8x2048xbf16, #tpu.memory_space<vmem>>, vector<8x1024xbf16>
      %37 = tpu.concatenate %35, %36 in 0 : vector<8x1024xbf16>, vector<8x1024xbf16> -> vector<16x1024xbf16>
      %c32 = arith.constant 32 : index
      %c0_37 = arith.constant 0 : index
      %38 = vector.load %arg11[%c32, %c0_37] : memref<216x1024xbf16, #tpu.memory_space<vmem>>, vector<16x1024xbf16>
      tpu.vector_store %arg11[%c32, %c0_37], %37 {strides = array<i32>} : memref<216x1024xbf16, #tpu.memory_space<vmem>>, vector<16x1024xbf16>,
      %c0_38 = arith.constant 0 : index
      %c933 = arith.constant 933 : index
      %39 = vector.load %arg10[%c0_38, %c933] : memref<8x2048xbf16, #tpu.memory_space<vmem>>, vector<8x1024xbf16>
      %c0_39 = arith.constant 0 : index
      %c934 = arith.constant 934 : index
      %40 = vector.load %arg10[%c0_39, %c934] : memref<8x2048xbf16, #tpu.memory_space<vmem>>, vector<8x1024xbf16>
      %41 = tpu.concatenate %39, %40 in 0 : vector<8x1024xbf16>, vector<8x1024xbf16> -> vector<16x1024xbf16>
      %c48 = arith.constant 48 : index
      %c0_40 = arith.constant 0 : index
      %42 = vector.load %arg11[%c48, %c0_40] : memref<216x1024xbf16, #tpu.memory_space<vmem>>, vector<16x1024xbf16>
      tpu.vector_store %arg11[%c48, %c0_40], %41 {strides = array<i32>} : memref<216x1024xbf16, #tpu.memory_space<vmem>>, vector<16x1024xbf16>,
      %c0_41 = arith.constant 0 : index
      %c935 = arith.constant 935 : index
      %43 = vector.load %arg10[%c0_41, %c935] : memref<8x2048xbf16, #tpu.memory_space<vmem>>, vector<8x1024xbf16>
      %c0_42 = arith.constant 0 : index
      %c1013 = arith.constant 1013 : index
      %44 = vector.load %arg10[%c0_42, %c1013] : memref<8x2048xbf16, #tpu.memory_space<vmem>>, vector<8x1024xbf16>
      %45 = tpu.concatenate %43, %44 in 0 : vector<8x1024xbf16>, vector<8x1024xbf16> -> vector<16x1024xbf16>
      %c64 = arith.constant 64 : index
      %c0_43 = arith.constant 0 : index
      %46 = vector.load %arg11[%c64, %c0_43] : memref<216x1024xbf16, #tpu.memory_space<vmem>>, vector<16x1024xbf16>
      tpu.vector_store %arg11[%c64, %c0_43], %45 {strides = array<i32>} : memref<216x1024xbf16, #tpu.memory_space<vmem>>, vector<16x1024xbf16>,
      %c0_44 = arith.constant 0 : index
      %c1014 = arith.constant 1014 : index
      %47 = vector.load %arg10[%c0_44, %c1014] : memref<8x2048xbf16, #tpu.memory_space<vmem>>, vector<8x1024xbf16>
      %c0_45 = arith.constant 0 : index
      %c1015 = arith.constant 1015 : index
      %48 = vector.load %arg10[%c0_45, %c1015] : memref<8x2048xbf16, #tpu.memory_space<vmem>>, vector<8x1024xbf16>
      %49 = tpu.concatenate %47, %48 in 0 : vector<8x1024xbf16>, vector<8x1024xbf16> -> vector<16x1024xbf16>
      %c80 = arith.constant 80 : index
      %c0_46 = arith.constant 0 : index
      %50 = vector.load %arg11[%c80, %c0_46] : memref<216x1024xbf16, #tpu.memory_space<vmem>>, vector<16x1024xbf16>
      tpu.vector_store %arg11[%c80, %c0_46], %49 {strides = array<i32>} : memref<216x1024xbf16, #tpu.memory_space<vmem>>, vector<16x1024xbf16>,
      %c0_47 = arith.constant 0 : index
      %c1023 = arith.constant 1023 : index
      %51 = vector.load %arg10[%c0_47, %c1023] : memref<8x2048xbf16, #tpu.memory_space<vmem>>, vector<8x1024xbf16>
      %c0_48 = arith.constant 0 : index
      %c0_49 = arith.constant 0 : index
      %52 = vector.load %arg10[%c0_48, %c0_49] : memref<8x2048xbf16, #tpu.memory_space<vmem>>, vector<8x1024xbf16>
      %53 = tpu.concatenate %51, %52 in 0 : vector<8x1024xbf16>, vector<8x1024xbf16> -> vector<16x1024xbf16>
      %c96 = arith.constant 96 : index
      %c0_50 = arith.constant 0 : index
      %54 = vector.load %arg11[%c96, %c0_50] : memref<216x1024xbf16, #tpu.memory_space<vmem>>, vector<16x1024xbf16>
      tpu.vector_store %arg11[%c96, %c0_50], %53 {strides = array<i32>} : memref<216x1024xbf16, #tpu.memory_space<vmem>>, vector<16x1024xbf16>,
      %c0_51 = arith.constant 0 : index
      %c1 = arith.constant 1 : index
      %55 = vector.load %arg10[%c0_51, %c1] : memref<8x2048xbf16, #tpu.memory_space<vmem>>, vector<8x1024xbf16>
      %c0_52 = arith.constant 0 : index
      %c9 = arith.constant 9 : index
      %56 = vector.load %arg10[%c0_52, %c9] : memref<8x2048xbf16, #tpu.memory_space<vmem>>, vector<8x1024xbf16>
      %57 = tpu.concatenate %55, %56 in 0 : vector<8x1024xbf16>, vector<8x1024xbf16> -> vector<16x1024xbf16>
      %c112 = arith.constant 112 : index
      %c0_53 = arith.constant 0 : index
      %58 = vector.load %arg11[%c112, %c0_53] : memref<216x1024xbf16, #tpu.memory_space<vmem>>, vector<16x1024xbf16>
      tpu.vector_store %arg11[%c112, %c0_53], %57 {strides = array<i32>} : memref<216x1024xbf16, #tpu.memory_space<vmem>>, vector<16x1024xbf16>,
      %c0_54 = arith.constant 0 : index
      %c10 = arith.constant 10 : index
      %59 = vector.load %arg10[%c0_54, %c10] : memref<8x2048xbf16, #tpu.memory_space<vmem>>, vector<8x1024xbf16>
      %c0_55 = arith.constant 0 : index
      %c11 = arith.constant 11 : index
      %60 = vector.load %arg10[%c0_55, %c11] : memref<8x2048xbf16, #tpu.memory_space<vmem>>, vector<8x1024xbf16>
      %61 = tpu.concatenate %59, %60 in 0 : vector<8x1024xbf16>, vector<8x1024xbf16> -> vector<16x1024xbf16>
      %c128 = arith.constant 128 : index
      %c0_56 = arith.constant 0 : index
      %62 = vector.load %arg11[%c128, %c0_56] : memref<216x1024xbf16, #tpu.memory_space<vmem>>, vector<16x1024xbf16>
      tpu.vector_store %arg11[%c128, %c0_56], %61 {strides = array<i32>} : memref<216x1024xbf16, #tpu.memory_space<vmem>>, vector<16x1024xbf16>,
      %c0_57 = arith.constant 0 : index
      %c89 = arith.constant 89 : index
      %63 = vector.load %arg10[%c0_57, %c89] : memref<8x2048xbf16, #tpu.memory_space<vmem>>, vector<8x1024xbf16>
      %c0_58 = arith.constant 0 : index
      %c90 = arith.constant 90 : index
      %64 = vector.load %arg10[%c0_58, %c90] : memref<8x2048xbf16, #tpu.memory_space<vmem>>, vector<8x1024xbf16>
      %65 = tpu.concatenate %63, %64 in 0 : vector<8x1024xbf16>, vector<8x1024xbf16> -> vector<16x1024xbf16>
      %c144 = arith.constant 144 : index
      %c0_59 = arith.constant 0 : index
      %66 = vector.load %arg11[%c144, %c0_59] : memref<216x1024xbf16, #tpu.memory_space<vmem>>, vector<16x1024xbf16>
      tpu.vector_store %arg11[%c144, %c0_59], %65 {strides = array<i32>} : memref<216x1024xbf16, #tpu.memory_space<vmem>>, vector<16x1024xbf16>,
      %c0_60 = arith.constant 0 : index
      %c91 = arith.constant 91 : index
      %67 = vector.load %arg10[%c0_60, %c91] : memref<8x2048xbf16, #tpu.memory_space<vmem>>, vector<8x1024xbf16>
      %c0_61 = arith.constant 0 : index
      %c99 = arith.constant 99 : index
      %68 = vector.load %arg10[%c0_61, %c99] : memref<8x2048xbf16, #tpu.memory_space<vmem>>, vector<8x1024xbf16>
      %69 = tpu.concatenate %67, %68 in 0 : vector<8x1024xbf16>, vector<8x1024xbf16> -> vector<16x1024xbf16>
      %c160 = arith.constant 160 : index
      %c0_62 = arith.constant 0 : index
      %70 = vector.load %arg11[%c160, %c0_62] : memref<216x1024xbf16, #tpu.memory_space<vmem>>, vector<16x1024xbf16>
      tpu.vector_store %arg11[%c160, %c0_62], %69 {strides = array<i32>} : memref<216x1024xbf16, #tpu.memory_space<vmem>>, vector<16x1024xbf16>,
      %c0_63 = arith.constant 0 : index
      %c100 = arith.constant 100 : index
      %71 = vector.load %arg10[%c0_63, %c100] : memref<8x2048xbf16, #tpu.memory_space<vmem>>, vector<8x1024xbf16>
      %c0_64 = arith.constant 0 : index
      %c101 = arith.constant 101 : index
      %72 = vector.load %arg10[%c0_64, %c101] : memref<8x2048xbf16, #tpu.memory_space<vmem>>, vector<8x1024xbf16>
      %73 = tpu.concatenate %71, %72 in 0 : vector<8x1024xbf16>, vector<8x1024xbf16> -> vector<16x1024xbf16>
      %c176 = arith.constant 176 : index
      %c0_65 = arith.constant 0 : index
      %74 = vector.load %arg11[%c176, %c0_65] : memref<216x1024xbf16, #tpu.memory_space<vmem>>, vector<16x1024xbf16>
      tpu.vector_store %arg11[%c176, %c0_65], %73 {strides = array<i32>} : memref<216x1024xbf16, #tpu.memory_space<vmem>>, vector<16x1024xbf16>,
      %c0_66 = arith.constant 0 : index
      %c109 = arith.constant 109 : index
      %75 = vector.load %arg10[%c0_66, %c109] : memref<8x2048xbf16, #tpu.memory_space<vmem>>, vector<8x1024xbf16>
      %c0_67 = arith.constant 0 : index
      %c110 = arith.constant 110 : index
      %76 = vector.load %arg10[%c0_67, %c110] : memref<8x2048xbf16, #tpu.memory_space<vmem>>, vector<8x1024xbf16>
      %77 = tpu.concatenate %75, %76 in 0 : vector<8x1024xbf16>, vector<8x1024xbf16> -> vector<16x1024xbf16>
      %c192 = arith.constant 192 : index
      %c0_68 = arith.constant 0 : index
      %78 = vector.load %arg11[%c192, %c0_68] : memref<216x1024xbf16, #tpu.memory_space<vmem>>, vector<16x1024xbf16>
      tpu.vector_store %arg11[%c192, %c0_68], %77 {strides = array<i32>} : memref<216x1024xbf16, #tpu.memory_space<vmem>>, vector<16x1024xbf16>,
      %c0_69 = arith.constant 0 : index
      %c111 = arith.constant 111 : index
      %79 = vector.load %arg10[%c0_69, %c111] : memref<8x2048xbf16, #tpu.memory_space<vmem>>, vector<8x1024xbf16>
      %c208 = arith.constant 208 : index
      %c0_70 = arith.constant 0 : index
      %80 = vector.load %arg11[%c208, %c0_70] : memref<216x1024xbf16, #tpu.memory_space<vmem>>, vector<8x1024xbf16>
      tpu.vector_store %arg11[%c208, %c0_70], %79 {strides = array<i32>} : memref<216x1024xbf16, #tpu.memory_space<vmem>>, vector<8x1024xbf16>,
      %c0_71 = arith.constant 0 : index
      %c0_72 = arith.constant 0 : index
      %c0_73 = arith.constant 0 : index
      %81 = vector.load %arg4[%c0_71, %c0_72, %c0_73] : memref<1x16x216xbf16, #tpu.memory_space<vmem>>, vector<1x16x216xbf16>
      %82 = vector.shape_cast %81 : vector<1x16x216xbf16> to vector<16x216xbf16>
      %c0_74 = arith.constant 0 : index
      %c0_75 = arith.constant 0 : index
      %83 = vector.load %arg11[%c0_74, %c0_75] : memref<216x1024xbf16, #tpu.memory_space<vmem>>, vector<216x1024xbf16>
      %cst_76 = arith.constant dense<0.000000e+00> : vector<16x1024xf32>
      %84 = tpu.matmul %82, %83, %cst_76 {dimension_numbers = #tpu.dot_dimension_numbers<[1], [0], [0], [1], [0, 0, 1, 1], [], []>} : vector<16x216xbf16>, vector<216x1024xbf16>, vector<16x1024xf32> -> vector<16x1024xf32>
      %c0_77 = arith.constant 0 : index
      %c0_78 = arith.constant 0 : index
      %c0_79 = arith.constant 0 : index
      %85 = vector.load %arg5[%c0_77, %c0_78, %c0_79] : memref<1x16x1xf32, #tpu.memory_space<vmem>>, vector<1x16x1xf32>
      %86 = vector.shape_cast %85 : vector<1x16x1xf32> to vector<16x1xf32>
      %87 = vector.broadcast %86 : vector<16x1xf32> to vector<16x1024xf32>
      %88 = arith.addf %84, %87 : vector<16x1024xf32>
      %89 = vector.extract_strided_slice %88 {offsets = [0, 0], sizes = [12, 1024], strides = [1, 1]} : vector<16x1024xf32> to vector<12x1024xf32>
      %90 = arith.negf %89 : vector<12x1024xf32>
      %91 = math.exp %90 : vector<12x1024xf32>
      %cst_80 = arith.constant 1.000000e+00 : f32
      %92 = vector.broadcast %cst_80 : f32 to vector<12x1024xf32>
      %93 = arith.addf %92, %91 : vector<12x1024xf32>
      %94 = arith.divf %92, %93 : vector<12x1024xf32>
      %95 = vector.extract_strided_slice %88 {offsets = [12, 0], sizes = [4, 1024], strides = [1, 1]} : vector<16x1024xf32> to vector<4x1024xf32>
      %96 = math.tanh %95 : vector<4x1024xf32>
      %97 = vector.extract_strided_slice %94 {offsets = [0, 0], sizes = [4, 1024], strides = [1, 1]} : vector<12x1024xf32> to vector<4x1024xf32>
      %98 = vector.extract_strided_slice %94 {offsets = [4, 0], sizes = [4, 1024], strides = [1, 1]} : vector<12x1024xf32> to vector<4x1024xf32>
      %99 = vector.extract_strided_slice %94 {offsets = [8, 0], sizes = [4, 1024], strides = [1, 1]} : vector<12x1024xf32> to vector<4x1024xf32>
      %100 = arith.mulf %98, %23 : vector<4x1024xf32>
      %101 = arith.mulf %97, %96 : vector<4x1024xf32>
      %102 = arith.addf %100, %101 : vector<4x1024xf32>
      %103 = math.tanh %102 : vector<4x1024xf32>
      %104 = arith.mulf %99, %103 : vector<4x1024xf32>
      %105 = vector.broadcast %0 : vector<1x1024xf32> to vector<4x1024xf32>
      %106 = arith.mulf %104, %105 : vector<4x1024xf32>
      %c0_81 = arith.constant 0 : index
      %c0_82 = arith.constant 0 : index
      %107 = vector.load %arg8[%c0_81, %c0_82] : memref<4x1024xf32, #tpu.memory_space<vmem>>, vector<4x1024xf32>
      tpu.vector_store %arg8[%c0_81, %c0_82], %106 {strides = array<i32>} : memref<4x1024xf32, #tpu.memory_space<vmem>>, vector<4x1024xf32>,
      %c0_83 = arith.constant 0 : index
      %c0_84 = arith.constant 0 : index
      %108 = vector.load %arg9[%c0_83, %c0_84] : memref<4x1024xf32, #tpu.memory_space<vmem>>, vector<4x1024xf32>
      tpu.vector_store %arg9[%c0_83, %c0_84], %102 {strides = array<i32>} : memref<4x1024xf32, #tpu.memory_space<vmem>>, vector<4x1024xf32>,
      %109 = tpu.concatenate %106, %102 in 0 : vector<4x1024xf32>, vector<4x1024xf32> -> vector<8x1024xf32>
      %c0_85 = arith.constant 0 : index
      %110 = arith.index_cast %8 : i32 to index
      %c0_86 = arith.constant 0 : index
      %c0_87 = arith.constant 0 : index
      %111 = vector.load %arg7[%c0_85, %110, %c0_86, %c0_87] : memref<1x4x8x1024xf32, #tpu.memory_space<vmem>>, vector<1x1x8x1024xf32>
      %112 = vector.shape_cast %111 : vector<1x1x8x1024xf32> to vector<8x1024xf32>
      %113 = vector.shape_cast %109 : vector<8x1024xf32> to vector<1x1x8x1024xf32>
      tpu.vector_store %arg7[%c0_85, %110, %c0_86, %c0_87], %113 {strides = array<i32>} : memref<1x4x8x1024xf32, #tpu.memory_space<vmem>>, vector<1x1x8x1024xf32>,
    }
    %c4_i32_9 = arith.constant 4 : i32
    return
  }
  func.func @transform_0(%arg0: i32, %arg1: memref<4xi32, #tpu.memory_space<smem>>, %arg2: memref<4xi32, #tpu.memory_space<smem>>) -> (i32, i32, i32, i32) {
    %c0_i32 = arith.constant 0 : i32
    %c0_i32_0 = arith.constant 0 : i32
    %c0_i32_1 = arith.constant 0 : i32
    %c0_i32_2 = arith.constant 0 : i32
    return %arg0, %c0_i32, %c0_i32_0, %c0_i32_1 : i32, i32, i32, i32
  }
  func.func @transform_1(%arg0: i32, %arg1: memref<4xi32, #tpu.memory_space<smem>>, %arg2: memref<4xi32, #tpu.memory_space<smem>>) -> (i32, i32, i32) {
    %c0_i32 = arith.constant 0 : i32
    %c0_i32_0 = arith.constant 0 : i32
    %c0_i32_1 = arith.constant 0 : i32
    %c0_i32_2 = arith.constant 0 : i32
    return %c0_i32, %c0_i32_0, %c0_i32_1 : i32, i32, i32
  }
  func.func @transform_2(%arg0: i32, %arg1: memref<4xi32, #tpu.memory_space<smem>>, %arg2: memref<4xi32, #tpu.memory_space<smem>>) -> (i32, i32, i32) {
    %c0_i32 = arith.constant 0 : i32
    %c0_i32_0 = arith.constant 0 : i32
    %c0_i32_1 = arith.constant 0 : i32
    %c0_i32_2 = arith.constant 0 : i32
    return %c0_i32, %c0_i32_0, %c0_i32_1 : i32, i32, i32
  }
  func.func @transform_3(%arg0: i32, %arg1: memref<4xi32, #tpu.memory_space<smem>>, %arg2: memref<4xi32, #tpu.memory_space<smem>>) -> (i32, i32) {
    %c0_i32 = arith.constant 0 : i32
    %c0_i32_0 = arith.constant 0 : i32
    %c0_i32_1 = arith.constant 0 : i32
    return %c0_i32, %c0_i32_0 : i32, i32
  }
  func.func @transform_4(%arg0: i32, %arg1: memref<4xi32, #tpu.memory_space<smem>>, %arg2: memref<4xi32, #tpu.memory_space<smem>>) -> (i32, i32, i32, i32) {
    %c0_i32 = arith.constant 0 : i32
    %c0_i32_0 = arith.constant 0 : i32
    %c0_i32_1 = arith.constant 0 : i32
    %c0_i32_2 = arith.constant 0 : i32
    return %arg0, %c0_i32, %c0_i32_0, %c0_i32_1 : i32, i32, i32, i32
  }
}

</mosaic_0001>

<llo_original>
// kernel: _convlstm3d_fused.1
$region0: #{_convlstm3d_fused.1}
  #allocation0 [shape = 'u32[]', space=smem, size = 0x4, offset = 0x4, fixed_abs, tag = 'smem constant byte address 0x4 - core index']
  #allocation1 [shape = 'u32[144,128]{1,0:T(1,128)}', space=vmem, size = 0x12000, scoped, tag = 'internal scratch']
  #allocation2 [shape = 'f32[4,1024]{1,0:T(4,128)}', space=vmem, size = 0x4000, scoped, tag = 'scratch operand']
  #allocation3 [shape = 'f32[4,1024]{1,0:T(4,128)}', space=vmem, size = 0x4000, scoped, tag = 'scratch operand']
  #allocation4 [shape = 'bf16[8,2048]{1,0:T(8,128)(2,1)}', space=vmem, size = 0x8000, scoped, tag = 'scratch operand']
  #allocation5 [shape = 'bf16[216,1024]{1,0:T(8,128)(2,1)}', space=vmem, size = 0x6c000, scoped, tag = 'scratch operand']
  #allocation6 [shape = 's32[1]{0}', space=sflag, size = 0x4, scoped, tag = 'scoped memory for _convlstm3d_fused.1']
  #allocation7 [shape = 'u8[512]{0}', space=smem, size = 0x200, scoped, tag = 'prefetched SMEM operand 0']
  #allocation8 [shape = 'u8[512]{0}', space=smem, size = 0x200, scoped, tag = 'prefetched SMEM operand 1']
  %s0 = inlined_call_operand.vmem [shape: s32[4], index: 0, kind: input, shape index: {}]
  %s1 = inlined_call_operand.vmem [shape: s32[4], index: 1, kind: input, shape index: {}]
  %s2 = inlined_call_operand.vmem [shape: f32[2,4,4,1024], index: 2, kind: input, shape index: {}]
  %s3 = inlined_call_operand.vmem [shape: bf16[1,16,216], index: 3, kind: input, shape index: {}]
  %s4 = inlined_call_operand.vmem [shape: f32[1,16,1], index: 4, kind: input, shape index: {}]
  %s5 = inlined_call_operand.vmem [shape: f32[1,1024], index: 5, kind: input, shape index: {}]
  %s6 = inlined_call_operand.vmem [shape: f32[2,4,8,1024], index: 6, kind: output, shape index: {}]
  %s7 = sld [smem:[#allocation0]]
  $region56: #{_convlstm3d_fused.1} parent=0
    _
  %s9 = ssub.s32 1, %s7
  %s10 = scalar_select 0, %s9, %s7
  %s11 = sshll.u32 %s0, 4
  %s12 = int_to_ptr.vmem [resolvable:$true] %s11
  %14 = dma.vmem_to_smem %s12, 16, [#allocation7], [#allocation6]
  %s15 = sshll.u32 %s1, 4
  %s16 = int_to_ptr.vmem [resolvable:$true] %s15
  %18 = dma.vmem_to_smem %s16, 16, [#allocation8], [#allocation6]
  %19 = dma.done [#allocation6], 32
  %20 = sfence
  loop: start=0, step=1, limit=4
  $region2: #{_convlstm3d_fused.1} parent=0 // loop_pre_header
    _
  $region3: #{_convlstm3d_fused.1} parent=0 // loop_header
    %s22 = sphi 0, %s26
    %p23 = scmp.ge.s32.totalorder %s22, 4
    %s32 = sphi 0, %s34
    %s35 = sphi 0, %s32
    %s36 = sphi 0, %s35
    %s52 = sphi 0, %s36
    %s56 = sphi 0, %s56
    %s58 = sphi 0, %s56
    %s59 = sphi 0, %s58
    %s73 = sphi 0, %s59
    %s77 = sphi 0, %s77
    %s79 = sphi 0, %s77
    %s80 = sphi 0, %s79
    %s94 = sphi 0, %s80
    %s98 = sphi 0, %s98
    %s100 = sphi 0, %s98
    %s101 = sphi 0, %s100
    %s115 = sphi 0, %s101
    %s121 = sphi 0, %s123
    %s124 = sphi 0, %s121
    %s125 = sphi 0, %s124
    %s141 = sphi 0, %s125
  $region4: #{_convlstm3d_fused.1} parent=0 // loop_header_branch
    %25 = sbr.rel (%p23) target = $region8
  $region5: #{_convlstm3d_fused.1} parent=0 // loop_body
    %s27 = ssub.s32 %s22, 1
    %s28 = ssub.s32 %s22, 2
    %s29 = sadd.s32 %s22, 1
    %s30 = ssub.s32 %s22, %s29
    %p31 = scmp.eq.s32.totalorder %s30, 0
    %s33 = sadd.s32 %s32, 1
    %s34 = scalar_select %p31, %s32, %s33
    %p37 = pneg %p31
    %p38 = scmp.eq.s32.totalorder %s22, 1
    %p39 = por %p37, %p38
    %p40 = scmp.ne.s32.totalorder %s32, %s35
    %p41 = scmp.eq.s32.totalorder %s22, 0
    %p42 = por %p40, %p41
    %p43 = scmp.ne.s32.totalorder %s32, %s35
    %p44 = scmp.eq.s32.totalorder %s27, 1
    %p45 = por %p43, %p44
    %p46 = scmp.ne.s32.totalorder %s35, %s36
    %p47 = scmp.eq.s32.totalorder %s27, 0
    %p48 = por %p46, %p47
    %p49 = scmp.ne.s32.totalorder %s35, %s36
    %p50 = scmp.eq.s32.totalorder %s28, 1
    %p51 = por %p49, %p50
    %p53 = scmp.ne.s32.totalorder %s36, %s52
    %p54 = scmp.eq.s32.totalorder %s28, 0
    %p55 = por %p53, %p54
    %s57 = sadd.s32 %s56, 1
    %p60 = scmp.eq.s32.totalorder %s22, 1
    %p61 = scmp.ne.s32.totalorder %s56, %s58
    %p62 = scmp.eq.s32.totalorder %s22, 0
    %p63 = por %p61, %p62
    %p64 = scmp.ne.s32.totalorder %s56, %s58
    %p65 = scmp.eq.s32.totalorder %s27, 1
    %p66 = por %p64, %p65
    %p67 = scmp.ne.s32.totalorder %s58, %s59
    %p68 = scmp.eq.s32.totalorder %s27, 0
    %p69 = por %p67, %p68
    %p70 = scmp.ne.s32.totalorder %s58, %s59
    %p71 = scmp.eq.s32.totalorder %s28, 1
    %p72 = por %p70, %p71
    %p74 = scmp.ne.s32.totalorder %s59, %s73
    %p75 = scmp.eq.s32.totalorder %s28, 0
    %p76 = por %p74, %p75
    %s78 = sadd.s32 %s77, 1
    %p81 = scmp.eq.s32.totalorder %s22, 1
    %p82 = scmp.ne.s32.totalorder %s77, %s79
    %p83 = scmp.eq.s32.totalorder %s22, 0
    %p84 = por %p82, %p83
    %p85 = scmp.ne.s32.totalorder %s77, %s79
    %p86 = scmp.eq.s32.totalorder %s27, 1
    %p87 = por %p85, %p86
    %p88 = scmp.ne.s32.totalorder %s79, %s80
    %p89 = scmp.eq.s32.totalorder %s27, 0
    %p90 = por %p88, %p89
    %p91 = scmp.ne.s32.totalorder %s79, %s80
    %p92 = scmp.eq.s32.totalorder %s28, 1
    %p93 = por %p91, %p92
    %p95 = scmp.ne.s32.totalorder %s80, %s94
    %p96 = scmp.eq.s32.totalorder %s28, 0
    %p97 = por %p95, %p96
    %s99 = sadd.s32 %s98, 1
    %p102 = scmp.eq.s32.totalorder %s22, 1
    %p103 = scmp.ne.s32.totalorder %s98, %s100
    %p104 = scmp.eq.s32.totalorder %s22, 0
    %p105 = por %p103, %p104
    %p106 = scmp.ne.s32.totalorder %s98, %s100
    %p107 = scmp.eq.s32.totalorder %s27, 1
    %p108 = por %p106, %p107
    %p109 = scmp.ne.s32.totalorder %s100, %s101
    %p110 = scmp.eq.s32.totalorder %s27, 0
    %p111 = por %p109, %p110
    %p112 = scmp.ne.s32.totalorder %s100, %s101
    %p113 = scmp.eq.s32.totalorder %s28, 1
    %p114 = por %p112, %p113
    %p116 = scmp.ne.s32.totalorder %s101, %s115
    %p117 = scmp.eq.s32.totalorder %s28, 0
    %p118 = por %p116, %p117
    %s119 = ssub.s32 %s22, %s29
    %p120 = scmp.eq.s32.totalorder %s119, 0
    %s122 = sadd.s32 %s121, 1
    %s123 = scalar_select %p120, %s121, %s122
    %p126 = pneg %p120
    %p127 = scmp.eq.s32.totalorder %s22, 1
    %p128 = por %p126, %p127
    %p129 = scmp.ne.s32.totalorder %s121, %s124
    %p130 = scmp.eq.s32.totalorder %s22, 0
    %p131 = por %p129, %p130
    %p132 = scmp.ne.s32.totalorder %s121, %s124
    %p133 = scmp.eq.s32.totalorder %s27, 1
    %p134 = por %p132, %p133
    %p135 = scmp.ne.s32.totalorder %s124, %s125
    %p136 = scmp.eq.s32.totalorder %s27, 0
    %p137 = por %p135, %p136
    %p138 = scmp.ne.s32.totalorder %s124, %s125
    %p139 = scmp.eq.s32.totalorder %s28, 1
    %p140 = por %p138, %p139
    %p142 = scmp.ne.s32.totalorder %s125, %s141
    %p143 = scmp.eq.s32.totalorder %s28, 0
    %p144 = por %p142, %p143
    %p145 = scmp.le.s32.totalorder 1, %s22
    %p146 = scmp.lt.s32.totalorder %s22, 3
    %p147 = pnand %p145, %p146
    %p148 = pneg %p147
    // Predicated region
    $region9: #{_convlstm3d_fused.1} parent=5 // pred_check
      _
    $region10: #{_convlstm3d_fused.1} parent=5 // pred_check_branch
      %150 = sbr.rel (%p147) target = $region12
    $region11: #{_convlstm3d_fused.1} parent=5 // pred_region
      %s151 = ssub.s32 %s22, 1
      // Predicated region
      $region13: #{_convlstm3d_fused.1} parent=11 // pred_check
        %p152 = pneg %p69
      $region14: #{_convlstm3d_fused.1} parent=11 // pred_check_branch
        %154 = sbr.rel (%p152) target = $region16
      $region15: #{_convlstm3d_fused.1} parent=11 // pred_region
        _
      $region16: #{_convlstm3d_fused.1} parent=11 // pred_fallthru
        _
      // Predicated region
      $region17: #{_convlstm3d_fused.1} parent=11 // pred_check
        %p155 = pneg %p90
      $region18: #{_convlstm3d_fused.1} parent=11 // pred_check_branch
        %157 = sbr.rel (%p155) target = $region20
      $region19: #{_convlstm3d_fused.1} parent=11 // pred_region
        _
      $region20: #{_convlstm3d_fused.1} parent=11 // pred_fallthru
        _
      // Predicated region
      $region21: #{_convlstm3d_fused.1} parent=11 // pred_check
        %p158 = pneg %p111
      $region22: #{_convlstm3d_fused.1} parent=11 // pred_check_branch
        %160 = sbr.rel (%p158) target = $region24
      $region23: #{_convlstm3d_fused.1} parent=11 // pred_region
        _
      $region24: #{_convlstm3d_fused.1} parent=11 // pred_fallthru
        _
    $region12: #{_convlstm3d_fused.1} parent=5 // pred_fallthru
      _
    %p161 = scmp.lt.s32.totalorder %s22, 2
    // Predicated region
    $region25: #{_convlstm3d_fused.1} parent=5 // pred_check
      %p162 = pneg %p161
    $region26: #{_convlstm3d_fused.1} parent=5 // pred_check_branch
      %164 = sbr.rel (%p162) target = $region28
    $region27: #{_convlstm3d_fused.1} parent=5 // pred_region
      // Predicated region
      $region29: #{_convlstm3d_fused.1} parent=27 // pred_check
        %p165 = pneg %p42
      $region30: #{_convlstm3d_fused.1} parent=27 // pred_check_branch
        %167 = sbr.rel (%p165) target = $region32
      $region31: #{_convlstm3d_fused.1} parent=27 // pred_region
        %p168 = scmp.lt.s32.totalorder %s22, 1
        %s169 = scalar_select %p168, %s22, 1
        %s170 = smul.addr %s169, 32
        %s171 = smul.addr %s170, 4
        %s172 = scalar_lea.vmem %s2, %s171
      $region32: #{_convlstm3d_fused.1} parent=27 // pred_fallthru
        _
    $region28: #{_convlstm3d_fused.1} parent=5 // pred_fallthru
      _
    %p173 = scmp.le.s32.totalorder 1, %s22
    %p174 = scmp.lt.s32.totalorder %s22, 3
    %p175 = pnand %p173, %p174
    %p176 = pneg %p175
    // Predicated region
    $region33: #{_convlstm3d_fused.1} parent=5 // pred_check
      _
    $region34: #{_convlstm3d_fused.1} parent=5 // pred_check_branch
      %178 = sbr.rel (%p175) target = $region36
    $region35: #{_convlstm3d_fused.1} parent=5 // pred_region
      %s179 = ssub.s32 %s22, 1
      %p180 = scmp.lt.s32.totalorder %s27, 1
      %s181 = scalar_select %p180, %s27, 1
      %s182 = smul.addr %s181, 32
      %s183 = smul.addr %s182, 4
      %s184 = scalar_lea.vmem %s2, %s183
      %p185 = pneg %p48
      %p186 = pneg %p45
      %p187 = pneg %p69
      %p188 = pneg %p66
      %p189 = pneg %p90
      %p190 = pneg %p87
      %p191 = pneg %p111
      %p192 = pneg %p108
      %p193 = pneg %p137
      %p194 = pneg %p134
      %p195 = scmp.lt.s32.totalorder %s27, 1
      %s196 = scalar_select %p195, %s27, 1
      %s197 = smul.addr %s196, 32
      %s198 = smul.addr %s197, 8
      %s199 = scalar_lea.vmem %s6, %s198
      %p200 = scmp.lt.s32.totalorder %s27, 1
      %s201 = scalar_select %p200, %s27, 1
      %s202 = smul.addr %s201, 32
      %s203 = smul.addr %s202, 4
      %s204 = scalar_lea.vmem %s2, %s203
      %p205 = scmp.lt.s32.totalorder %s27, 1
      %s206 = scalar_select %p205, %s27, 1
      %s207 = smul.addr %s206, 32
      %s208 = smul.addr %s207, 8
      %s209 = scalar_lea.vmem %s6, %s208
      %v211 = vld [vmem:[%s5] sm:$0xff]
      %v212 = vld [vmem:[%s204] sm:$0xff]
      %v213 = vld [vmem:[%s204 + $0x8] sm:$0xff]
      %v214 = vld [vmem:[%s204 + $0x10] sm:$0xff]
      %v215 = vld [vmem:[%s204 + $0x18] sm:$0xff]
      %216 = vst [vmem:[#allocation2] sm:$0xff] %v212
      %217 = vst [vmem:[#allocation2 + $0x8] sm:$0xff] %v213
      %218 = vst [vmem:[#allocation2 + $0x10] sm:$0xff] %v214
      %219 = vst [vmem:[#allocation2 + $0x18] sm:$0xff] %v215
      %220 = vst [vmem:[#allocation3] sm:$0xff] 0.0
      %221 = vst [vmem:[#allocation3 + $0x8] sm:$0xff] 0.0
      %222 = vst [vmem:[#allocation3 + $0x10] sm:$0xff] 0.0
      %223 = vst [vmem:[#allocation3 + $0x18] sm:$0xff] 0.0
      loop: start=0, step=1, limit=4
      $region37: #{_convlstm3d_fused.1} parent=35 // loop_pre_header
        _
      $region38: #{_convlstm3d_fused.1} parent=35 // loop_header
        %s225 = sphi 0, %s229
        %p226 = scmp.ge.s32.totalorder %s225, 4
      $region39: #{_convlstm3d_fused.1} parent=35 // loop_header_branch
        %228 = sbr.rel (%p226) target = $region43
      $region40: #{_convlstm3d_fused.1} parent=35 // loop_body
        %s230 = sld [smem:[#allocation7 + %s225]]
        %s231 = sld [smem:[#allocation8 + %s225]]
        %p232 = scmp.gt.s32.totalorder %s231, 0
        %s233 = smul.u32 %s230, 8
        %s234 = smul.addr %s233, 4
        %s235 = scalar_lea.vmem %s204, %s234
        %v236 = vld [vmem:[%s235] sm:$0xff]
        %v237 = vld [vmem:[%s235 + $0x8] sm:$0xff]
        %v238 = vld [vmem:[%s235 + $0x10] sm:$0xff]
        %v239 = vld [vmem:[%s235 + $0x18] sm:$0xff]
        %v240 = vld [vmem:[#allocation2] sm:$0xff]
        %v241 = vld [vmem:[#allocation2 + $0x8] sm:$0xff]
        %v242 = vld [vmem:[#allocation2 + $0x10] sm:$0xff]
        %v243 = vld [vmem:[#allocation2 + $0x18] sm:$0xff]
        %s244 = scalar_select %p232, 1, 0
        %v245 = vstv %s244
        %vm246 = vcmp.eq.s32.totalorder %v245, 1
        %v247 = vsel %vm246, %v236, %v240
        %v248 = vsel %vm246, %v237, %v241
        %v249 = vsel %vm246, %v238, %v242
        %v250 = vsel %vm246, %v239, %v243
        %v255 = vcombine.high %v247, %v247
        %v256 = vcombine.high %v248, %v248
        %v257 = vcombine.high %v249, %v249
        %v258 = vcombine.high %v250, %v250
        %v263 = vpack.c.bf16 %v247, %v247
        %v264 = vpack.c.bf16 %v255, %v255
        %v265 = vpack.c.bf16 %v248, %v248
        %v266 = vpack.c.bf16 %v256, %v256
        %v267 = vpack.c.bf16 %v249, %v249
        %v268 = vpack.c.bf16 %v257, %v257
        %v269 = vpack.c.bf16 %v250, %v250
        %v270 = vpack.c.bf16 %v258, %v258
        %v279 = vunpack.c.l.b16 %v263
        %v280 = vunpack.c.l.b16 %v264
        %v281 = vunpack.c.l.b16 %v265
        %v282 = vunpack.c.l.b16 %v266
        %v283 = vunpack.c.l.b16 %v267
        %v284 = vunpack.c.l.b16 %v268
        %v285 = vunpack.c.l.b16 %v269
        %v286 = vunpack.c.l.b16 %v270
        %v287 = vpack.c.b16 %v280, %v279
        %v288 = vpack.c.b16 %v282, %v281
        %v289 = vpack.c.b16 %v284, %v283
        %v290 = vpack.c.b16 %v286, %v285
        %295 = vst [vmem:[#allocation4] sm:$0x33] %v287
        %296 = vst [vmem:[#allocation4 + $0x8] sm:$0x33] %v288
        %297 = vst [vmem:[#allocation4 + $0x10] sm:$0x33] %v289
        %298 = vst [vmem:[#allocation4 + $0x18] sm:$0x33] %v290
        %299 = vst [vmem:[#allocation4 + $0x20] sm:$0x33] %v287
        %300 = vst [vmem:[#allocation4 + $0x28] sm:$0x33] %v288
        %301 = vst [vmem:[#allocation4 + $0x30] sm:$0x33] %v289
        %302 = vst [vmem:[#allocation4 + $0x38] sm:$0x33] %v290
        %v303 = vld [vmem:[#allocation2] sm:$0xff]
        %v304 = vld [vmem:[#allocation2 + $0x8] sm:$0xff]
        %v305 = vld [vmem:[#allocation2 + $0x10] sm:$0xff]
        %v306 = vld [vmem:[#allocation2 + $0x18] sm:$0xff]
        %v307 = vld [vmem:[#allocation3] sm:$0xff]
        %v308 = vld [vmem:[#allocation3 + $0x8] sm:$0xff]
        %v309 = vld [vmem:[#allocation3 + $0x10] sm:$0xff]
        %v310 = vld [vmem:[#allocation3 + $0x18] sm:$0xff]
        %v315 = vcombine.high %v303, %v303
        %v316 = vcombine.high %v304, %v304
        %v317 = vcombine.high %v305, %v305
        %v318 = vcombine.high %v306, %v306
        %v323 = vpack.c.bf16 %v303, %v303
        %v324 = vpack.c.bf16 %v315, %v315
        %v325 = vpack.c.bf16 %v304, %v304
        %v326 = vpack.c.bf16 %v316, %v316
        %v327 = vpack.c.bf16 %v305, %v305
        %v328 = vpack.c.bf16 %v317, %v317
        %v329 = vpack.c.bf16 %v306, %v306
        %v330 = vpack.c.bf16 %v318, %v318
        %v339 = vunpack.c.l.b16 %v323
        %v340 = vunpack.c.l.b16 %v324
        %v341 = vunpack.c.l.b16 %v325
        %v342 = vunpack.c.l.b16 %v326
        %v343 = vunpack.c.l.b16 %v327
        %v344 = vunpack.c.l.b16 %v328
        %v345 = vunpack.c.l.b16 %v329
        %v346 = vunpack.c.l.b16 %v330
        %v347 = vpack.c.b16 %v340, %v339
        %v348 = vpack.c.b16 %v342, %v341
        %v349 = vpack.c.b16 %v344, %v343
        %v350 = vpack.c.b16 %v346, %v345
        %v351 = vrot.slane %v347, 6
        %v352 = vrot.slane %v348, 6
        %v353 = vrot.slane %v349, 6
        %v354 = vrot.slane %v350, 6
        %359 = vst [vmem:[#allocation4] sm:$0xcc] %v351
        %360 = vst [vmem:[#allocation4 + $0x8] sm:$0xcc] %v352
        %361 = vst [vmem:[#allocation4 + $0x10] sm:$0xcc] %v353
        %362 = vst [vmem:[#allocation4 + $0x18] sm:$0xcc] %v354
        %363 = vst [vmem:[#allocation4 + $0x20] sm:$0xcc] %v351
        %364 = vst [vmem:[#allocation4 + $0x28] sm:$0xcc] %v352
        %365 = vst [vmem:[#allocation4 + $0x30] sm:$0xcc] %v353
        %366 = vst [vmem:[#allocation4 + $0x38] sm:$0xcc] %v354
        %v367 = vld [vmem:[#allocation4 + $0x1c] sm:$0xff]
        %v368 = vld [vmem:[#allocation4 + $0x24] sm:$0xff]
        %v369 = vld [vmem:[#allocation4 + $0x2c] sm:$0xff]
        %v370 = vld [vmem:[#allocation4 + $0x34] sm:$0xff]
        %v371 = vld [vmem:[#allocation4 + $0x3c] sm:$0xf]
        %v377 = vunpack.c.l.b16 %v367
        %v378 = vunpack.c.h.b16 %v367
        %v379 = vunpack.c.l.b16 %v368
        %v380 = vunpack.c.h.b16 %v368
        %v381 = vunpack.c.l.b16 %v369
        %v382 = vunpack.c.h.b16 %v369
        %v383 = vunpack.c.l.b16 %v370
        %v384 = vunpack.c.h.b16 %v370
        %v385 = vunpack.c.l.b16 %v371
        %v386 = vpack.c.b16 %v377, %v377
        %v387 = vpack.c.b16 %v378, %v378
        %v388 = vpack.c.b16 %v379, %v379
        %v389 = vpack.c.b16 %v380, %v380
        %v390 = vpack.c.b16 %v381, %v381
        %v391 = vpack.c.b16 %v382, %v382
        %v392 = vpack.c.b16 %v383, %v383
        %v393 = vpack.c.b16 %v384, %v384
        %v394 = vpack.c.b16 %v385, %v385
        %395 = vrot.lane.b32.xlu0 %v386, 127
        %v396 = vpop.permute.xlu0 %395
        %397 = vrot.lane.b32.xlu0 %v387, 127
        %v398 = vpop.permute.xlu0 %397
        %399 = vrot.lane.b32.xlu0 %v388, 127
        %v400 = vpop.permute.xlu0 %399
        %401 = vrot.lane.b32.xlu0 %v389, 127
        %v402 = vpop.permute.xlu0 %401
        %403 = vrot.lane.b32.xlu0 %v390, 127
        %v404 = vpop.permute.xlu0 %403
        %405 = vrot.lane.b32.xlu0 %v391, 127
        %v406 = vpop.permute.xlu0 %405
        %407 = vrot.lane.b32.xlu0 %v392, 127
        %v408 = vpop.permute.xlu0 %407
        %409 = vrot.lane.b32.xlu0 %v393, 127
        %v410 = vpop.permute.xlu0 %409
        %411 = vrot.lane.b32.xlu0 %v394, 127
        %v412 = vpop.permute.xlu0 %411
        %vm413 = vcmask 1039360
        %v414 = vsel %vm413, %v396, %v398
        %v415 = vsel %vm413, %v398, %v400
        %v416 = vsel %vm413, %v400, %v402
        %v417 = vsel %vm413, %v402, %v404
        %v418 = vsel %vm413, %v404, %v406
        %v419 = vsel %vm413, %v406, %v408
        %v420 = vsel %vm413, %v408, %v410
        %v421 = vsel %vm413, %v410, %v412
        %vm422 = vcmask 1043456
        %v425 = vsel %vm422, %v386, %v414
        %v428 = vsel %vm422, %v387, %v415
        %v431 = vsel %vm422, %v388, %v416
        %v434 = vsel %vm422, %v389, %v417
        %v437 = vsel %vm422, %v390, %v418
        %v440 = vsel %vm422, %v391, %v419
        %v443 = vsel %vm422, %v392, %v420
        %v446 = vsel %vm422, %v393, %v421
        %v449 = vsel %vm422, %v394, %v412
        %v459 = vunpack.c.l.b16 %v425
        %v460 = vunpack.c.l.b16 %v428
        %v461 = vunpack.c.l.b16 %v431
        %v462 = vunpack.c.l.b16 %v434
        %v463 = vunpack.c.l.b16 %v437
        %v464 = vunpack.c.l.b16 %v440
        %v465 = vunpack.c.l.b16 %v443
        %v466 = vunpack.c.l.b16 %v446
        %v467 = vunpack.c.l.b16 %v449
        %v468 = vunpack.c.h.b16 %v425
        %v469 = vunpack.c.h.b16 %v428
        %v470 = vunpack.c.h.b16 %v431
        %v471 = vunpack.c.h.b16 %v434
        %v472 = vunpack.c.h.b16 %v437
        %v473 = vunpack.c.h.b16 %v440
        %v474 = vunpack.c.h.b16 %v443
        %v475 = vunpack.c.h.b16 %v446
        %v476 = vunpack.c.h.b16 %v449
        %v477 = vpack.c.b16 %v460, %v459
        %v478 = vpack.c.b16 %v462, %v461
        %v479 = vpack.c.b16 %v464, %v463
        %v480 = vpack.c.b16 %v466, %v465
        %v481 = vpack.c.b16 %v467, %v467
        %v482 = vpack.c.b16 %v469, %v468
        %v483 = vpack.c.b16 %v471, %v470
        %v484 = vpack.c.b16 %v473, %v472
        %v485 = vpack.c.b16 %v475, %v474
        %v486 = vpack.c.b16 %v476, %v476
        %487 = vrot.lane.b32.xlu0 %v477, 111
        %v488 = vpop.permute.xlu0 %487
        %489 = vrot.lane.b32.xlu0 %v478, 111
        %v490 = vpop.permute.xlu0 %489
        %491 = vrot.lane.b32.xlu0 %v479, 111
        %v492 = vpop.permute.xlu0 %491
        %493 = vrot.lane.b32.xlu0 %v480, 111
        %v494 = vpop.permute.xlu0 %493
        %495 = vrot.lane.b32.xlu0 %v481, 111
        %v496 = vpop.permute.xlu0 %495
        %497 = vrot.lane.b32.xlu0 %v482, 111
        %v498 = vpop.permute.xlu0 %497
        %499 = vrot.lane.b32.xlu0 %v483, 111
        %v500 = vpop.permute.xlu0 %499
        %501 = vrot.lane.b32.xlu0 %v484, 111
        %v502 = vpop.permute.xlu0 %501
        %503 = vrot.lane.b32.xlu0 %v485, 111
        %v504 = vpop.permute.xlu0 %503
        %505 = vrot.lane.b32.xlu0 %v486, 111
        %v506 = vpop.permute.xlu0 %505
        %v507 = vrot.slane %v488, 4
        %v508 = vrot.slane %v490, 4
        %v509 = vrot.slane %v492, 4
        %v510 = vrot.slane %v494, 4
        %v511 = vrot.slane %v496, 4
        %v512 = vrot.slane %v498, 4
        %v513 = vrot.slane %v500, 4
        %v514 = vrot.slane %v502, 4
        %v515 = vrot.slane %v504, 4
        %v516 = vrot.slane %v506, 4
        %vm517 = vcmask 1043456
        %v518 = vsel %vm517, %v507, %v508
        %vm519 = vcmask 908288
        %v520 = vsel %vm519, %v488, %v518
        %v521 = vsel %vm517, %v508, %v509
        %v522 = vsel %vm519, %v490, %v521
        %v523 = vsel %vm517, %v509, %v510
        %v524 = vsel %vm519, %v492, %v523
        %v525 = vsel %vm517, %v510, %v511
        %v526 = vsel %vm519, %v494, %v525
        %v527 = vsel %vm517, %v512, %v513
        %v528 = vsel %vm519, %v498, %v527
        %v529 = vsel %vm517, %v513, %v514
        %v530 = vsel %vm519, %v500, %v529
        %v531 = vsel %vm517, %v514, %v515
        %v532 = vsel %vm519, %v502, %v531
        %v533 = vsel %vm517, %v515, %v516
        %v534 = vsel %vm519, %v504, %v533
        %543 = vst [vmem:[#allocation5] sm:$0xff] %v520
        %544 = vst [vmem:[#allocation5 + $0x8] sm:$0xff] %v522
        %545 = vst [vmem:[#allocation5 + $0x10] sm:$0xff] %v524
        %546 = vst [vmem:[#allocation5 + $0x18] sm:$0xff] %v526
        %547 = vst [vmem:[#allocation5 + $0x20] sm:$0xff] %v528
        %548 = vst [vmem:[#allocation5 + $0x28] sm:$0xff] %v530
        %549 = vst [vmem:[#allocation5 + $0x30] sm:$0xff] %v532
        %550 = vst [vmem:[#allocation5 + $0x38] sm:$0xff] %v534
        %v551 = vld [vmem:[#allocation4 + $0x1c] sm:$0xff]
        %v552 = vld [vmem:[#allocation4 + $0x24] sm:$0xff]
        %v553 = vld [vmem:[#allocation4 + $0x2c] sm:$0xff]
        %v554 = vld [vmem:[#allocation4 + $0x34] sm:$0xff]
        %v555 = vld [vmem:[#allocation4 + $0x3c] sm:$0xf]
        %v561 = vunpack.c.l.b16 %v551
        %v562 = vunpack.c.h.b16 %v551
        %v563 = vunpack.c.l.b16 %v552
        %v564 = vunpack.c.h.b16 %v552
        %v565 = vunpack.c.l.b16 %v553
        %v566 = vunpack.c.h.b16 %v553
        %v567 = vunpack.c.l.b16 %v554
        %v568 = vunpack.c.h.b16 %v554
        %v569 = vunpack.c.l.b16 %v555
        %v570 = vpack.c.b16 %v561, %v561
        %v571 = vpack.c.b16 %v562, %v562
        %v572 = vpack.c.b16 %v563, %v563
        %v573 = vpack.c.b16 %v564, %v564
        %v574 = vpack.c.b16 %v565, %v565
        %v575 = vpack.c.b16 %v566, %v566
        %v576 = vpack.c.b16 %v567, %v567
        %v577 = vpack.c.b16 %v568, %v568
        %v578 = vpack.c.b16 %v569, %v569
        %579 = vrot.lane.b32.xlu0 %v570, 120
        %v580 = vpop.permute.xlu0 %579
        %581 = vrot.lane.b32.xlu0 %v571, 120
        %v582 = vpop.permute.xlu0 %581
        %583 = vrot.lane.b32.xlu0 %v572, 120
        %v584 = vpop.permute.xlu0 %583
        %585 = vrot.lane.b32.xlu0 %v573, 120
        %v586 = vpop.permute.xlu0 %585
        %587 = vrot.lane.b32.xlu0 %v574, 120
        %v588 = vpop.permute.xlu0 %587
        %589 = vrot.lane.b32.xlu0 %v575, 120
        %v590 = vpop.permute.xlu0 %589
        %591 = vrot.lane.b32.xlu0 %v576, 120
        %v592 = vpop.permute.xlu0 %591
        %593 = vrot.lane.b32.xlu0 %v577, 120
        %v594 = vpop.permute.xlu0 %593
        %595 = vrot.lane.b32.xlu0 %v578, 120
        %v596 = vpop.permute.xlu0 %595
        %vm597 = vcmask 982016
        %v598 = vsel %vm597, %v580, %v582
        %v599 = vsel %vm597, %v582, %v584
        %v600 = vsel %vm597, %v584, %v586
        %v601 = vsel %vm597, %v586, %v588
        %v602 = vsel %vm597, %v588, %v590
        %v603 = vsel %vm597, %v590, %v592
        %v604 = vsel %vm597, %v592, %v594
        %v605 = vsel %vm597, %v594, %v596
        %v608 = vsel %vm422, %v570, %v598
        %v611 = vsel %vm422, %v571, %v599
        %v614 = vsel %vm422, %v572, %v600
        %v617 = vsel %vm422, %v573, %v601
        %v620 = vsel %vm422, %v574, %v602
        %v623 = vsel %vm422, %v575, %v603
        %v626 = vsel %vm422, %v576, %v604
        %v629 = vsel %vm422, %v577, %v605
        %v632 = vsel %vm422, %v578, %v596
        %v642 = vunpack.c.l.b16 %v608
        %v643 = vunpack.c.l.b16 %v611
        %v644 = vunpack.c.l.b16 %v614
        %v645 = vunpack.c.l.b16 %v617
        %v646 = vunpack.c.l.b16 %v620
        %v647 = vunpack.c.l.b16 %v623
        %v648 = vunpack.c.l.b16 %v626
        %v649 = vunpack.c.l.b16 %v629
        %v650 = vunpack.c.l.b16 %v632
        %v651 = vunpack.c.h.b16 %v608
        %v652 = vunpack.c.h.b16 %v611
        %v653 = vunpack.c.h.b16 %v614
        %v654 = vunpack.c.h.b16 %v617
        %v655 = vunpack.c.h.b16 %v620
        %v656 = vunpack.c.h.b16 %v623
        %v657 = vunpack.c.h.b16 %v626
        %v658 = vunpack.c.h.b16 %v629
        %v659 = vunpack.c.h.b16 %v632
        %v660 = vpack.c.b16 %v643, %v642
        %v661 = vpack.c.b16 %v645, %v644
        %v662 = vpack.c.b16 %v647, %v646
        %v663 = vpack.c.b16 %v649, %v648
        %v664 = vpack.c.b16 %v650, %v650
        %v665 = vpack.c.b16 %v652, %v651
        %v666 = vpack.c.b16 %v654, %v653
        %v667 = vpack.c.b16 %v656, %v655
        %v668 = vpack.c.b16 %v658, %v657
        %v669 = vpack.c.b16 %v659, %v659
        %670 = vrot.lane.b32.xlu0 %v660, 109
        %v671 = vpop.permute.xlu0 %670
        %672 = vrot.lane.b32.xlu0 %v661, 109
        %v673 = vpop.permute.xlu0 %672
        %674 = vrot.lane.b32.xlu0 %v662, 109
        %v675 = vpop.permute.xlu0 %674
        %676 = vrot.lane.b32.xlu0 %v663, 109
        %v677 = vpop.permute.xlu0 %676
        %678 = vrot.lane.b32.xlu0 %v664, 109
        %v679 = vpop.permute.xlu0 %678
        %680 = vrot.lane.b32.xlu0 %v665, 109
        %v681 = vpop.permute.xlu0 %680
        %682 = vrot.lane.b32.xlu0 %v666, 109
        %v683 = vpop.permute.xlu0 %682
        %684 = vrot.lane.b32.xlu0 %v667, 109
        %v685 = vpop.permute.xlu0 %684
        %686 = vrot.lane.b32.xlu0 %v668, 109
        %v687 = vpop.permute.xlu0 %686
        %688 = vrot.lane.b32.xlu0 %v669, 109
        %v689 = vpop.permute.xlu0 %688
        %v690 = vrot.slane %v671, 4
        %v691 = vrot.slane %v673, 4
        %v692 = vrot.slane %v675, 4
        %v693 = vrot.slane %v677, 4
        %v694 = vrot.slane %v679, 4
        %v695 = vrot.slane %v681, 4
        %v696 = vrot.slane %v683, 4
        %v697 = vrot.slane %v685, 4
        %v698 = vrot.slane %v687, 4
        %v699 = vrot.slane %v689, 4
        %v700 = vsel %vm517, %v690, %v691
        %vm701 = vcmask 891904
        %v702 = vsel %vm701, %v671, %v700
        %v703 = vsel %vm517, %v691, %v692
        %v704 = vsel %vm701, %v673, %v703
        %v705 = vsel %vm517, %v692, %v693
        %v706 = vsel %vm701, %v675, %v705
        %v707 = vsel %vm517, %v693, %v694
        %v708 = vsel %vm701, %v677, %v707
        %v709 = vsel %vm517, %v695, %v696
        %v710 = vsel %vm701, %v681, %v709
        %v711 = vsel %vm517, %v696, %v697
        %v712 = vsel %vm701, %v683, %v711
        %v713 = vsel %vm517, %v697, %v698
        %v714 = vsel %vm701, %v685, %v713
        %v715 = vsel %vm517, %v698, %v699
        %v716 = vsel %vm701, %v687, %v715
        %725 = vst [vmem:[#allocation5 + $0x40] sm:$0xff] %v702
        %726 = vst [vmem:[#allocation5 + $0x48] sm:$0xff] %v704
        %727 = vst [vmem:[#allocation5 + $0x50] sm:$0xff] %v706
        %728 = vst [vmem:[#allocation5 + $0x58] sm:$0xff] %v708
        %729 = vst [vmem:[#allocation5 + $0x60] sm:$0xff] %v710
        %730 = vst [vmem:[#allocation5 + $0x68] sm:$0xff] %v712
        %731 = vst [vmem:[#allocation5 + $0x70] sm:$0xff] %v714
        %732 = vst [vmem:[#allocation5 + $0x78] sm:$0xff] %v716
        %v733 = vld [vmem:[#allocation4 + $0x1c] sm:$0xff]
        %v734 = vld [vmem:[#allocation4 + $0x24] sm:$0xff]
        %v735 = vld [vmem:[#allocation4 + $0x2c] sm:$0xff]
        %v736 = vld [vmem:[#allocation4 + $0x34] sm:$0xff]
        %v737 = vld [vmem:[#allocation4 + $0x3c] sm:$0xf]
        %v743 = vunpack.c.l.b16 %v733
        %v744 = vunpack.c.h.b16 %v733
        %v745 = vunpack.c.l.b16 %v734
        %v746 = vunpack.c.h.b16 %v734
        %v747 = vunpack.c.l.b16 %v735
        %v748 = vunpack.c.h.b16 %v735
        %v749 = vunpack.c.l.b16 %v736
        %v750 = vunpack.c.h.b16 %v736
        %v751 = vunpack.c.l.b16 %v737
        %v752 = vpack.c.b16 %v743, %v743
        %v753 = vpack.c.b16 %v744, %v744
        %v754 = vpack.c.b16 %v745, %v745
        %v755 = vpack.c.b16 %v746, %v746
        %v756 = vpack.c.b16 %v747, %v747
        %v757 = vpack.c.b16 %v748, %v748
        %v758 = vpack.c.b16 %v749, %v749
        %v759 = vpack.c.b16 %v750, %v750
        %v760 = vpack.c.b16 %v751, %v751
        %761 = vrot.lane.b32.xlu0 %v752, 127
        %v762 = vpop.permute.xlu0 %761
        %763 = vrot.lane.b32.xlu0 %v753, 127
        %v764 = vpop.permute.xlu0 %763
        %765 = vrot.lane.b32.xlu0 %v754, 127
        %v766 = vpop.permute.xlu0 %765
        %767 = vrot.lane.b32.xlu0 %v755, 127
        %v768 = vpop.permute.xlu0 %767
        %769 = vrot.lane.b32.xlu0 %v756, 127
        %v770 = vpop.permute.xlu0 %769
        %771 = vrot.lane.b32.xlu0 %v757, 127
        %v772 = vpop.permute.xlu0 %771
        %773 = vrot.lane.b32.xlu0 %v758, 127
        %v774 = vpop.permute.xlu0 %773
        %775 = vrot.lane.b32.xlu0 %v759, 127
        %v776 = vpop.permute.xlu0 %775
        %777 = vrot.lane.b32.xlu0 %v760, 127
        %v778 = vpop.permute.xlu0 %777
        %v779 = vsel %vm413, %v762, %v764
        %v780 = vsel %vm413, %v764, %v766
        %v781 = vsel %vm413, %v766, %v768
        %v782 = vsel %vm413, %v768, %v770
        %v783 = vsel %vm413, %v770, %v772
        %v784 = vsel %vm413, %v772, %v774
        %v785 = vsel %vm413, %v774, %v776
        %v786 = vsel %vm413, %v776, %v778
        %v789 = vsel %vm422, %v752, %v779
        %v792 = vsel %vm422, %v753, %v780
        %v795 = vsel %vm422, %v754, %v781
        %v798 = vsel %vm422, %v755, %v782
        %v801 = vsel %vm422, %v756, %v783
        %v804 = vsel %vm422, %v757, %v784
        %v807 = vsel %vm422, %v758, %v785
        %v810 = vsel %vm422, %v759, %v786
        %v813 = vsel %vm422, %v760, %v778
        %v823 = vunpack.c.l.b16 %v789
        %v824 = vunpack.c.l.b16 %v792
        %v825 = vunpack.c.l.b16 %v795
        %v826 = vunpack.c.l.b16 %v798
        %v827 = vunpack.c.l.b16 %v801
        %v828 = vunpack.c.l.b16 %v804
        %v829 = vunpack.c.l.b16 %v807
        %v830 = vunpack.c.l.b16 %v810
        %v831 = vunpack.c.l.b16 %v813
        %v832 = vunpack.c.h.b16 %v789
        %v833 = vunpack.c.h.b16 %v792
        %v834 = vunpack.c.h.b16 %v795
        %v835 = vunpack.c.h.b16 %v798
        %v836 = vunpack.c.h.b16 %v801
        %v837 = vunpack.c.h.b16 %v804
        %v838 = vunpack.c.h.b16 %v807
        %v839 = vunpack.c.h.b16 %v810
        %v840 = vunpack.c.h.b16 %v813
        %v841 = vpack.c.b16 %v824, %v823
        %v842 = vpack.c.b16 %v826, %v825
        %v843 = vpack.c.b16 %v828, %v827
        %v844 = vpack.c.b16 %v830, %v829
        %v845 = vpack.c.b16 %v831, %v831
        %v846 = vpack.c.b16 %v833, %v832
        %v847 = vpack.c.b16 %v835, %v834
        %v848 = vpack.c.b16 %v837, %v836
        %v849 = vpack.c.b16 %v839, %v838
        %v850 = vpack.c.b16 %v840, %v840
        %851 = vrot.lane.b32.xlu0 %v841, 100
        %v852 = vpop.permute.xlu0 %851
        %853 = vrot.lane.b32.xlu0 %v842, 100
        %v854 = vpop.permute.xlu0 %853
        %855 = vrot.lane.b32.xlu0 %v843, 100
        %v856 = vpop.permute.xlu0 %855
        %857 = vrot.lane.b32.xlu0 %v844, 100
        %v858 = vpop.permute.xlu0 %857
        %859 = vrot.lane.b32.xlu0 %v845, 100
        %v860 = vpop.permute.xlu0 %859
        %861 = vrot.lane.b32.xlu0 %v846, 100
        %v862 = vpop.permute.xlu0 %861
        %863 = vrot.lane.b32.xlu0 %v847, 100
        %v864 = vpop.permute.xlu0 %863
        %865 = vrot.lane.b32.xlu0 %v848, 100
        %v866 = vpop.permute.xlu0 %865
        %867 = vrot.lane.b32.xlu0 %v849, 100
        %v868 = vpop.permute.xlu0 %867
        %869 = vrot.lane.b32.xlu0 %v850, 100
        %v870 = vpop.permute.xlu0 %869
        %v871 = vrot.slane %v852, 4
        %v872 = vrot.slane %v854, 4
        %v873 = vrot.slane %v856, 4
        %v874 = vrot.slane %v858, 4
        %v875 = vrot.slane %v860, 4
        %v876 = vrot.slane %v862, 4
        %v877 = vrot.slane %v864, 4
        %v878 = vrot.slane %v866, 4
        %v879 = vrot.slane %v868, 4
        %v880 = vrot.slane %v870, 4
        %v881 = vsel %vm517, %v871, %v872
        %vm882 = vcmask 818176
        %v883 = vsel %vm882, %v852, %v881
        %v884 = vsel %vm517, %v872, %v873
        %v885 = vsel %vm882, %v854, %v884
        %v886 = vsel %vm517, %v873, %v874
        %v887 = vsel %vm882, %v856, %v886
        %v888 = vsel %vm517, %v874, %v875
        %v889 = vsel %vm882, %v858, %v888
        %v890 = vsel %vm517, %v876, %v877
        %v891 = vsel %vm882, %v862, %v890
        %v892 = vsel %vm517, %v877, %v878
        %v893 = vsel %vm882, %v864, %v892
        %v894 = vsel %vm517, %v878, %v879
        %v895 = vsel %vm882, %v866, %v894
        %v896 = vsel %vm517, %v879, %v880
        %v897 = vsel %vm882, %v868, %v896
        %906 = vst [vmem:[#allocation5 + $0x80] sm:$0xff] %v883
        %907 = vst [vmem:[#allocation5 + $0x88] sm:$0xff] %v885
        %908 = vst [vmem:[#allocation5 + $0x90] sm:$0xff] %v887
        %909 = vst [vmem:[#allocation5 + $0x98] sm:$0xff] %v889
        %910 = vst [vmem:[#allocation5 + $0xa0] sm:$0xff] %v891
        %911 = vst [vmem:[#allocation5 + $0xa8] sm:$0xff] %v893
        %912 = vst [vmem:[#allocation5 + $0xb0] sm:$0xff] %v895
        %913 = vst [vmem:[#allocation5 + $0xb8] sm:$0xff] %v897
        %v914 = vld [vmem:[#allocation4 + $0x1c] sm:$0xff]
        %v915 = vld [vmem:[#allocation4 + $0x24] sm:$0xff]
        %v916 = vld [vmem:[#allocation4 + $0x2c] sm:$0xff]
        %v917 = vld [vmem:[#allocation4 + $0x34] sm:$0xff]
        %v918 = vld [vmem:[#allocation4 + $0x3c] sm:$0xf]
        %v924 = vunpack.c.l.b16 %v914
        %v925 = vunpack.c.h.b16 %v914
        %v926 = vunpack.c.l.b16 %v915
        %v927 = vunpack.c.h.b16 %v915
        %v928 = vunpack.c.l.b16 %v916
        %v929 = vunpack.c.h.b16 %v916
        %v930 = vunpack.c.l.b16 %v917
        %v931 = vunpack.c.h.b16 %v917
        %v932 = vunpack.c.l.b16 %v918
        %v933 = vpack.c.b16 %v924, %v924
        %v934 = vpack.c.b16 %v925, %v925
        %v935 = vpack.c.b16 %v926, %v926
        %v936 = vpack.c.b16 %v927, %v927
        %v937 = vpack.c.b16 %v928, %v928
        %v938 = vpack.c.b16 %v929, %v929
        %v939 = vpack.c.b16 %v930, %v930
        %v940 = vpack.c.b16 %v931, %v931
        %v941 = vpack.c.b16 %v932, %v932
        %942 = vrot.lane.b32.xlu0 %v933, 127
        %v943 = vpop.permute.xlu0 %942
        %944 = vrot.lane.b32.xlu0 %v934, 127
        %v945 = vpop.permute.xlu0 %944
        %946 = vrot.lane.b32.xlu0 %v935, 127
        %v947 = vpop.permute.xlu0 %946
        %948 = vrot.lane.b32.xlu0 %v936, 127
        %v949 = vpop.permute.xlu0 %948
        %950 = vrot.lane.b32.xlu0 %v937, 127
        %v951 = vpop.permute.xlu0 %950
        %952 = vrot.lane.b32.xlu0 %v938, 127
        %v953 = vpop.permute.xlu0 %952
        %954 = vrot.lane.b32.xlu0 %v939, 127
        %v955 = vpop.permute.xlu0 %954
        %956 = vrot.lane.b32.xlu0 %v940, 127
        %v957 = vpop.permute.xlu0 %956
        %958 = vrot.lane.b32.xlu0 %v941, 127
        %v959 = vpop.permute.xlu0 %958
        %v960 = vsel %vm413, %v943, %v945
        %v961 = vsel %vm413, %v945, %v947
        %v962 = vsel %vm413, %v947, %v949
        %v963 = vsel %vm413, %v949, %v951
        %v964 = vsel %vm413, %v951, %v953
        %v965 = vsel %vm413, %v953, %v955
        %v966 = vsel %vm413, %v955, %v957
        %v967 = vsel %vm413, %v957, %v959
        %v970 = vsel %vm422, %v933, %v960
        %v973 = vsel %vm422, %v934, %v961
        %v976 = vsel %vm422, %v935, %v962
        %v979 = vsel %vm422, %v936, %v963
        %v982 = vsel %vm422, %v937, %v964
        %v985 = vsel %vm422, %v938, %v965
        %v988 = vsel %vm422, %v939, %v966
        %v991 = vsel %vm422, %v940, %v967
        %v994 = vsel %vm422, %v941, %v959
        %v1004 = vunpack.c.l.b16 %v970
        %v1005 = vunpack.c.l.b16 %v973
        %v1006 = vunpack.c.l.b16 %v976
        %v1007 = vunpack.c.l.b16 %v979
        %v1008 = vunpack.c.l.b16 %v982
        %v1009 = vunpack.c.l.b16 %v985
        %v1010 = vunpack.c.l.b16 %v988
        %v1011 = vunpack.c.l.b16 %v991
        %v1012 = vunpack.c.l.b16 %v994
        %v1013 = vunpack.c.h.b16 %v970
        %v1014 = vunpack.c.h.b16 %v973
        %v1015 = vunpack.c.h.b16 %v976
        %v1016 = vunpack.c.h.b16 %v979
        %v1017 = vunpack.c.h.b16 %v982
        %v1018 = vunpack.c.h.b16 %v985
        %v1019 = vunpack.c.h.b16 %v988
        %v1020 = vunpack.c.h.b16 %v991
        %v1021 = vunpack.c.h.b16 %v994
        %v1022 = vpack.c.b16 %v1005, %v1004
        %v1023 = vpack.c.b16 %v1007, %v1006
        %v1024 = vpack.c.b16 %v1009, %v1008
        %v1025 = vpack.c.b16 %v1011, %v1010
        %v1026 = vpack.c.b16 %v1012, %v1012
        %v1027 = vpack.c.b16 %v1014, %v1013
        %v1028 = vpack.c.b16 %v1016, %v1015
        %v1029 = vpack.c.b16 %v1018, %v1017
        %v1030 = vpack.c.b16 %v1020, %v1019
        %v1031 = vpack.c.b16 %v1021, %v1021
        %1032 = vrot.lane.b32.xlu0 %v1022, 91
        %v1033 = vpop.permute.xlu0 %1032
        %1034 = vrot.lane.b32.xlu0 %v1023, 91
        %v1035 = vpop.permute.xlu0 %1034
        %1036 = vrot.lane.b32.xlu0 %v1024, 91
        %v1037 = vpop.permute.xlu0 %1036
        %1038 = vrot.lane.b32.xlu0 %v1025, 91
        %v1039 = vpop.permute.xlu0 %1038
        %1040 = vrot.lane.b32.xlu0 %v1026, 91
        %v1041 = vpop.permute.xlu0 %1040
        %1042 = vrot.lane.b32.xlu0 %v1027, 91
        %v1043 = vpop.permute.xlu0 %1042
        %1044 = vrot.lane.b32.xlu0 %v1028, 91
        %v1045 = vpop.permute.xlu0 %1044
        %1046 = vrot.lane.b32.xlu0 %v1029, 91
        %v1047 = vpop.permute.xlu0 %1046
        %1048 = vrot.lane.b32.xlu0 %v1030, 91
        %v1049 = vpop.permute.xlu0 %1048
        %1050 = vrot.lane.b32.xlu0 %v1031, 91
        %v1051 = vpop.permute.xlu0 %1050
        %v1052 = vrot.slane %v1033, 4
        %v1053 = vrot.slane %v1035, 4
        %v1054 = vrot.slane %v1037, 4
        %v1055 = vrot.slane %v1039, 4
        %v1056 = vrot.slane %v1041, 4
        %v1057 = vrot.slane %v1043, 4
        %v1058 = vrot.slane %v1045, 4
        %v1059 = vrot.slane %v1047, 4
        %v1060 = vrot.slane %v1049, 4
        %v1061 = vrot.slane %v1051, 4
        %v1062 = vsel %vm517, %v1052, %v1053
        %vm1063 = vcmask 744448
        %v1064 = vsel %vm1063, %v1033, %v1062
        %v1065 = vsel %vm517, %v1053, %v1054
        %v1066 = vsel %vm1063, %v1035, %v1065
        %v1067 = vsel %vm517, %v1054, %v1055
        %v1068 = vsel %vm1063, %v1037, %v1067
        %v1069 = vsel %vm517, %v1055, %v1056
        %v1070 = vsel %vm1063, %v1039, %v1069
        %v1071 = vsel %vm517, %v1057, %v1058
        %v1072 = vsel %vm1063, %v1043, %v1071
        %v1073 = vsel %vm517, %v1058, %v1059
        %v1074 = vsel %vm1063, %v1045, %v1073
        %v1075 = vsel %vm517, %v1059, %v1060
        %v1076 = vsel %vm1063, %v1047, %v1075
        %v1077 = vsel %vm517, %v1060, %v1061
        %v1078 = vsel %vm1063, %v1049, %v1077
        %1087 = vst [vmem:[#allocation5 + $0xc0] sm:$0xff] %v1064
        %1088 = vst [vmem:[#allocation5 + $0xc8] sm:$0xff] %v1066
        %1089 = vst [vmem:[#allocation5 + $0xd0] sm:$0xff] %v1068
        %1090 = vst [vmem:[#allocation5 + $0xd8] sm:$0xff] %v1070
        %1091 = vst [vmem:[#allocation5 + $0xe0] sm:$0xff] %v1072
        %1092 = vst [vmem:[#allocation5 + $0xe8] sm:$0xff] %v1074
        %1093 = vst [vmem:[#allocation5 + $0xf0] sm:$0xff] %v1076
        %1094 = vst [vmem:[#allocation5 + $0xf8] sm:$0xff] %v1078
        %v1095 = vld [vmem:[#allocation4 + $0x1c] sm:$0xff]
        %v1096 = vld [vmem:[#allocation4 + $0x24] sm:$0xff]
        %v1097 = vld [vmem:[#allocation4 + $0x2c] sm:$0xff]
        %v1098 = vld [vmem:[#allocation4 + $0x34] sm:$0xff]
        %v1099 = vld [vmem:[#allocation4 + $0x3c] sm:$0xf]
        %v1105 = vunpack.c.l.b16 %v1095
        %v1106 = vunpack.c.h.b16 %v1095
        %v1107 = vunpack.c.l.b16 %v1096
        %v1108 = vunpack.c.h.b16 %v1096
        %v1109 = vunpack.c.l.b16 %v1097
        %v1110 = vunpack.c.h.b16 %v1097
        %v1111 = vunpack.c.l.b16 %v1098
        %v1112 = vunpack.c.h.b16 %v1098
        %v1113 = vunpack.c.l.b16 %v1099
        %v1114 = vpack.c.b16 %v1105, %v1105
        %v1115 = vpack.c.b16 %v1106, %v1106
        %v1116 = vpack.c.b16 %v1107, %v1107
        %v1117 = vpack.c.b16 %v1108, %v1108
        %v1118 = vpack.c.b16 %v1109, %v1109
        %v1119 = vpack.c.b16 %v1110, %v1110
        %v1120 = vpack.c.b16 %v1111, %v1111
        %v1121 = vpack.c.b16 %v1112, %v1112
        %v1122 = vpack.c.b16 %v1113, %v1113
        %1123 = vrot.lane.b32.xlu0 %v1114, 50
        %v1124 = vpop.permute.xlu0 %1123
        %1125 = vrot.lane.b32.xlu0 %v1115, 50
        %v1126 = vpop.permute.xlu0 %1125
        %1127 = vrot.lane.b32.xlu0 %v1116, 50
        %v1128 = vpop.permute.xlu0 %1127
        %1129 = vrot.lane.b32.xlu0 %v1117, 50
        %v1130 = vpop.permute.xlu0 %1129
        %1131 = vrot.lane.b32.xlu0 %v1118, 50
        %v1132 = vpop.permute.xlu0 %1131
        %1133 = vrot.lane.b32.xlu0 %v1119, 50
        %v1134 = vpop.permute.xlu0 %1133
        %1135 = vrot.lane.b32.xlu0 %v1120, 50
        %v1136 = vpop.permute.xlu0 %1135
        %1137 = vrot.lane.b32.xlu0 %v1121, 50
        %v1138 = vpop.permute.xlu0 %1137
        %1139 = vrot.lane.b32.xlu0 %v1122, 50
        %v1140 = vpop.permute.xlu0 %1139
        %vm1141 = vcmask 408576
        %v1142 = vsel %vm1141, %v1124, %v1126
        %v1143 = vsel %vm1141, %v1126, %v1128
        %v1144 = vsel %vm1141, %v1128, %v1130
        %v1145 = vsel %vm1141, %v1130, %v1132
        %v1146 = vsel %vm1141, %v1132, %v1134
        %v1147 = vsel %vm1141, %v1134, %v1136
        %v1148 = vsel %vm1141, %v1136, %v1138
        %v1149 = vsel %vm1141, %v1138, %v1140
        %v1152 = vsel %vm422, %v1114, %v1142
        %v1155 = vsel %vm422, %v1115, %v1143
        %v1158 = vsel %vm422, %v1116, %v1144
        %v1161 = vsel %vm422, %v1117, %v1145
        %v1164 = vsel %vm422, %v1118, %v1146
        %v1167 = vsel %vm422, %v1119, %v1147
        %v1170 = vsel %vm422, %v1120, %v1148
        %v1173 = vsel %vm422, %v1121, %v1149
        %v1176 = vsel %vm422, %v1122, %v1140
        %v1186 = vunpack.c.l.b16 %v1152
        %v1187 = vunpack.c.l.b16 %v1155
        %v1188 = vunpack.c.l.b16 %v1158
        %v1189 = vunpack.c.l.b16 %v1161
        %v1190 = vunpack.c.l.b16 %v1164
        %v1191 = vunpack.c.l.b16 %v1167
        %v1192 = vunpack.c.l.b16 %v1170
        %v1193 = vunpack.c.l.b16 %v1173
        %v1194 = vunpack.c.l.b16 %v1176
        %v1195 = vunpack.c.h.b16 %v1152
        %v1196 = vunpack.c.h.b16 %v1155
        %v1197 = vunpack.c.h.b16 %v1158
        %v1198 = vunpack.c.h.b16 %v1161
        %v1199 = vunpack.c.h.b16 %v1164
        %v1200 = vunpack.c.h.b16 %v1167
        %v1201 = vunpack.c.h.b16 %v1170
        %v1202 = vunpack.c.h.b16 %v1173
        %v1203 = vunpack.c.h.b16 %v1176
        %v1204 = vpack.c.b16 %v1187, %v1186
        %v1205 = vpack.c.b16 %v1189, %v1188
        %v1206 = vpack.c.b16 %v1191, %v1190
        %v1207 = vpack.c.b16 %v1193, %v1192
        %v1208 = vpack.c.b16 %v1194, %v1194
        %v1209 = vpack.c.b16 %v1196, %v1195
        %v1210 = vpack.c.b16 %v1198, %v1197
        %v1211 = vpack.c.b16 %v1200, %v1199
        %v1212 = vpack.c.b16 %v1202, %v1201
        %v1213 = vpack.c.b16 %v1203, %v1203
        %1214 = vrot.lane.b32.xlu0 %v1204, 89
        %v1215 = vpop.permute.xlu0 %1214
        %1216 = vrot.lane.b32.xlu0 %v1205, 89
        %v1217 = vpop.permute.xlu0 %1216
        %1218 = vrot.lane.b32.xlu0 %v1206, 89
        %v1219 = vpop.permute.xlu0 %1218
        %1220 = vrot.lane.b32.xlu0 %v1207, 89
        %v1221 = vpop.permute.xlu0 %1220
        %1222 = vrot.lane.b32.xlu0 %v1208, 89
        %v1223 = vpop.permute.xlu0 %1222
        %1224 = vrot.lane.b32.xlu0 %v1209, 89
        %v1225 = vpop.permute.xlu0 %1224
        %1226 = vrot.lane.b32.xlu0 %v1210, 89
        %v1227 = vpop.permute.xlu0 %1226
        %1228 = vrot.lane.b32.xlu0 %v1211, 89
        %v1229 = vpop.permute.xlu0 %1228
        %1230 = vrot.lane.b32.xlu0 %v1212, 89
        %v1231 = vpop.permute.xlu0 %1230
        %1232 = vrot.lane.b32.xlu0 %v1213, 89
        %v1233 = vpop.permute.xlu0 %1232
        %v1234 = vrot.slane %v1215, 4
        %v1235 = vrot.slane %v1217, 4
        %v1236 = vrot.slane %v1219, 4
        %v1237 = vrot.slane %v1221, 4
        %v1238 = vrot.slane %v1223, 4
        %v1239 = vrot.slane %v1225, 4
        %v1240 = vrot.slane %v1227, 4
        %v1241 = vrot.slane %v1229, 4
        %v1242 = vrot.slane %v1231, 4
        %v1243 = vrot.slane %v1233, 4
        %v1244 = vsel %vm517, %v1234, %v1235
        %vm1245 = vcmask 728064
        %v1246 = vsel %vm1245, %v1215, %v1244
        %v1247 = vsel %vm517, %v1235, %v1236
        %v1248 = vsel %vm1245, %v1217, %v1247
        %v1249 = vsel %vm517, %v1236, %v1237
        %v1250 = vsel %vm1245, %v1219, %v1249
        %v1251 = vsel %vm517, %v1237, %v1238
        %v1252 = vsel %vm1245, %v1221, %v1251
        %v1253 = vsel %vm517, %v1239, %v1240
        %v1254 = vsel %vm1245, %v1225, %v1253
        %v1255 = vsel %vm517, %v1240, %v1241
        %v1256 = vsel %vm1245, %v1227, %v1255
        %v1257 = vsel %vm517, %v1241, %v1242
        %v1258 = vsel %vm1245, %v1229, %v1257
        %v1259 = vsel %vm517, %v1242, %v1243
        %v1260 = vsel %vm1245, %v1231, %v1259
        %1269 = vst [vmem:[#allocation5 + $0x100] sm:$0xff] %v1246
        %1270 = vst [vmem:[#allocation5 + $0x108] sm:$0xff] %v1248
        %1271 = vst [vmem:[#allocation5 + $0x110] sm:$0xff] %v1250
        %1272 = vst [vmem:[#allocation5 + $0x118] sm:$0xff] %v1252
        %1273 = vst [vmem:[#allocation5 + $0x120] sm:$0xff] %v1254
        %1274 = vst [vmem:[#allocation5 + $0x128] sm:$0xff] %v1256
        %1275 = vst [vmem:[#allocation5 + $0x130] sm:$0xff] %v1258
        %1276 = vst [vmem:[#allocation5 + $0x138] sm:$0xff] %v1260
        %v1277 = vld [vmem:[#allocation4 + $0x1c] sm:$0xff]
        %v1278 = vld [vmem:[#allocation4 + $0x24] sm:$0xff]
        %v1279 = vld [vmem:[#allocation4 + $0x2c] sm:$0xff]
        %v1280 = vld [vmem:[#allocation4 + $0x34] sm:$0xff]
        %v1281 = vld [vmem:[#allocation4 + $0x3c] sm:$0xf]
        %v1287 = vunpack.c.l.b16 %v1277
        %v1288 = vunpack.c.h.b16 %v1277
        %v1289 = vunpack.c.l.b16 %v1278
        %v1290 = vunpack.c.h.b16 %v1278
        %v1291 = vunpack.c.l.b16 %v1279
        %v1292 = vunpack.c.h.b16 %v1279
        %v1293 = vunpack.c.l.b16 %v1280
        %v1294 = vunpack.c.h.b16 %v1280
        %v1295 = vunpack.c.l.b16 %v1281
        %v1296 = vpack.c.b16 %v1287, %v1287
        %v1297 = vpack.c.b16 %v1288, %v1288
        %v1298 = vpack.c.b16 %v1289, %v1289
        %v1299 = vpack.c.b16 %v1290, %v1290
        %v1300 = vpack.c.b16 %v1291, %v1291
        %v1301 = vpack.c.b16 %v1292, %v1292
        %v1302 = vpack.c.b16 %v1293, %v1293
        %v1303 = vpack.c.b16 %v1294, %v1294
        %v1304 = vpack.c.b16 %v1295, %v1295
        %1305 = vrot.lane.b32.xlu0 %v1296, 127
        %v1306 = vpop.permute.xlu0 %1305
        %1307 = vrot.lane.b32.xlu0 %v1297, 127
        %v1308 = vpop.permute.xlu0 %1307
        %1309 = vrot.lane.b32.xlu0 %v1298, 127
        %v1310 = vpop.permute.xlu0 %1309
        %1311 = vrot.lane.b32.xlu0 %v1299, 127
        %v1312 = vpop.permute.xlu0 %1311
        %1313 = vrot.lane.b32.xlu0 %v1300, 127
        %v1314 = vpop.permute.xlu0 %1313
        %1315 = vrot.lane.b32.xlu0 %v1301, 127
        %v1316 = vpop.permute.xlu0 %1315
        %1317 = vrot.lane.b32.xlu0 %v1302, 127
        %v1318 = vpop.permute.xlu0 %1317
        %1319 = vrot.lane.b32.xlu0 %v1303, 127
        %v1320 = vpop.permute.xlu0 %1319
        %1321 = vrot.lane.b32.xlu0 %v1304, 127
        %v1322 = vpop.permute.xlu0 %1321
        %v1323 = vsel %vm413, %v1306, %v1308
        %v1324 = vsel %vm413, %v1308, %v1310
        %v1325 = vsel %vm413, %v1310, %v1312
        %v1326 = vsel %vm413, %v1312, %v1314
        %v1327 = vsel %vm413, %v1314, %v1316
        %v1328 = vsel %vm413, %v1316, %v1318
        %v1329 = vsel %vm413, %v1318, %v1320
        %v1330 = vsel %vm413, %v1320, %v1322
        %v1333 = vsel %vm422, %v1296, %v1323
        %v1336 = vsel %vm422, %v1297, %v1324
        %v1339 = vsel %vm422, %v1298, %v1325
        %v1342 = vsel %vm422, %v1299, %v1326
        %v1345 = vsel %vm422, %v1300, %v1327
        %v1348 = vsel %vm422, %v1301, %v1328
        %v1351 = vsel %vm422, %v1302, %v1329
        %v1354 = vsel %vm422, %v1303, %v1330
        %v1357 = vsel %vm422, %v1304, %v1322
        %v1367 = vunpack.c.l.b16 %v1333
        %v1368 = vunpack.c.l.b16 %v1336
        %v1369 = vunpack.c.l.b16 %v1339
        %v1370 = vunpack.c.l.b16 %v1342
        %v1371 = vunpack.c.l.b16 %v1345
        %v1372 = vunpack.c.l.b16 %v1348
        %v1373 = vunpack.c.l.b16 %v1351
        %v1374 = vunpack.c.l.b16 %v1354
        %v1375 = vunpack.c.l.b16 %v1357
        %v1376 = vunpack.c.h.b16 %v1333
        %v1377 = vunpack.c.h.b16 %v1336
        %v1378 = vunpack.c.h.b16 %v1339
        %v1379 = vunpack.c.h.b16 %v1342
        %v1380 = vunpack.c.h.b16 %v1345
        %v1381 = vunpack.c.h.b16 %v1348
        %v1382 = vunpack.c.h.b16 %v1351
        %v1383 = vunpack.c.h.b16 %v1354
        %v1384 = vunpack.c.h.b16 %v1357
        %v1385 = vpack.c.b16 %v1368, %v1367
        %v1386 = vpack.c.b16 %v1370, %v1369
        %v1387 = vpack.c.b16 %v1372, %v1371
        %v1388 = vpack.c.b16 %v1374, %v1373
        %v1389 = vpack.c.b16 %v1375, %v1375
        %v1390 = vpack.c.b16 %v1377, %v1376
        %v1391 = vpack.c.b16 %v1379, %v1378
        %v1392 = vpack.c.b16 %v1381, %v1380
        %v1393 = vpack.c.b16 %v1383, %v1382
        %v1394 = vpack.c.b16 %v1384, %v1384
        %1395 = vrot.lane.b32.xlu0 %v1385, 10
        %v1396 = vpop.permute.xlu0 %1395
        %1397 = vrot.lane.b32.xlu0 %v1386, 10
        %v1398 = vpop.permute.xlu0 %1397
        %1399 = vrot.lane.b32.xlu0 %v1387, 10
        %v1400 = vpop.permute.xlu0 %1399
        %1401 = vrot.lane.b32.xlu0 %v1388, 10
        %v1402 = vpop.permute.xlu0 %1401
        %1403 = vrot.lane.b32.xlu0 %v1389, 10
        %v1404 = vpop.permute.xlu0 %1403
        %1405 = vrot.lane.b32.xlu0 %v1390, 10
        %v1406 = vpop.permute.xlu0 %1405
        %1407 = vrot.lane.b32.xlu0 %v1391, 10
        %v1408 = vpop.permute.xlu0 %1407
        %1409 = vrot.lane.b32.xlu0 %v1392, 10
        %v1410 = vpop.permute.xlu0 %1409
        %1411 = vrot.lane.b32.xlu0 %v1393, 10
        %v1412 = vpop.permute.xlu0 %1411
        %1413 = vrot.lane.b32.xlu0 %v1394, 10
        %v1414 = vpop.permute.xlu0 %1413
        %v1415 = vrot.slane %v1396, 4
        %v1416 = vrot.slane %v1398, 4
        %v1417 = vrot.slane %v1400, 4
        %v1418 = vrot.slane %v1402, 4
        %v1419 = vrot.slane %v1404, 4
        %v1420 = vrot.slane %v1406, 4
        %v1421 = vrot.slane %v1408, 4
        %v1422 = vrot.slane %v1410, 4
        %v1423 = vrot.slane %v1412, 4
        %v1424 = vrot.slane %v1414, 4
        %v1425 = vsel %vm517, %v1415, %v1416
        %vm1426 = vcmask 80896
        %v1427 = vsel %vm1426, %v1396, %v1425
        %v1428 = vsel %vm517, %v1416, %v1417
        %v1429 = vsel %vm1426, %v1398, %v1428
        %v1430 = vsel %vm517, %v1417, %v1418
        %v1431 = vsel %vm1426, %v1400, %v1430
        %v1432 = vsel %vm517, %v1418, %v1419
        %v1433 = vsel %vm1426, %v1402, %v1432
        %v1434 = vsel %vm517, %v1420, %v1421
        %v1435 = vsel %vm1426, %v1406, %v1434
        %v1436 = vsel %vm517, %v1421, %v1422
        %v1437 = vsel %vm1426, %v1408, %v1436
        %v1438 = vsel %vm517, %v1422, %v1423
        %v1439 = vsel %vm1426, %v1410, %v1438
        %v1440 = vsel %vm517, %v1423, %v1424
        %v1441 = vsel %vm1426, %v1412, %v1440
        %1450 = vst [vmem:[#allocation5 + $0x140] sm:$0xff] %v1427
        %1451 = vst [vmem:[#allocation5 + $0x148] sm:$0xff] %v1429
        %1452 = vst [vmem:[#allocation5 + $0x150] sm:$0xff] %v1431
        %1453 = vst [vmem:[#allocation5 + $0x158] sm:$0xff] %v1433
        %1454 = vst [vmem:[#allocation5 + $0x160] sm:$0xff] %v1435
        %1455 = vst [vmem:[#allocation5 + $0x168] sm:$0xff] %v1437
        %1456 = vst [vmem:[#allocation5 + $0x170] sm:$0xff] %v1439
        %1457 = vst [vmem:[#allocation5 + $0x178] sm:$0xff] %v1441
        %v1458 = vld [vmem:[#allocation4 + $0x1c] sm:$0xff]
        %v1459 = vld [vmem:[#allocation4 + $0x24] sm:$0xff]
        %v1460 = vld [vmem:[#allocation4 + $0x2c] sm:$0xff]
        %v1461 = vld [vmem:[#allocation4 + $0x34] sm:$0xff]
        %v1462 = vld [vmem:[#allocation4 + $0x3c] sm:$0xf]
        %v1463 = vld [vmem:[#allocation4] sm:$0xff]
        %v1464 = vld [vmem:[#allocation4 + $0x8] sm:$0xff]
        %v1465 = vld [vmem:[#allocation4 + $0x10] sm:$0xff]
        %v1466 = vld [vmem:[#allocation4 + $0x18] sm:$0xff]
        %v1472 = vunpack.c.l.b16 %v1458
        %v1473 = vunpack.c.h.b16 %v1458
        %v1474 = vunpack.c.l.b16 %v1459
        %v1475 = vunpack.c.h.b16 %v1459
        %v1476 = vunpack.c.l.b16 %v1460
        %v1477 = vunpack.c.h.b16 %v1460
        %v1478 = vunpack.c.l.b16 %v1461
        %v1479 = vunpack.c.h.b16 %v1461
        %v1480 = vunpack.c.l.b16 %v1462
        %v1481 = vpack.c.b16 %v1472, %v1472
        %v1482 = vpack.c.b16 %v1473, %v1473
        %v1483 = vpack.c.b16 %v1474, %v1474
        %v1484 = vpack.c.b16 %v1475, %v1475
        %v1485 = vpack.c.b16 %v1476, %v1476
        %v1486 = vpack.c.b16 %v1477, %v1477
        %v1487 = vpack.c.b16 %v1478, %v1478
        %v1488 = vpack.c.b16 %v1479, %v1479
        %v1489 = vpack.c.b16 %v1480, %v1480
        %v1494 = vunpack.c.l.b16 %v1463
        %v1495 = vunpack.c.h.b16 %v1463
        %v1496 = vunpack.c.l.b16 %v1464
        %v1497 = vunpack.c.h.b16 %v1464
        %v1498 = vunpack.c.l.b16 %v1465
        %v1499 = vunpack.c.h.b16 %v1465
        %v1500 = vunpack.c.l.b16 %v1466
        %v1501 = vunpack.c.h.b16 %v1466
        %v1502 = vpack.c.b16 %v1494, %v1494
        %v1503 = vpack.c.b16 %v1495, %v1495
        %v1504 = vpack.c.b16 %v1496, %v1496
        %v1505 = vpack.c.b16 %v1497, %v1497
        %v1506 = vpack.c.b16 %v1498, %v1498
        %v1507 = vpack.c.b16 %v1499, %v1499
        %v1508 = vpack.c.b16 %v1500, %v1500
        %v1509 = vpack.c.b16 %v1501, %v1501
        %1510 = vrot.lane.b32.xlu0 %v1502, 127
        %v1511 = vpop.permute.xlu0 %1510
        %1512 = vrot.lane.b32.xlu0 %v1503, 127
        %v1513 = vpop.permute.xlu0 %1512
        %1514 = vrot.lane.b32.xlu0 %v1504, 127
        %v1515 = vpop.permute.xlu0 %1514
        %1516 = vrot.lane.b32.xlu0 %v1505, 127
        %v1517 = vpop.permute.xlu0 %1516
        %1518 = vrot.lane.b32.xlu0 %v1506, 127
        %v1519 = vpop.permute.xlu0 %1518
        %1520 = vrot.lane.b32.xlu0 %v1507, 127
        %v1521 = vpop.permute.xlu0 %1520
        %1522 = vrot.lane.b32.xlu0 %v1508, 127
        %v1523 = vpop.permute.xlu0 %1522
        %1524 = vrot.lane.b32.xlu0 %v1509, 127
        %v1525 = vpop.permute.xlu0 %1524
        %v1526 = vsel %vm413, %v1511, %v1513
        %v1527 = vsel %vm413, %v1513, %v1515
        %v1528 = vsel %vm413, %v1515, %v1517
        %v1529 = vsel %vm413, %v1517, %v1519
        %v1530 = vsel %vm413, %v1519, %v1521
        %v1531 = vsel %vm413, %v1521, %v1523
        %v1532 = vsel %vm413, %v1523, %v1525
        %v1535 = vsel %vm422, %v1481, %v1511
        %v1538 = vsel %vm422, %v1482, %v1526
        %v1541 = vsel %vm422, %v1483, %v1527
        %v1544 = vsel %vm422, %v1484, %v1528
        %v1547 = vsel %vm422, %v1485, %v1529
        %v1550 = vsel %vm422, %v1486, %v1530
        %v1553 = vsel %vm422, %v1487, %v1531
        %v1556 = vsel %vm422, %v1488, %v1532
        %v1559 = vsel %vm422, %v1489, %v1525
        %v1569 = vunpack.c.l.b16 %v1535
        %v1570 = vunpack.c.l.b16 %v1538
        %v1571 = vunpack.c.l.b16 %v1541
        %v1572 = vunpack.c.l.b16 %v1544
        %v1573 = vunpack.c.l.b16 %v1547
        %v1574 = vunpack.c.l.b16 %v1550
        %v1575 = vunpack.c.l.b16 %v1553
        %v1576 = vunpack.c.l.b16 %v1556
        %v1577 = vunpack.c.l.b16 %v1559
        %v1578 = vunpack.c.h.b16 %v1535
        %v1579 = vunpack.c.h.b16 %v1538
        %v1580 = vunpack.c.h.b16 %v1541
        %v1581 = vunpack.c.h.b16 %v1544
        %v1582 = vunpack.c.h.b16 %v1547
        %v1583 = vunpack.c.h.b16 %v1550
        %v1584 = vunpack.c.h.b16 %v1553
        %v1585 = vunpack.c.h.b16 %v1556
        %v1586 = vunpack.c.h.b16 %v1559
        %v1587 = vpack.c.b16 %v1570, %v1569
        %v1588 = vpack.c.b16 %v1572, %v1571
        %v1589 = vpack.c.b16 %v1574, %v1573
        %v1590 = vpack.c.b16 %v1576, %v1575
        %v1591 = vpack.c.b16 %v1577, %v1577
        %v1592 = vpack.c.b16 %v1579, %v1578
        %v1593 = vpack.c.b16 %v1581, %v1580
        %v1594 = vpack.c.b16 %v1583, %v1582
        %v1595 = vpack.c.b16 %v1585, %v1584
        %v1596 = vpack.c.b16 %v1586, %v1586
        %1597 = vrot.lane.b32.xlu0 %v1587, 1
        %v1598 = vpop.permute.xlu0 %1597
        %1599 = vrot.lane.b32.xlu0 %v1588, 1
        %v1600 = vpop.permute.xlu0 %1599
        %1601 = vrot.lane.b32.xlu0 %v1589, 1
        %v1602 = vpop.permute.xlu0 %1601
        %1603 = vrot.lane.b32.xlu0 %v1590, 1
        %v1604 = vpop.permute.xlu0 %1603
        %1605 = vrot.lane.b32.xlu0 %v1591, 1
        %v1606 = vpop.permute.xlu0 %1605
        %1607 = vrot.lane.b32.xlu0 %v1592, 1
        %v1608 = vpop.permute.xlu0 %1607
        %1609 = vrot.lane.b32.xlu0 %v1593, 1
        %v1610 = vpop.permute.xlu0 %1609
        %1611 = vrot.lane.b32.xlu0 %v1594, 1
        %v1612 = vpop.permute.xlu0 %1611
        %1613 = vrot.lane.b32.xlu0 %v1595, 1
        %v1614 = vpop.permute.xlu0 %1613
        %1615 = vrot.lane.b32.xlu0 %v1596, 1
        %v1616 = vpop.permute.xlu0 %1615
        %v1617 = vrot.slane %v1598, 4
        %v1618 = vrot.slane %v1600, 4
        %v1619 = vrot.slane %v1602, 4
        %v1620 = vrot.slane %v1604, 4
        %v1621 = vrot.slane %v1606, 4
        %v1622 = vrot.slane %v1608, 4
        %v1623 = vrot.slane %v1610, 4
        %v1624 = vrot.slane %v1612, 4
        %v1625 = vrot.slane %v1614, 4
        %v1626 = vrot.slane %v1616, 4
        %v1627 = vsel %vm517, %v1617, %v1618
        %vm1628 = vcmask 7168
        %v1629 = vsel %vm1628, %v1598, %v1627
        %v1630 = vsel %vm517, %v1618, %v1619
        %v1631 = vsel %vm1628, %v1600, %v1630
        %v1632 = vsel %vm517, %v1619, %v1620
        %v1633 = vsel %vm1628, %v1602, %v1632
        %v1634 = vsel %vm517, %v1620, %v1621
        %v1635 = vsel %vm1628, %v1604, %v1634
        %v1636 = vsel %vm517, %v1622, %v1623
        %v1637 = vsel %vm1628, %v1608, %v1636
        %v1638 = vsel %vm517, %v1623, %v1624
        %v1639 = vsel %vm1628, %v1610, %v1638
        %v1640 = vsel %vm517, %v1624, %v1625
        %v1641 = vsel %vm1628, %v1612, %v1640
        %v1642 = vsel %vm517, %v1625, %v1626
        %v1643 = vsel %vm1628, %v1614, %v1642
        %1652 = vst [vmem:[#allocation5 + $0x180] sm:$0xff] %v1629
        %1653 = vst [vmem:[#allocation5 + $0x188] sm:$0xff] %v1631
        %1654 = vst [vmem:[#allocation5 + $0x190] sm:$0xff] %v1633
        %1655 = vst [vmem:[#allocation5 + $0x198] sm:$0xff] %v1635
        %1656 = vst [vmem:[#allocation5 + $0x1a0] sm:$0xff] %v1637
        %1657 = vst [vmem:[#allocation5 + $0x1a8] sm:$0xff] %v1639
        %1658 = vst [vmem:[#allocation5 + $0x1b0] sm:$0xff] %v1641
        %1659 = vst [vmem:[#allocation5 + $0x1b8] sm:$0xff] %v1643
        %v1660 = vld [vmem:[#allocation4] sm:$0xff]
        %v1661 = vld [vmem:[#allocation4 + $0x8] sm:$0xff]
        %v1662 = vld [vmem:[#allocation4 + $0x10] sm:$0xff]
        %v1663 = vld [vmem:[#allocation4 + $0x18] sm:$0xff]
        %v1664 = vld [vmem:[#allocation4 + $0x20] sm:$0xf]
        %v1670 = vunpack.c.l.b16 %v1660
        %v1671 = vunpack.c.h.b16 %v1660
        %v1672 = vunpack.c.l.b16 %v1661
        %v1673 = vunpack.c.h.b16 %v1661
        %v1674 = vunpack.c.l.b16 %v1662
        %v1675 = vunpack.c.h.b16 %v1662
        %v1676 = vunpack.c.l.b16 %v1663
        %v1677 = vunpack.c.h.b16 %v1663
        %v1678 = vunpack.c.l.b16 %v1664
        %v1679 = vpack.c.b16 %v1670, %v1670
        %v1680 = vpack.c.b16 %v1671, %v1671
        %v1681 = vpack.c.b16 %v1672, %v1672
        %v1682 = vpack.c.b16 %v1673, %v1673
        %v1683 = vpack.c.b16 %v1674, %v1674
        %v1684 = vpack.c.b16 %v1675, %v1675
        %v1685 = vpack.c.b16 %v1676, %v1676
        %v1686 = vpack.c.b16 %v1677, %v1677
        %v1687 = vpack.c.b16 %v1678, %v1678
        %1688 = vrot.lane.b32.xlu0 %v1679, 120
        %v1689 = vpop.permute.xlu0 %1688
        %1690 = vrot.lane.b32.xlu0 %v1680, 120
        %v1691 = vpop.permute.xlu0 %1690
        %1692 = vrot.lane.b32.xlu0 %v1681, 120
        %v1693 = vpop.permute.xlu0 %1692
        %1694 = vrot.lane.b32.xlu0 %v1682, 120
        %v1695 = vpop.permute.xlu0 %1694
        %1696 = vrot.lane.b32.xlu0 %v1683, 120
        %v1697 = vpop.permute.xlu0 %1696
        %1698 = vrot.lane.b32.xlu0 %v1684, 120
        %v1699 = vpop.permute.xlu0 %1698
        %1700 = vrot.lane.b32.xlu0 %v1685, 120
        %v1701 = vpop.permute.xlu0 %1700
        %1702 = vrot.lane.b32.xlu0 %v1686, 120
        %v1703 = vpop.permute.xlu0 %1702
        %1704 = vrot.lane.b32.xlu0 %v1687, 120
        %v1705 = vpop.permute.xlu0 %1704
        %v1706 = vsel %vm597, %v1689, %v1691
        %v1707 = vsel %vm597, %v1691, %v1693
        %v1708 = vsel %vm597, %v1693, %v1695
        %v1709 = vsel %vm597, %v1695, %v1697
        %v1710 = vsel %vm597, %v1697, %v1699
        %v1711 = vsel %vm597, %v1699, %v1701
        %v1712 = vsel %vm597, %v1701, %v1703
        %v1713 = vsel %vm597, %v1703, %v1705
        %v1716 = vsel %vm422, %v1679, %v1706
        %v1719 = vsel %vm422, %v1680, %v1707
        %v1722 = vsel %vm422, %v1681, %v1708
        %v1725 = vsel %vm422, %v1682, %v1709
        %v1728 = vsel %vm422, %v1683, %v1710
        %v1731 = vsel %vm422, %v1684, %v1711
        %v1734 = vsel %vm422, %v1685, %v1712
        %v1737 = vsel %vm422, %v1686, %v1713
        %v1740 = vsel %vm422, %v1687, %v1705
        %v1750 = vunpack.c.l.b16 %v1716
        %v1751 = vunpack.c.l.b16 %v1719
        %v1752 = vunpack.c.l.b16 %v1722
        %v1753 = vunpack.c.l.b16 %v1725
        %v1754 = vunpack.c.l.b16 %v1728
        %v1755 = vunpack.c.l.b16 %v1731
        %v1756 = vunpack.c.l.b16 %v1734
        %v1757 = vunpack.c.l.b16 %v1737
        %v1758 = vunpack.c.l.b16 %v1740
        %v1759 = vunpack.c.h.b16 %v1716
        %v1760 = vunpack.c.h.b16 %v1719
        %v1761 = vunpack.c.h.b16 %v1722
        %v1762 = vunpack.c.h.b16 %v1725
        %v1763 = vunpack.c.h.b16 %v1728
        %v1764 = vunpack.c.h.b16 %v1731
        %v1765 = vunpack.c.h.b16 %v1734
        %v1766 = vunpack.c.h.b16 %v1737
        %v1767 = vunpack.c.h.b16 %v1740
        %v1768 = vpack.c.b16 %v1751, %v1750
        %v1769 = vpack.c.b16 %v1753, %v1752
        %v1770 = vpack.c.b16 %v1755, %v1754
        %v1771 = vpack.c.b16 %v1757, %v1756
        %v1772 = vpack.c.b16 %v1758, %v1758
        %v1773 = vpack.c.b16 %v1760, %v1759
        %v1774 = vpack.c.b16 %v1762, %v1761
        %v1775 = vpack.c.b16 %v1764, %v1763
        %v1776 = vpack.c.b16 %v1766, %v1765
        %v1777 = vpack.c.b16 %v1767, %v1767
        %1778 = vrot.lane.b32.xlu0 %v1768, 127
        %v1779 = vpop.permute.xlu0 %1778
        %1780 = vrot.lane.b32.xlu0 %v1769, 127
        %v1781 = vpop.permute.xlu0 %1780
        %1782 = vrot.lane.b32.xlu0 %v1770, 127
        %v1783 = vpop.permute.xlu0 %1782
        %1784 = vrot.lane.b32.xlu0 %v1771, 127
        %v1785 = vpop.permute.xlu0 %1784
        %1786 = vrot.lane.b32.xlu0 %v1772, 127
        %v1787 = vpop.permute.xlu0 %1786
        %1788 = vrot.lane.b32.xlu0 %v1773, 127
        %v1789 = vpop.permute.xlu0 %1788
        %1790 = vrot.lane.b32.xlu0 %v1774, 127
        %v1791 = vpop.permute.xlu0 %1790
        %1792 = vrot.lane.b32.xlu0 %v1775, 127
        %v1793 = vpop.permute.xlu0 %1792
        %1794 = vrot.lane.b32.xlu0 %v1776, 127
        %v1795 = vpop.permute.xlu0 %1794
        %1796 = vrot.lane.b32.xlu0 %v1777, 127
        %v1797 = vpop.permute.xlu0 %1796
        %v1798 = vrot.slane %v1779, 4
        %v1799 = vrot.slane %v1781, 4
        %v1800 = vrot.slane %v1783, 4
        %v1801 = vrot.slane %v1785, 4
        %v1802 = vrot.slane %v1787, 4
        %v1803 = vrot.slane %v1789, 4
        %v1804 = vrot.slane %v1791, 4
        %v1805 = vrot.slane %v1793, 4
        %v1806 = vrot.slane %v1795, 4
        %v1807 = vrot.slane %v1797, 4
        %v1808 = vsel %vm517, %v1798, %v1799
        %v1809 = vsel %vm413, %v1779, %v1808
        %v1810 = vsel %vm517, %v1799, %v1800
        %v1811 = vsel %vm413, %v1781, %v1810
        %v1812 = vsel %vm517, %v1800, %v1801
        %v1813 = vsel %vm413, %v1783, %v1812
        %v1814 = vsel %vm517, %v1801, %v1802
        %v1815 = vsel %vm413, %v1785, %v1814
        %v1816 = vsel %vm517, %v1803, %v1804
        %v1817 = vsel %vm413, %v1789, %v1816
        %v1818 = vsel %vm517, %v1804, %v1805
        %v1819 = vsel %vm413, %v1791, %v1818
        %v1820 = vsel %vm517, %v1805, %v1806
        %v1821 = vsel %vm413, %v1793, %v1820
        %v1822 = vsel %vm517, %v1806, %v1807
        %v1823 = vsel %vm413, %v1795, %v1822
        %1832 = vst [vmem:[#allocation5 + $0x1c0] sm:$0xff] %v1809
        %1833 = vst [vmem:[#allocation5 + $0x1c8] sm:$0xff] %v1811
        %1834 = vst [vmem:[#allocation5 + $0x1d0] sm:$0xff] %v1813
        %1835 = vst [vmem:[#allocation5 + $0x1d8] sm:$0xff] %v1815
        %1836 = vst [vmem:[#allocation5 + $0x1e0] sm:$0xff] %v1817
        %1837 = vst [vmem:[#allocation5 + $0x1e8] sm:$0xff] %v1819
        %1838 = vst [vmem:[#allocation5 + $0x1f0] sm:$0xff] %v1821
        %1839 = vst [vmem:[#allocation5 + $0x1f8] sm:$0xff] %v1823
        %v1840 = vld [vmem:[#allocation4] sm:$0xff]
        %v1841 = vld [vmem:[#allocation4 + $0x8] sm:$0xff]
        %v1842 = vld [vmem:[#allocation4 + $0x10] sm:$0xff]
        %v1843 = vld [vmem:[#allocation4 + $0x18] sm:$0xff]
        %v1844 = vld [vmem:[#allocation4 + $0x20] sm:$0xf]
        %v1850 = vunpack.c.l.b16 %v1840
        %v1851 = vunpack.c.h.b16 %v1840
        %v1852 = vunpack.c.l.b16 %v1841
        %v1853 = vunpack.c.h.b16 %v1841
        %v1854 = vunpack.c.l.b16 %v1842
        %v1855 = vunpack.c.h.b16 %v1842
        %v1856 = vunpack.c.l.b16 %v1843
        %v1857 = vunpack.c.h.b16 %v1843
        %v1858 = vunpack.c.l.b16 %v1844
        %v1859 = vpack.c.b16 %v1850, %v1850
        %v1860 = vpack.c.b16 %v1851, %v1851
        %v1861 = vpack.c.b16 %v1852, %v1852
        %v1862 = vpack.c.b16 %v1853, %v1853
        %v1863 = vpack.c.b16 %v1854, %v1854
        %v1864 = vpack.c.b16 %v1855, %v1855
        %v1865 = vpack.c.b16 %v1856, %v1856
        %v1866 = vpack.c.b16 %v1857, %v1857
        %v1867 = vpack.c.b16 %v1858, %v1858
        %1868 = vrot.lane.b32.xlu0 %v1859, 127
        %v1869 = vpop.permute.xlu0 %1868
        %1870 = vrot.lane.b32.xlu0 %v1860, 127
        %v1871 = vpop.permute.xlu0 %1870
        %1872 = vrot.lane.b32.xlu0 %v1861, 127
        %v1873 = vpop.permute.xlu0 %1872
        %1874 = vrot.lane.b32.xlu0 %v1862, 127
        %v1875 = vpop.permute.xlu0 %1874
        %1876 = vrot.lane.b32.xlu0 %v1863, 127
        %v1877 = vpop.permute.xlu0 %1876
        %1878 = vrot.lane.b32.xlu0 %v1864, 127
        %v1879 = vpop.permute.xlu0 %1878
        %1880 = vrot.lane.b32.xlu0 %v1865, 127
        %v1881 = vpop.permute.xlu0 %1880
        %1882 = vrot.lane.b32.xlu0 %v1866, 127
        %v1883 = vpop.permute.xlu0 %1882
        %1884 = vrot.lane.b32.xlu0 %v1867, 127
        %v1885 = vpop.permute.xlu0 %1884
        %v1886 = vsel %vm413, %v1869, %v1871
        %v1887 = vsel %vm413, %v1871, %v1873
        %v1888 = vsel %vm413, %v1873, %v1875
        %v1889 = vsel %vm413, %v1875, %v1877
        %v1890 = vsel %vm413, %v1877, %v1879
        %v1891 = vsel %vm413, %v1879, %v1881
        %v1892 = vsel %vm413, %v1881, %v1883
        %v1893 = vsel %vm413, %v1883, %v1885
        %v1896 = vsel %vm422, %v1859, %v1886
        %v1899 = vsel %vm422, %v1860, %v1887
        %v1902 = vsel %vm422, %v1861, %v1888
        %v1905 = vsel %vm422, %v1862, %v1889
        %v1908 = vsel %vm422, %v1863, %v1890
        %v1911 = vsel %vm422, %v1864, %v1891
        %v1914 = vsel %vm422, %v1865, %v1892
        %v1917 = vsel %vm422, %v1866, %v1893
        %v1920 = vsel %vm422, %v1867, %v1885
        %v1930 = vunpack.c.l.b16 %v1896
        %v1931 = vunpack.c.l.b16 %v1899
        %v1932 = vunpack.c.l.b16 %v1902
        %v1933 = vunpack.c.l.b16 %v1905
        %v1934 = vunpack.c.l.b16 %v1908
        %v1935 = vunpack.c.l.b16 %v1911
        %v1936 = vunpack.c.l.b16 %v1914
        %v1937 = vunpack.c.l.b16 %v1917
        %v1938 = vunpack.c.l.b16 %v1920
        %v1939 = vunpack.c.h.b16 %v1896
        %v1940 = vunpack.c.h.b16 %v1899
        %v1941 = vunpack.c.h.b16 %v1902
        %v1942 = vunpack.c.h.b16 %v1905
        %v1943 = vunpack.c.h.b16 %v1908
        %v1944 = vunpack.c.h.b16 %v1911
        %v1945 = vunpack.c.h.b16 %v1914
        %v1946 = vunpack.c.h.b16 %v1917
        %v1947 = vunpack.c.h.b16 %v1920
        %v1948 = vpack.c.b16 %v1931, %v1930
        %v1949 = vpack.c.b16 %v1933, %v1932
        %v1950 = vpack.c.b16 %v1935, %v1934
        %v1951 = vpack.c.b16 %v1937, %v1936
        %v1952 = vpack.c.b16 %v1938, %v1938
        %v1953 = vpack.c.b16 %v1940, %v1939
        %v1954 = vpack.c.b16 %v1942, %v1941
        %v1955 = vpack.c.b16 %v1944, %v1943
        %v1956 = vpack.c.b16 %v1946, %v1945
        %v1957 = vpack.c.b16 %v1947, %v1947
        %1958 = vrot.lane.b32.xlu0 %v1948, 118
        %v1959 = vpop.permute.xlu0 %1958
        %1960 = vrot.lane.b32.xlu0 %v1949, 118
        %v1961 = vpop.permute.xlu0 %1960
        %1962 = vrot.lane.b32.xlu0 %v1950, 118
        %v1963 = vpop.permute.xlu0 %1962
        %1964 = vrot.lane.b32.xlu0 %v1951, 118
        %v1965 = vpop.permute.xlu0 %1964
        %1966 = vrot.lane.b32.xlu0 %v1952, 118
        %v1967 = vpop.permute.xlu0 %1966
        %1968 = vrot.lane.b32.xlu0 %v1953, 118
        %v1969 = vpop.permute.xlu0 %1968
        %1970 = vrot.lane.b32.xlu0 %v1954, 118
        %v1971 = vpop.permute.xlu0 %1970
        %1972 = vrot.lane.b32.xlu0 %v1955, 118
        %v1973 = vpop.permute.xlu0 %1972
        %1974 = vrot.lane.b32.xlu0 %v1956, 118
        %v1975 = vpop.permute.xlu0 %1974
        %1976 = vrot.lane.b32.xlu0 %v1957, 118
        %v1977 = vpop.permute.xlu0 %1976
        %v1978 = vrot.slane %v1959, 4
        %v1979 = vrot.slane %v1961, 4
        %v1980 = vrot.slane %v1963, 4
        %v1981 = vrot.slane %v1965, 4
        %v1982 = vrot.slane %v1967, 4
        %v1983 = vrot.slane %v1969, 4
        %v1984 = vrot.slane %v1971, 4
        %v1985 = vrot.slane %v1973, 4
        %v1986 = vrot.slane %v1975, 4
        %v1987 = vrot.slane %v1977, 4
        %v1988 = vsel %vm517, %v1978, %v1979
        %vm1989 = vcmask 965632
        %v1990 = vsel %vm1989, %v1959, %v1988
        %v1991 = vsel %vm517, %v1979, %v1980
        %v1992 = vsel %vm1989, %v1961, %v1991
        %v1993 = vsel %vm517, %v1980, %v1981
        %v1994 = vsel %vm1989, %v1963, %v1993
        %v1995 = vsel %vm517, %v1981, %v1982
        %v1996 = vsel %vm1989, %v1965, %v1995
        %v1997 = vsel %vm517, %v1983, %v1984
        %v1998 = vsel %vm1989, %v1969, %v1997
        %v1999 = vsel %vm517, %v1984, %v1985
        %v2000 = vsel %vm1989, %v1971, %v1999
        %v2001 = vsel %vm517, %v1985, %v1986
        %v2002 = vsel %vm1989, %v1973, %v2001
        %v2003 = vsel %vm517, %v1986, %v1987
        %v2004 = vsel %vm1989, %v1975, %v2003
        %2013 = vst [vmem:[#allocation5 + $0x200] sm:$0xff] %v1990
        %2014 = vst [vmem:[#allocation5 + $0x208] sm:$0xff] %v1992
        %2015 = vst [vmem:[#allocation5 + $0x210] sm:$0xff] %v1994
        %2016 = vst [vmem:[#allocation5 + $0x218] sm:$0xff] %v1996
        %2017 = vst [vmem:[#allocation5 + $0x220] sm:$0xff] %v1998
        %2018 = vst [vmem:[#allocation5 + $0x228] sm:$0xff] %v2000
        %2019 = vst [vmem:[#allocation5 + $0x230] sm:$0xff] %v2002
        %2020 = vst [vmem:[#allocation5 + $0x238] sm:$0xff] %v2004
        %v2021 = vld [vmem:[#allocation4] sm:$0xff]
        %v2022 = vld [vmem:[#allocation4 + $0x8] sm:$0xff]
        %v2023 = vld [vmem:[#allocation4 + $0x10] sm:$0xff]
        %v2024 = vld [vmem:[#allocation4 + $0x18] sm:$0xff]
        %v2025 = vld [vmem:[#allocation4 + $0x20] sm:$0xf]
        %v2031 = vunpack.c.l.b16 %v2021
        %v2032 = vunpack.c.h.b16 %v2021
        %v2033 = vunpack.c.l.b16 %v2022
        %v2034 = vunpack.c.h.b16 %v2022
        %v2035 = vunpack.c.l.b16 %v2023
        %v2036 = vunpack.c.h.b16 %v2023
        %v2037 = vunpack.c.l.b16 %v2024
        %v2038 = vunpack.c.h.b16 %v2024
        %v2039 = vunpack.c.l.b16 %v2025
        %v2040 = vpack.c.b16 %v2031, %v2031
        %v2041 = vpack.c.b16 %v2032, %v2032
        %v2042 = vpack.c.b16 %v2033, %v2033
        %v2043 = vpack.c.b16 %v2034, %v2034
        %v2044 = vpack.c.b16 %v2035, %v2035
        %v2045 = vpack.c.b16 %v2036, %v2036
        %v2046 = vpack.c.b16 %v2037, %v2037
        %v2047 = vpack.c.b16 %v2038, %v2038
        %v2048 = vpack.c.b16 %v2039, %v2039
        %2049 = vrot.lane.b32.xlu0 %v2040, 127
        %v2050 = vpop.permute.xlu0 %2049
        %2051 = vrot.lane.b32.xlu0 %v2041, 127
        %v2052 = vpop.permute.xlu0 %2051
        %2053 = vrot.lane.b32.xlu0 %v2042, 127
        %v2054 = vpop.permute.xlu0 %2053
        %2055 = vrot.lane.b32.xlu0 %v2043, 127
        %v2056 = vpop.permute.xlu0 %2055
        %2057 = vrot.lane.b32.xlu0 %v2044, 127
        %v2058 = vpop.permute.xlu0 %2057
        %2059 = vrot.lane.b32.xlu0 %v2045, 127
        %v2060 = vpop.permute.xlu0 %2059
        %2061 = vrot.lane.b32.xlu0 %v2046, 127
        %v2062 = vpop.permute.xlu0 %2061
        %2063 = vrot.lane.b32.xlu0 %v2047, 127
        %v2064 = vpop.permute.xlu0 %2063
        %2065 = vrot.lane.b32.xlu0 %v2048, 127
        %v2066 = vpop.permute.xlu0 %2065
        %v2067 = vsel %vm413, %v2050, %v2052
        %v2068 = vsel %vm413, %v2052, %v2054
        %v2069 = vsel %vm413, %v2054, %v2056
        %v2070 = vsel %vm413, %v2056, %v2058
        %v2071 = vsel %vm413, %v2058, %v2060
        %v2072 = vsel %vm413, %v2060, %v2062
        %v2073 = vsel %vm413, %v2062, %v2064
        %v2074 = vsel %vm413, %v2064, %v2066
        %v2077 = vsel %vm422, %v2040, %v2067
        %v2080 = vsel %vm422, %v2041, %v2068
        %v2083 = vsel %vm422, %v2042, %v2069
        %v2086 = vsel %vm422, %v2043, %v2070
        %v2089 = vsel %vm422, %v2044, %v2071
        %v2092 = vsel %vm422, %v2045, %v2072
        %v2095 = vsel %vm422, %v2046, %v2073
        %v2098 = vsel %vm422, %v2047, %v2074
        %v2101 = vsel %vm422, %v2048, %v2066
        %v2111 = vunpack.c.l.b16 %v2077
        %v2112 = vunpack.c.l.b16 %v2080
        %v2113 = vunpack.c.l.b16 %v2083
        %v2114 = vunpack.c.l.b16 %v2086
        %v2115 = vunpack.c.l.b16 %v2089
        %v2116 = vunpack.c.l.b16 %v2092
        %v2117 = vunpack.c.l.b16 %v2095
        %v2118 = vunpack.c.l.b16 %v2098
        %v2119 = vunpack.c.l.b16 %v2101
        %v2120 = vunpack.c.h.b16 %v2077
        %v2121 = vunpack.c.h.b16 %v2080
        %v2122 = vunpack.c.h.b16 %v2083
        %v2123 = vunpack.c.h.b16 %v2086
        %v2124 = vunpack.c.h.b16 %v2089
        %v2125 = vunpack.c.h.b16 %v2092
        %v2126 = vunpack.c.h.b16 %v2095
        %v2127 = vunpack.c.h.b16 %v2098
        %v2128 = vunpack.c.h.b16 %v2101
        %v2129 = vpack.c.b16 %v2112, %v2111
        %v2130 = vpack.c.b16 %v2114, %v2113
        %v2131 = vpack.c.b16 %v2116, %v2115
        %v2132 = vpack.c.b16 %v2118, %v2117
        %v2133 = vpack.c.b16 %v2119, %v2119
        %v2134 = vpack.c.b16 %v2121, %v2120
        %v2135 = vpack.c.b16 %v2123, %v2122
        %v2136 = vpack.c.b16 %v2125, %v2124
        %v2137 = vpack.c.b16 %v2127, %v2126
        %v2138 = vpack.c.b16 %v2128, %v2128
        %2139 = vrot.lane.b32.xlu0 %v2129, 39
        %v2140 = vpop.permute.xlu0 %2139
        %2141 = vrot.lane.b32.xlu0 %v2130, 39
        %v2142 = vpop.permute.xlu0 %2141
        %2143 = vrot.lane.b32.xlu0 %v2131, 39
        %v2144 = vpop.permute.xlu0 %2143
        %2145 = vrot.lane.b32.xlu0 %v2132, 39
        %v2146 = vpop.permute.xlu0 %2145
        %2147 = vrot.lane.b32.xlu0 %v2133, 39
        %v2148 = vpop.permute.xlu0 %2147
        %2149 = vrot.lane.b32.xlu0 %v2134, 39
        %v2150 = vpop.permute.xlu0 %2149
        %2151 = vrot.lane.b32.xlu0 %v2135, 39
        %v2152 = vpop.permute.xlu0 %2151
        %2153 = vrot.lane.b32.xlu0 %v2136, 39
        %v2154 = vpop.permute.xlu0 %2153
        %2155 = vrot.lane.b32.xlu0 %v2137, 39
        %v2156 = vpop.permute.xlu0 %2155
        %2157 = vrot.lane.b32.xlu0 %v2138, 39
        %v2158 = vpop.permute.xlu0 %2157
        %v2159 = vrot.slane %v2140, 4
        %v2160 = vrot.slane %v2142, 4
        %v2161 = vrot.slane %v2144, 4
        %v2162 = vrot.slane %v2146, 4
        %v2163 = vrot.slane %v2148, 4
        %v2164 = vrot.slane %v2150, 4
        %v2165 = vrot.slane %v2152, 4
        %v2166 = vrot.slane %v2154, 4
        %v2167 = vrot.slane %v2156, 4
        %v2168 = vrot.slane %v2158, 4
        %v2169 = vsel %vm517, %v2159, %v2160
        %vm2170 = vcmask 318464
        %v2171 = vsel %vm2170, %v2140, %v2169
        %v2172 = vsel %vm517, %v2160, %v2161
        %v2173 = vsel %vm2170, %v2142, %v2172
        %v2174 = vsel %vm517, %v2161, %v2162
        %v2175 = vsel %vm2170, %v2144, %v2174
        %v2176 = vsel %vm517, %v2162, %v2163
        %v2177 = vsel %vm2170, %v2146, %v2176
        %v2178 = vsel %vm517, %v2164, %v2165
        %v2179 = vsel %vm2170, %v2150, %v2178
        %v2180 = vsel %vm517, %v2165, %v2166
        %v2181 = vsel %vm2170, %v2152, %v2180
        %v2182 = vsel %vm517, %v2166, %v2167
        %v2183 = vsel %vm2170, %v2154, %v2182
        %v2184 = vsel %vm517, %v2167, %v2168
        %v2185 = vsel %vm2170, %v2156, %v2184
        %2194 = vst [vmem:[#allocation5 + $0x240] sm:$0xff] %v2171
        %2195 = vst [vmem:[#allocation5 + $0x248] sm:$0xff] %v2173
        %2196 = vst [vmem:[#allocation5 + $0x250] sm:$0xff] %v2175
        %2197 = vst [vmem:[#allocation5 + $0x258] sm:$0xff] %v2177
        %2198 = vst [vmem:[#allocation5 + $0x260] sm:$0xff] %v2179
        %2199 = vst [vmem:[#allocation5 + $0x268] sm:$0xff] %v2181
        %2200 = vst [vmem:[#allocation5 + $0x270] sm:$0xff] %v2183
        %2201 = vst [vmem:[#allocation5 + $0x278] sm:$0xff] %v2185
        %v2202 = vld [vmem:[#allocation4] sm:$0xff]
        %v2203 = vld [vmem:[#allocation4 + $0x8] sm:$0xff]
        %v2204 = vld [vmem:[#allocation4 + $0x10] sm:$0xff]
        %v2205 = vld [vmem:[#allocation4 + $0x18] sm:$0xff]
        %v2206 = vld [vmem:[#allocation4 + $0x20] sm:$0xf]
        %v2212 = vunpack.c.l.b16 %v2202
        %v2213 = vunpack.c.h.b16 %v2202
        %v2214 = vunpack.c.l.b16 %v2203
        %v2215 = vunpack.c.h.b16 %v2203
        %v2216 = vunpack.c.l.b16 %v2204
        %v2217 = vunpack.c.h.b16 %v2204
        %v2218 = vunpack.c.l.b16 %v2205
        %v2219 = vunpack.c.h.b16 %v2205
        %v2220 = vunpack.c.l.b16 %v2206
        %v2221 = vpack.c.b16 %v2212, %v2212
        %v2222 = vpack.c.b16 %v2213, %v2213
        %v2223 = vpack.c.b16 %v2214, %v2214
        %v2224 = vpack.c.b16 %v2215, %v2215
        %v2225 = vpack.c.b16 %v2216, %v2216
        %v2226 = vpack.c.b16 %v2217, %v2217
        %v2227 = vpack.c.b16 %v2218, %v2218
        %v2228 = vpack.c.b16 %v2219, %v2219
        %v2229 = vpack.c.b16 %v2220, %v2220
        %2230 = vrot.lane.b32.xlu0 %v2221, 120
        %v2231 = vpop.permute.xlu0 %2230
        %2232 = vrot.lane.b32.xlu0 %v2222, 120
        %v2233 = vpop.permute.xlu0 %2232
        %2234 = vrot.lane.b32.xlu0 %v2223, 120
        %v2235 = vpop.permute.xlu0 %2234
        %2236 = vrot.lane.b32.xlu0 %v2224, 120
        %v2237 = vpop.permute.xlu0 %2236
        %2238 = vrot.lane.b32.xlu0 %v2225, 120
        %v2239 = vpop.permute.xlu0 %2238
        %2240 = vrot.lane.b32.xlu0 %v2226, 120
        %v2241 = vpop.permute.xlu0 %2240
        %2242 = vrot.lane.b32.xlu0 %v2227, 120
        %v2243 = vpop.permute.xlu0 %2242
        %2244 = vrot.lane.b32.xlu0 %v2228, 120
        %v2245 = vpop.permute.xlu0 %2244
        %2246 = vrot.lane.b32.xlu0 %v2229, 120
        %v2247 = vpop.permute.xlu0 %2246
        %v2248 = vsel %vm597, %v2231, %v2233
        %v2249 = vsel %vm597, %v2233, %v2235
        %v2250 = vsel %vm597, %v2235, %v2237
        %v2251 = vsel %vm597, %v2237, %v2239
        %v2252 = vsel %vm597, %v2239, %v2241
        %v2253 = vsel %vm597, %v2241, %v2243
        %v2254 = vsel %vm597, %v2243, %v2245
        %v2255 = vsel %vm597, %v2245, %v2247
        %v2258 = vsel %vm422, %v2221, %v2248
        %v2261 = vsel %vm422, %v2222, %v2249
        %v2264 = vsel %vm422, %v2223, %v2250
        %v2267 = vsel %vm422, %v2224, %v2251
        %v2270 = vsel %vm422, %v2225, %v2252
        %v2273 = vsel %vm422, %v2226, %v2253
        %v2276 = vsel %vm422, %v2227, %v2254
        %v2279 = vsel %vm422, %v2228, %v2255
        %v2282 = vsel %vm422, %v2229, %v2247
        %v2292 = vunpack.c.l.b16 %v2258
        %v2293 = vunpack.c.l.b16 %v2261
        %v2294 = vunpack.c.l.b16 %v2264
        %v2295 = vunpack.c.l.b16 %v2267
        %v2296 = vunpack.c.l.b16 %v2270
        %v2297 = vunpack.c.l.b16 %v2273
        %v2298 = vunpack.c.l.b16 %v2276
        %v2299 = vunpack.c.l.b16 %v2279
        %v2300 = vunpack.c.l.b16 %v2282
        %v2301 = vunpack.c.h.b16 %v2258
        %v2302 = vunpack.c.h.b16 %v2261
        %v2303 = vunpack.c.h.b16 %v2264
        %v2304 = vunpack.c.h.b16 %v2267
        %v2305 = vunpack.c.h.b16 %v2270
        %v2306 = vunpack.c.h.b16 %v2273
        %v2307 = vunpack.c.h.b16 %v2276
        %v2308 = vunpack.c.h.b16 %v2279
        %v2309 = vunpack.c.h.b16 %v2282
        %v2310 = vpack.c.b16 %v2293, %v2292
        %v2311 = vpack.c.b16 %v2295, %v2294
        %v2312 = vpack.c.b16 %v2297, %v2296
        %v2313 = vpack.c.b16 %v2299, %v2298
        %v2314 = vpack.c.b16 %v2300, %v2300
        %v2315 = vpack.c.b16 %v2302, %v2301
        %v2316 = vpack.c.b16 %v2304, %v2303
        %v2317 = vpack.c.b16 %v2306, %v2305
        %v2318 = vpack.c.b16 %v2308, %v2307
        %v2319 = vpack.c.b16 %v2309, %v2309
        %2320 = vrot.lane.b32.xlu0 %v2310, 37
        %v2321 = vpop.permute.xlu0 %2320
        %2322 = vrot.lane.b32.xlu0 %v2311, 37
        %v2323 = vpop.permute.xlu0 %2322
        %2324 = vrot.lane.b32.xlu0 %v2312, 37
        %v2325 = vpop.permute.xlu0 %2324
        %2326 = vrot.lane.b32.xlu0 %v2313, 37
        %v2327 = vpop.permute.xlu0 %2326
        %2328 = vrot.lane.b32.xlu0 %v2314, 37
        %v2329 = vpop.permute.xlu0 %2328
        %2330 = vrot.lane.b32.xlu0 %v2315, 37
        %v2331 = vpop.permute.xlu0 %2330
        %2332 = vrot.lane.b32.xlu0 %v2316, 37
        %v2333 = vpop.permute.xlu0 %2332
        %2334 = vrot.lane.b32.xlu0 %v2317, 37
        %v2335 = vpop.permute.xlu0 %2334
        %2336 = vrot.lane.b32.xlu0 %v2318, 37
        %v2337 = vpop.permute.xlu0 %2336
        %2338 = vrot.lane.b32.xlu0 %v2319, 37
        %v2339 = vpop.permute.xlu0 %2338
        %v2340 = vrot.slane %v2321, 4
        %v2341 = vrot.slane %v2323, 4
        %v2342 = vrot.slane %v2325, 4
        %v2343 = vrot.slane %v2327, 4
        %v2344 = vrot.slane %v2329, 4
        %v2345 = vrot.slane %v2331, 4
        %v2346 = vrot.slane %v2333, 4
        %v2347 = vrot.slane %v2335, 4
        %v2348 = vrot.slane %v2337, 4
        %v2349 = vrot.slane %v2339, 4
        %v2350 = vsel %vm517, %v2340, %v2341
        %vm2351 = vcmask 302080
        %v2352 = vsel %vm2351, %v2321, %v2350
        %v2353 = vsel %vm517, %v2341, %v2342
        %v2354 = vsel %vm2351, %v2323, %v2353
        %v2355 = vsel %vm517, %v2342, %v2343
        %v2356 = vsel %vm2351, %v2325, %v2355
        %v2357 = vsel %vm517, %v2343, %v2344
        %v2358 = vsel %vm2351, %v2327, %v2357
        %v2359 = vsel %vm517, %v2345, %v2346
        %v2360 = vsel %vm2351, %v2331, %v2359
        %v2361 = vsel %vm517, %v2346, %v2347
        %v2362 = vsel %vm2351, %v2333, %v2361
        %v2363 = vsel %vm517, %v2347, %v2348
        %v2364 = vsel %vm2351, %v2335, %v2363
        %v2365 = vsel %vm517, %v2348, %v2349
        %v2366 = vsel %vm2351, %v2337, %v2365
        %2375 = vst [vmem:[#allocation5 + $0x280] sm:$0xff] %v2352
        %2376 = vst [vmem:[#allocation5 + $0x288] sm:$0xff] %v2354
        %2377 = vst [vmem:[#allocation5 + $0x290] sm:$0xff] %v2356
        %2378 = vst [vmem:[#allocation5 + $0x298] sm:$0xff] %v2358
        %2379 = vst [vmem:[#allocation5 + $0x2a0] sm:$0xff] %v2360
        %2380 = vst [vmem:[#allocation5 + $0x2a8] sm:$0xff] %v2362
        %2381 = vst [vmem:[#allocation5 + $0x2b0] sm:$0xff] %v2364
        %2382 = vst [vmem:[#allocation5 + $0x2b8] sm:$0xff] %v2366
        %v2383 = vld [vmem:[#allocation4] sm:$0xff]
        %v2384 = vld [vmem:[#allocation4 + $0x8] sm:$0xff]
        %v2385 = vld [vmem:[#allocation4 + $0x10] sm:$0xff]
        %v2386 = vld [vmem:[#allocation4 + $0x18] sm:$0xff]
        %v2387 = vld [vmem:[#allocation4 + $0x20] sm:$0xf]
        %v2393 = vunpack.c.l.b16 %v2383
        %v2394 = vunpack.c.h.b16 %v2383
        %v2395 = vunpack.c.l.b16 %v2384
        %v2396 = vunpack.c.h.b16 %v2384
        %v2397 = vunpack.c.l.b16 %v2385
        %v2398 = vunpack.c.h.b16 %v2385
        %v2399 = vunpack.c.l.b16 %v2386
        %v2400 = vunpack.c.h.b16 %v2386
        %v2401 = vunpack.c.l.b16 %v2387
        %v2402 = vpack.c.b16 %v2393, %v2393
        %v2403 = vpack.c.b16 %v2394, %v2394
        %v2404 = vpack.c.b16 %v2395, %v2395
        %v2405 = vpack.c.b16 %v2396, %v2396
        %v2406 = vpack.c.b16 %v2397, %v2397
        %v2407 = vpack.c.b16 %v2398, %v2398
        %v2408 = vpack.c.b16 %v2399, %v2399
        %v2409 = vpack.c.b16 %v2400, %v2400
        %v2410 = vpack.c.b16 %v2401, %v2401
        %2411 = vrot.lane.b32.xlu0 %v2402, 127
        %v2412 = vpop.permute.xlu0 %2411
        %2413 = vrot.lane.b32.xlu0 %v2403, 127
        %v2414 = vpop.permute.xlu0 %2413
        %2415 = vrot.lane.b32.xlu0 %v2404, 127
        %v2416 = vpop.permute.xlu0 %2415
        %2417 = vrot.lane.b32.xlu0 %v2405, 127
        %v2418 = vpop.permute.xlu0 %2417
        %2419 = vrot.lane.b32.xlu0 %v2406, 127
        %v2420 = vpop.permute.xlu0 %2419
        %2421 = vrot.lane.b32.xlu0 %v2407, 127
        %v2422 = vpop.permute.xlu0 %2421
        %2423 = vrot.lane.b32.xlu0 %v2408, 127
        %v2424 = vpop.permute.xlu0 %2423
        %2425 = vrot.lane.b32.xlu0 %v2409, 127
        %v2426 = vpop.permute.xlu0 %2425
        %2427 = vrot.lane.b32.xlu0 %v2410, 127
        %v2428 = vpop.permute.xlu0 %2427
        %v2429 = vsel %vm413, %v2412, %v2414
        %v2430 = vsel %vm413, %v2414, %v2416
        %v2431 = vsel %vm413, %v2416, %v2418
        %v2432 = vsel %vm413, %v2418, %v2420
        %v2433 = vsel %vm413, %v2420, %v2422
        %v2434 = vsel %vm413, %v2422, %v2424
        %v2435 = vsel %vm413, %v2424, %v2426
        %v2436 = vsel %vm413, %v2426, %v2428
        %v2439 = vsel %vm422, %v2402, %v2429
        %v2442 = vsel %vm422, %v2403, %v2430
        %v2445 = vsel %vm422, %v2404, %v2431
        %v2448 = vsel %vm422, %v2405, %v2432
        %v2451 = vsel %vm422, %v2406, %v2433
        %v2454 = vsel %vm422, %v2407, %v2434
        %v2457 = vsel %vm422, %v2408, %v2435
        %v2460 = vsel %vm422, %v2409, %v2436
        %v2463 = vsel %vm422, %v2410, %v2428
        %v2473 = vunpack.c.l.b16 %v2439
        %v2474 = vunpack.c.l.b16 %v2442
        %v2475 = vunpack.c.l.b16 %v2445
        %v2476 = vunpack.c.l.b16 %v2448
        %v2477 = vunpack.c.l.b16 %v2451
        %v2478 = vunpack.c.l.b16 %v2454
        %v2479 = vunpack.c.l.b16 %v2457
        %v2480 = vunpack.c.l.b16 %v2460
        %v2481 = vunpack.c.l.b16 %v2463
        %v2482 = vunpack.c.h.b16 %v2439
        %v2483 = vunpack.c.h.b16 %v2442
        %v2484 = vunpack.c.h.b16 %v2445
        %v2485 = vunpack.c.h.b16 %v2448
        %v2486 = vunpack.c.h.b16 %v2451
        %v2487 = vunpack.c.h.b16 %v2454
        %v2488 = vunpack.c.h.b16 %v2457
        %v2489 = vunpack.c.h.b16 %v2460
        %v2490 = vunpack.c.h.b16 %v2463
        %v2491 = vpack.c.b16 %v2474, %v2473
        %v2492 = vpack.c.b16 %v2476, %v2475
        %v2493 = vpack.c.b16 %v2478, %v2477
        %v2494 = vpack.c.b16 %v2480, %v2479
        %v2495 = vpack.c.b16 %v2481, %v2481
        %v2496 = vpack.c.b16 %v2483, %v2482
        %v2497 = vpack.c.b16 %v2485, %v2484
        %v2498 = vpack.c.b16 %v2487, %v2486
        %v2499 = vpack.c.b16 %v2489, %v2488
        %v2500 = vpack.c.b16 %v2490, %v2490
        %2501 = vrot.lane.b32.xlu0 %v2491, 28
        %v2502 = vpop.permute.xlu0 %2501
        %2503 = vrot.lane.b32.xlu0 %v2492, 28
        %v2504 = vpop.permute.xlu0 %2503
        %2505 = vrot.lane.b32.xlu0 %v2493, 28
        %v2506 = vpop.permute.xlu0 %2505
        %2507 = vrot.lane.b32.xlu0 %v2494, 28
        %v2508 = vpop.permute.xlu0 %2507
        %2509 = vrot.lane.b32.xlu0 %v2495, 28
        %v2510 = vpop.permute.xlu0 %2509
        %2511 = vrot.lane.b32.xlu0 %v2496, 28
        %v2512 = vpop.permute.xlu0 %2511
        %2513 = vrot.lane.b32.xlu0 %v2497, 28
        %v2514 = vpop.permute.xlu0 %2513
        %2515 = vrot.lane.b32.xlu0 %v2498, 28
        %v2516 = vpop.permute.xlu0 %2515
        %2517 = vrot.lane.b32.xlu0 %v2499, 28
        %v2518 = vpop.permute.xlu0 %2517
        %2519 = vrot.lane.b32.xlu0 %v2500, 28
        %v2520 = vpop.permute.xlu0 %2519
        %v2521 = vrot.slane %v2502, 4
        %v2522 = vrot.slane %v2504, 4
        %v2523 = vrot.slane %v2506, 4
        %v2524 = vrot.slane %v2508, 4
        %v2525 = vrot.slane %v2510, 4
        %v2526 = vrot.slane %v2512, 4
        %v2527 = vrot.slane %v2514, 4
        %v2528 = vrot.slane %v2516, 4
        %v2529 = vrot.slane %v2518, 4
        %v2530 = vrot.slane %v2520, 4
        %v2531 = vsel %vm517, %v2521, %v2522
        %vm2532 = vcmask 228352
        %v2533 = vsel %vm2532, %v2502, %v2531
        %v2534 = vsel %vm517, %v2522, %v2523
        %v2535 = vsel %vm2532, %v2504, %v2534
        %v2536 = vsel %vm517, %v2523, %v2524
        %v2537 = vsel %vm2532, %v2506, %v2536
        %v2538 = vsel %vm517, %v2524, %v2525
        %v2539 = vsel %vm2532, %v2508, %v2538
        %v2540 = vsel %vm517, %v2526, %v2527
        %v2541 = vsel %vm2532, %v2512, %v2540
        %v2542 = vsel %vm517, %v2527, %v2528
        %v2543 = vsel %vm2532, %v2514, %v2542
        %v2544 = vsel %vm517, %v2528, %v2529
        %v2545 = vsel %vm2532, %v2516, %v2544
        %v2546 = vsel %vm517, %v2529, %v2530
        %v2547 = vsel %vm2532, %v2518, %v2546
        %2556 = vst [vmem:[#allocation5 + $0x2c0] sm:$0xff] %v2533
        %2557 = vst [vmem:[#allocation5 + $0x2c8] sm:$0xff] %v2535
        %2558 = vst [vmem:[#allocation5 + $0x2d0] sm:$0xff] %v2537
        %2559 = vst [vmem:[#allocation5 + $0x2d8] sm:$0xff] %v2539
        %2560 = vst [vmem:[#allocation5 + $0x2e0] sm:$0xff] %v2541
        %2561 = vst [vmem:[#allocation5 + $0x2e8] sm:$0xff] %v2543
        %2562 = vst [vmem:[#allocation5 + $0x2f0] sm:$0xff] %v2545
        %2563 = vst [vmem:[#allocation5 + $0x2f8] sm:$0xff] %v2547
        %v2564 = vld [vmem:[#allocation4] sm:$0xff]
        %v2565 = vld [vmem:[#allocation4 + $0x8] sm:$0xff]
        %v2566 = vld [vmem:[#allocation4 + $0x10] sm:$0xff]
        %v2567 = vld [vmem:[#allocation4 + $0x18] sm:$0xff]
        %v2568 = vld [vmem:[#allocation4 + $0x20] sm:$0xf]
        %v2574 = vunpack.c.l.b16 %v2564
        %v2575 = vunpack.c.h.b16 %v2564
        %v2576 = vunpack.c.l.b16 %v2565
        %v2577 = vunpack.c.h.b16 %v2565
        %v2578 = vunpack.c.l.b16 %v2566
        %v2579 = vunpack.c.h.b16 %v2566
        %v2580 = vunpack.c.l.b16 %v2567
        %v2581 = vunpack.c.h.b16 %v2567
        %v2582 = vunpack.c.l.b16 %v2568
        %v2583 = vpack.c.b16 %v2574, %v2574
        %v2584 = vpack.c.b16 %v2575, %v2575
        %v2585 = vpack.c.b16 %v2576, %v2576
        %v2586 = vpack.c.b16 %v2577, %v2577
        %v2587 = vpack.c.b16 %v2578, %v2578
        %v2588 = vpack.c.b16 %v2579, %v2579
        %v2589 = vpack.c.b16 %v2580, %v2580
        %v2590 = vpack.c.b16 %v2581, %v2581
        %v2591 = vpack.c.b16 %v2582, %v2582
        %2592 = vrot.lane.b32.xlu0 %v2583, 127
        %v2593 = vpop.permute.xlu0 %2592
        %2594 = vrot.lane.b32.xlu0 %v2584, 127
        %v2595 = vpop.permute.xlu0 %2594
        %2596 = vrot.lane.b32.xlu0 %v2585, 127
        %v2597 = vpop.permute.xlu0 %2596
        %2598 = vrot.lane.b32.xlu0 %v2586, 127
        %v2599 = vpop.permute.xlu0 %2598
        %2600 = vrot.lane.b32.xlu0 %v2587, 127
        %v2601 = vpop.permute.xlu0 %2600
        %2602 = vrot.lane.b32.xlu0 %v2588, 127
        %v2603 = vpop.permute.xlu0 %2602
        %2604 = vrot.lane.b32.xlu0 %v2589, 127
        %v2605 = vpop.permute.xlu0 %2604
        %2606 = vrot.lane.b32.xlu0 %v2590, 127
        %v2607 = vpop.permute.xlu0 %2606
        %2608 = vrot.lane.b32.xlu0 %v2591, 127
        %v2609 = vpop.permute.xlu0 %2608
        %v2610 = vsel %vm413, %v2593, %v2595
        %v2611 = vsel %vm413, %v2595, %v2597
        %v2612 = vsel %vm413, %v2597, %v2599
        %v2613 = vsel %vm413, %v2599, %v2601
        %v2614 = vsel %vm413, %v2601, %v2603
        %v2615 = vsel %vm413, %v2603, %v2605
        %v2616 = vsel %vm413, %v2605, %v2607
        %v2617 = vsel %vm413, %v2607, %v2609
        %v2620 = vsel %vm422, %v2583, %v2610
        %v2623 = vsel %vm422, %v2584, %v2611
        %v2626 = vsel %vm422, %v2585, %v2612
        %v2629 = vsel %vm422, %v2586, %v2613
        %v2632 = vsel %vm422, %v2587, %v2614
        %v2635 = vsel %vm422, %v2588, %v2615
        %v2638 = vsel %vm422, %v2589, %v2616
        %v2641 = vsel %vm422, %v2590, %v2617
        %v2644 = vsel %vm422, %v2591, %v2609
        %v2654 = vunpack.c.l.b16 %v2620
        %v2655 = vunpack.c.l.b16 %v2623
        %v2656 = vunpack.c.l.b16 %v2626
        %v2657 = vunpack.c.l.b16 %v2629
        %v2658 = vunpack.c.l.b16 %v2632
        %v2659 = vunpack.c.l.b16 %v2635
        %v2660 = vunpack.c.l.b16 %v2638
        %v2661 = vunpack.c.l.b16 %v2641
        %v2662 = vunpack.c.l.b16 %v2644
        %v2663 = vunpack.c.h.b16 %v2620
        %v2664 = vunpack.c.h.b16 %v2623
        %v2665 = vunpack.c.h.b16 %v2626
        %v2666 = vunpack.c.h.b16 %v2629
        %v2667 = vunpack.c.h.b16 %v2632
        %v2668 = vunpack.c.h.b16 %v2635
        %v2669 = vunpack.c.h.b16 %v2638
        %v2670 = vunpack.c.h.b16 %v2641
        %v2671 = vunpack.c.h.b16 %v2644
        %v2672 = vpack.c.b16 %v2655, %v2654
        %v2673 = vpack.c.b16 %v2657, %v2656
        %v2674 = vpack.c.b16 %v2659, %v2658
        %v2675 = vpack.c.b16 %v2661, %v2660
        %v2676 = vpack.c.b16 %v2662, %v2662
        %v2677 = vpack.c.b16 %v2664, %v2663
        %v2678 = vpack.c.b16 %v2666, %v2665
        %v2679 = vpack.c.b16 %v2668, %v2667
        %v2680 = vpack.c.b16 %v2670, %v2669
        %v2681 = vpack.c.b16 %v2671, %v2671
        %2682 = vrot.lane.b32.xlu0 %v2672, 19
        %v2683 = vpop.permute.xlu0 %2682
        %2684 = vrot.lane.b32.xlu0 %v2673, 19
        %v2685 = vpop.permute.xlu0 %2684
        %2686 = vrot.lane.b32.xlu0 %v2674, 19
        %v2687 = vpop.permute.xlu0 %2686
        %2688 = vrot.lane.b32.xlu0 %v2675, 19
        %v2689 = vpop.permute.xlu0 %2688
        %2690 = vrot.lane.b32.xlu0 %v2676, 19
        %v2691 = vpop.permute.xlu0 %2690
        %2692 = vrot.lane.b32.xlu0 %v2677, 19
        %v2693 = vpop.permute.xlu0 %2692
        %2694 = vrot.lane.b32.xlu0 %v2678, 19
        %v2695 = vpop.permute.xlu0 %2694
        %2696 = vrot.lane.b32.xlu0 %v2679, 19
        %v2697 = vpop.permute.xlu0 %2696
        %2698 = vrot.lane.b32.xlu0 %v2680, 19
        %v2699 = vpop.permute.xlu0 %2698
        %2700 = vrot.lane.b32.xlu0 %v2681, 19
        %v2701 = vpop.permute.xlu0 %2700
        %v2702 = vrot.slane %v2683, 4
        %v2703 = vrot.slane %v2685, 4
        %v2704 = vrot.slane %v2687, 4
        %v2705 = vrot.slane %v2689, 4
        %v2706 = vrot.slane %v2691, 4
        %v2707 = vrot.slane %v2693, 4
        %v2708 = vrot.slane %v2695, 4
        %v2709 = vrot.slane %v2697, 4
        %v2710 = vrot.slane %v2699, 4
        %v2711 = vrot.slane %v2701, 4
        %v2712 = vsel %vm517, %v2702, %v2703
        %vm2713 = vcmask 154624
        %v2714 = vsel %vm2713, %v2683, %v2712
        %v2715 = vsel %vm517, %v2703, %v2704
        %v2716 = vsel %vm2713, %v2685, %v2715
        %v2717 = vsel %vm517, %v2704, %v2705
        %v2718 = vsel %vm2713, %v2687, %v2717
        %v2719 = vsel %vm517, %v2705, %v2706
        %v2720 = vsel %vm2713, %v2689, %v2719
        %v2721 = vsel %vm517, %v2707, %v2708
        %v2722 = vsel %vm2713, %v2693, %v2721
        %v2723 = vsel %vm517, %v2708, %v2709
        %v2724 = vsel %vm2713, %v2695, %v2723
        %v2725 = vsel %vm517, %v2709, %v2710
        %v2726 = vsel %vm2713, %v2697, %v2725
        %v2727 = vsel %vm517, %v2710, %v2711
        %v2728 = vsel %vm2713, %v2699, %v2727
        %2737 = vst [vmem:[#allocation5 + $0x300] sm:$0xff] %v2714
        %2738 = vst [vmem:[#allocation5 + $0x308] sm:$0xff] %v2716
        %2739 = vst [vmem:[#allocation5 + $0x310] sm:$0xff] %v2718
        %2740 = vst [vmem:[#allocation5 + $0x318] sm:$0xff] %v2720
        %2741 = vst [vmem:[#allocation5 + $0x320] sm:$0xff] %v2722
        %2742 = vst [vmem:[#allocation5 + $0x328] sm:$0xff] %v2724
        %2743 = vst [vmem:[#allocation5 + $0x330] sm:$0xff] %v2726
        %2744 = vst [vmem:[#allocation5 + $0x338] sm:$0xff] %v2728
        %v2745 = vld [vmem:[#allocation4] sm:$0xff]
        %v2746 = vld [vmem:[#allocation4 + $0x8] sm:$0xff]
        %v2747 = vld [vmem:[#allocation4 + $0x10] sm:$0xff]
        %v2748 = vld [vmem:[#allocation4 + $0x18] sm:$0xff]
        %v2749 = vld [vmem:[#allocation4 + $0x20] sm:$0xf]
        %2755 = vrot.lane.b32.xlu0 %v2745, 17
        %v2756 = vpop.permute.xlu0 %2755
        %2757 = vrot.lane.b32.xlu0 %v2746, 17
        %v2758 = vpop.permute.xlu0 %2757
        %2759 = vrot.lane.b32.xlu0 %v2747, 17
        %v2760 = vpop.permute.xlu0 %2759
        %2761 = vrot.lane.b32.xlu0 %v2748, 17
        %v2762 = vpop.permute.xlu0 %2761
        %2763 = vrot.lane.b32.xlu0 %v2749, 17
        %v2764 = vpop.permute.xlu0 %2763
        %v2765 = vrot.slane %v2756, 4
        %v2766 = vrot.slane %v2758, 4
        %v2767 = vrot.slane %v2760, 4
        %v2768 = vrot.slane %v2762, 4
        %v2769 = vrot.slane %v2764, 4
        %v2770 = vsel %vm517, %v2765, %v2766
        %vm2771 = vcmask 138240
        %v2772 = vsel %vm2771, %v2756, %v2770
        %v2773 = vsel %vm517, %v2766, %v2767
        %v2774 = vsel %vm2771, %v2758, %v2773
        %v2775 = vsel %vm517, %v2767, %v2768
        %v2776 = vsel %vm2771, %v2760, %v2775
        %v2777 = vsel %vm517, %v2768, %v2769
        %v2778 = vsel %vm2771, %v2762, %v2777
        %2783 = vst [vmem:[#allocation5 + $0x340] sm:$0xff] %v2772
        %2784 = vst [vmem:[#allocation5 + $0x348] sm:$0xff] %v2774
        %2785 = vst [vmem:[#allocation5 + $0x350] sm:$0xff] %v2776
        %2786 = vst [vmem:[#allocation5 + $0x358] sm:$0xff] %v2778
        %v2787 = vld [vmem:[%s3] sm:$0xff]
        %v2788 = vld [vmem:[%s3 + $0x8] sm:$0xff]
        %v2789 = vld [vmem:[#allocation5] sm:$0xff]
        %v2790 = vld [vmem:[#allocation5 + $0x8] sm:$0xff]
        %v2791 = vld [vmem:[#allocation5 + $0x10] sm:$0xff]
        %v2792 = vld [vmem:[#allocation5 + $0x18] sm:$0xff]
        %v2793 = vld [vmem:[#allocation5 + $0x20] sm:$0xff]
        %v2794 = vld [vmem:[#allocation5 + $0x28] sm:$0xff]
        %v2795 = vld [vmem:[#allocation5 + $0x30] sm:$0xff]
        %v2796 = vld [vmem:[#allocation5 + $0x38] sm:$0xff]
        %v2797 = vld [vmem:[#allocation5 + $0x40] sm:$0xff]
        %v2798 = vld [vmem:[#allocation5 + $0x48] sm:$0xff]
        %v2799 = vld [vmem:[#allocation5 + $0x50] sm:$0xff]
        %v2800 = vld [vmem:[#allocation5 + $0x58] sm:$0xff]
        %v2801 = vld [vmem:[#allocation5 + $0x60] sm:$0xff]
        %v2802 = vld [vmem:[#allocation5 + $0x68] sm:$0xff]
        %v2803 = vld [vmem:[#allocation5 + $0x70] sm:$0xff]
        %v2804 = vld [vmem:[#allocation5 + $0x78] sm:$0xff]
        %v2805 = vld [vmem:[#allocation5 + $0x80] sm:$0xff]
        %v2806 = vld [vmem:[#allocation5 + $0x88] sm:$0xff]
        %v2807 = vld [vmem:[#allocation5 + $0x90] sm:$0xff]
        %v2808 = vld [vmem:[#allocation5 + $0x98] sm:$0xff]
        %v2809 = vld [vmem:[#allocation5 + $0xa0] sm:$0xff]
        %v2810 = vld [vmem:[#allocation5 + $0xa8] sm:$0xff]
        %v2811 = vld [vmem:[#allocation5 + $0xb0] sm:$0xff]
        %v2812 = vld [vmem:[#allocation5 + $0xb8] sm:$0xff]
        %v2813 = vld [vmem:[#allocation5 + $0xc0] sm:$0xff]
        %v2814 = vld [vmem:[#allocation5 + $0xc8] sm:$0xff]
        %v2815 = vld [vmem:[#allocation5 + $0xd0] sm:$0xff]
        %v2816 = vld [vmem:[#allocation5 + $0xd8] sm:$0xff]
        %v2817 = vld [vmem:[#allocation5 + $0xe0] sm:$0xff]
        %v2818 = vld [vmem:[#allocation5 + $0xe8] sm:$0xff]
        %v2819 = vld [vmem:[#allocation5 + $0xf0] sm:$0xff]
        %v2820 = vld [vmem:[#allocation5 + $0xf8] sm:$0xff]
        %v2821 = vld [vmem:[#allocation5 + $0x100] sm:$0xff]
        %v2822 = vld [vmem:[#allocation5 + $0x108] sm:$0xff]
        %v2823 = vld [vmem:[#allocation5 + $0x110] sm:$0xff]
        %v2824 = vld [vmem:[#allocation5 + $0x118] sm:$0xff]
        %v2825 = vld [vmem:[#allocation5 + $0x120] sm:$0xff]
        %v2826 = vld [vmem:[#allocation5 + $0x128] sm:$0xff]
        %v2827 = vld [vmem:[#allocation5 + $0x130] sm:$0xff]
        %v2828 = vld [vmem:[#allocation5 + $0x138] sm:$0xff]
        %v2829 = vld [vmem:[#allocation5 + $0x140] sm:$0xff]
        %v2830 = vld [vmem:[#allocation5 + $0x148] sm:$0xff]
        %v2831 = vld [vmem:[#allocation5 + $0x150] sm:$0xff]
        %v2832 = vld [vmem:[#allocation5 + $0x158] sm:$0xff]
        %v2833 = vld [vmem:[#allocation5 + $0x160] sm:$0xff]
        %v2834 = vld [vmem:[#allocation5 + $0x168] sm:$0xff]
        %v2835 = vld [vmem:[#allocation5 + $0x170] sm:$0xff]
        %v2836 = vld [vmem:[#allocation5 + $0x178] sm:$0xff]
        %v2837 = vld [vmem:[#allocation5 + $0x180] sm:$0xff]
        %v2838 = vld [vmem:[#allocation5 + $0x188] sm:$0xff]
        %v2839 = vld [vmem:[#allocation5 + $0x190] sm:$0xff]
        %v2840 = vld [vmem:[#allocation5 + $0x198] sm:$0xff]
        %v2841 = vld [vmem:[#allocation5 + $0x1a0] sm:$0xff]
        %v2842 = vld [vmem:[#allocation5 + $0x1a8] sm:$0xff]
        %v2843 = vld [vmem:[#allocation5 + $0x1b0] sm:$0xff]
        %v2844 = vld [vmem:[#allocation5 + $0x1b8] sm:$0xff]
        %v2845 = vld [vmem:[#allocation5 + $0x1c0] sm:$0xff]
        %v2846 = vld [vmem:[#allocation5 + $0x1c8] sm:$0xff]
        %v2847 = vld [vmem:[#allocation5 + $0x1d0] sm:$0xff]
        %v2848 = vld [vmem:[#allocation5 + $0x1d8] sm:$0xff]
        %v2849 = vld [vmem:[#allocation5 + $0x1e0] sm:$0xff]
        %v2850 = vld [vmem:[#allocation5 + $0x1e8] sm:$0xff]
        %v2851 = vld [vmem:[#allocation5 + $0x1f0] sm:$0xff]
        %v2852 = vld [vmem:[#allocation5 + $0x1f8] sm:$0xff]
        %v2853 = vld [vmem:[#allocation5 + $0x200] sm:$0xff]
        %v2854 = vld [vmem:[#allocation5 + $0x208] sm:$0xff]
        %v2855 = vld [vmem:[#allocation5 + $0x210] sm:$0xff]
        %v2856 = vld [vmem:[#allocation5 + $0x218] sm:$0xff]
        %v2857 = vld [vmem:[#allocation5 + $0x220] sm:$0xff]
        %v2858 = vld [vmem:[#allocation5 + $0x228] sm:$0xff]
        %v2859 = vld [vmem:[#allocation5 + $0x230] sm:$0xff]
        %v2860 = vld [vmem:[#allocation5 + $0x238] sm:$0xff]
        %v2861 = vld [vmem:[#allocation5 + $0x240] sm:$0xff]
        %v2862 = vld [vmem:[#allocation5 + $0x248] sm:$0xff]
        %v2863 = vld [vmem:[#allocation5 + $0x250] sm:$0xff]
        %v2864 = vld [vmem:[#allocation5 + $0x258] sm:$0xff]
        %v2865 = vld [vmem:[#allocation5 + $0x260] sm:$0xff]
        %v2866 = vld [vmem:[#allocation5 + $0x268] sm:$0xff]
        %v2867 = vld [vmem:[#allocation5 + $0x270] sm:$0xff]
        %v2868 = vld [vmem:[#allocation5 + $0x278] sm:$0xff]
        %v2869 = vld [vmem:[#allocation5 + $0x280] sm:$0xff]
        %v2870 = vld [vmem:[#allocation5 + $0x288] sm:$0xff]
        %v2871 = vld [vmem:[#allocation5 + $0x290] sm:$0xff]
        %v2872 = vld [vmem:[#allocation5 + $0x298] sm:$0xff]
        %v2873 = vld [vmem:[#allocation5 + $0x2a0] sm:$0xff]
        %v2874 = vld [vmem:[#allocation5 + $0x2a8] sm:$0xff]
        %v2875 = vld [vmem:[#allocation5 + $0x2b0] sm:$0xff]
        %v2876 = vld [vmem:[#allocation5 + $0x2b8] sm:$0xff]
        %v2877 = vld [vmem:[#allocation5 + $0x2c0] sm:$0xff]
        %v2878 = vld [vmem:[#allocation5 + $0x2c8] sm:$0xff]
        %v2879 = vld [vmem:[#allocation5 + $0x2d0] sm:$0xff]
        %v2880 = vld [vmem:[#allocation5 + $0x2d8] sm:$0xff]
        %v2881 = vld [vmem:[#allocation5 + $0x2e0] sm:$0xff]
        %v2882 = vld [vmem:[#allocation5 + $0x2e8] sm:$0xff]
        %v2883 = vld [vmem:[#allocation5 + $0x2f0] sm:$0xff]
        %v2884 = vld [vmem:[#allocation5 + $0x2f8] sm:$0xff]
        %v2885 = vld [vmem:[#allocation5 + $0x300] sm:$0xff]
        %v2886 = vld [vmem:[#allocation5 + $0x308] sm:$0xff]
        %v2887 = vld [vmem:[#allocation5 + $0x310] sm:$0xff]
        %v2888 = vld [vmem:[#allocation5 + $0x318] sm:$0xff]
        %v2889 = vld [vmem:[#allocation5 + $0x320] sm:$0xff]
        %v2890 = vld [vmem:[#allocation5 + $0x328] sm:$0xff]
        %v2891 = vld [vmem:[#allocation5 + $0x330] sm:$0xff]
        %v2892 = vld [vmem:[#allocation5 + $0x338] sm:$0xff]
        %v2893 = vld [vmem:[#allocation5 + $0x340] sm:$0xff]
        %v2894 = vld [vmem:[#allocation5 + $0x348] sm:$0xff]
        %v2895 = vld [vmem:[#allocation5 + $0x350] sm:$0xff]
        %v2896 = vld [vmem:[#allocation5 + $0x358] sm:$0xff]
        %v2897 = vld [vmem:[%s4] sm:$0xff]
        %v2898 = vld [vmem:[%s4 + $0x8] sm:$0xff]
        %2900 = vset.pattern.permute.xlu0 0
        %2901 = vperm.xlu0 %2900, %v2897
        %v2902 = vpop.permute.xlu0 %2901
        %2905 = vset.pattern.permute.xlu0 0
        %2906 = vperm.xlu0 %2905, %v2898
        %v2907 = vpop.permute.xlu0 %2906
        %v2911 = vunpack.c.l.b16 %v2787
        %v2912 = vunpack.c.h.b16 %v2787
        %v2913 = vunpack.c.l.b16 %v2788
        %v2914 = vunpack.c.h.b16 %v2788
        %v2915 = vpack.c.b16 %v2913, %v2911
        %v2916 = vpack.c.b16 %v2914, %v2912
        %v3026 = vunpack.c.l.b16 %v2789
        %v3027 = vunpack.c.h.b16 %v2789
        %v3028 = vunpack.c.l.b16 %v2790
        %v3029 = vunpack.c.h.b16 %v2790
        %v3030 = vunpack.c.l.b16 %v2791
        %v3031 = vunpack.c.h.b16 %v2791
        %v3032 = vunpack.c.l.b16 %v2792
        %v3033 = vunpack.c.h.b16 %v2792
        %v3034 = vunpack.c.l.b16 %v2793
        %v3035 = vunpack.c.h.b16 %v2793
        %v3036 = vunpack.c.l.b16 %v2794
        %v3037 = vunpack.c.h.b16 %v2794
        %v3038 = vunpack.c.l.b16 %v2795
        %v3039 = vunpack.c.h.b16 %v2795
        %v3040 = vunpack.c.l.b16 %v2796
        %v3041 = vunpack.c.h.b16 %v2796
        %v3042 = vunpack.c.l.b16 %v2797
        %v3043 = vunpack.c.h.b16 %v2797
        %v3044 = vunpack.c.l.b16 %v2798
        %v3045 = vunpack.c.h.b16 %v2798
        %v3046 = vunpack.c.l.b16 %v2799
        %v3047 = vunpack.c.h.b16 %v2799
        %v3048 = vunpack.c.l.b16 %v2800
        %v3049 = vunpack.c.h.b16 %v2800
        %v3050 = vunpack.c.l.b16 %v2801
        %v3051 = vunpack.c.h.b16 %v2801
        %v3052 = vunpack.c.l.b16 %v2802
        %v3053 = vunpack.c.h.b16 %v2802
        %v3054 = vunpack.c.l.b16 %v2803
        %v3055 = vunpack.c.h.b16 %v2803
        %v3056 = vunpack.c.l.b16 %v2804
        %v3057 = vunpack.c.h.b16 %v2804
        %v3058 = vunpack.c.l.b16 %v2805
        %v3059 = vunpack.c.h.b16 %v2805
        %v3060 = vunpack.c.l.b16 %v2806
        %v3061 = vunpack.c.h.b16 %v2806
        %v3062 = vunpack.c.l.b16 %v2807
        %v3063 = vunpack.c.h.b16 %v2807
        %v3064 = vunpack.c.l.b16 %v2808
        %v3065 = vunpack.c.h.b16 %v2808
        %v3066 = vunpack.c.l.b16 %v2809
        %v3067 = vunpack.c.h.b16 %v2809
        %v3068 = vunpack.c.l.b16 %v2810
        %v3069 = vunpack.c.h.b16 %v2810
        %v3070 = vunpack.c.l.b16 %v2811
        %v3071 = vunpack.c.h.b16 %v2811
        %v3072 = vunpack.c.l.b16 %v2812
        %v3073 = vunpack.c.h.b16 %v2812
        %v3074 = vunpack.c.l.b16 %v2813
        %v3075 = vunpack.c.h.b16 %v2813
        %v3076 = vunpack.c.l.b16 %v2814
        %v3077 = vunpack.c.h.b16 %v2814
        %v3078 = vunpack.c.l.b16 %v2815
        %v3079 = vunpack.c.h.b16 %v2815
        %v3080 = vunpack.c.l.b16 %v2816
        %v3081 = vunpack.c.h.b16 %v2816
        %v3082 = vunpack.c.l.b16 %v2817
        %v3083 = vunpack.c.h.b16 %v2817
        %v3084 = vunpack.c.l.b16 %v2818
        %v3085 = vunpack.c.h.b16 %v2818
        %v3086 = vunpack.c.l.b16 %v2819
        %v3087 = vunpack.c.h.b16 %v2819
        %v3088 = vunpack.c.l.b16 %v2820
        %v3089 = vunpack.c.h.b16 %v2820
        %v3090 = vunpack.c.l.b16 %v2821
        %v3091 = vunpack.c.h.b16 %v2821
        %v3092 = vunpack.c.l.b16 %v2822
        %v3093 = vunpack.c.h.b16 %v2822
        %v3094 = vunpack.c.l.b16 %v2823
        %v3095 = vunpack.c.h.b16 %v2823
        %v3096 = vunpack.c.l.b16 %v2824
        %v3097 = vunpack.c.h.b16 %v2824
        %v3098 = vunpack.c.l.b16 %v2825
        %v3099 = vunpack.c.h.b16 %v2825
        %v3100 = vunpack.c.l.b16 %v2826
        %v3101 = vunpack.c.h.b16 %v2826
        %v3102 = vunpack.c.l.b16 %v2827
        %v3103 = vunpack.c.h.b16 %v2827
        %v3104 = vunpack.c.l.b16 %v2828
        %v3105 = vunpack.c.h.b16 %v2828
        %v3106 = vunpack.c.l.b16 %v2829
        %v3107 = vunpack.c.h.b16 %v2829
        %v3108 = vunpack.c.l.b16 %v2830
        %v3109 = vunpack.c.h.b16 %v2830
        %v3110 = vunpack.c.l.b16 %v2831
        %v3111 = vunpack.c.h.b16 %v2831
        %v3112 = vunpack.c.l.b16 %v2832
        %v3113 = vunpack.c.h.b16 %v2832
        %v3114 = vunpack.c.l.b16 %v2833
        %v3115 = vunpack.c.h.b16 %v2833
        %v3116 = vunpack.c.l.b16 %v2834
        %v3117 = vunpack.c.h.b16 %v2834
        %v3118 = vunpack.c.l.b16 %v2835
        %v3119 = vunpack.c.h.b16 %v2835
        %v3120 = vunpack.c.l.b16 %v2836
        %v3121 = vunpack.c.h.b16 %v2836
        %v3122 = vunpack.c.l.b16 %v2837
        %v3123 = vunpack.c.h.b16 %v2837
        %v3124 = vunpack.c.l.b16 %v2838
        %v3125 = vunpack.c.h.b16 %v2838
        %v3126 = vunpack.c.l.b16 %v2839
        %v3127 = vunpack.c.h.b16 %v2839
        %v3128 = vunpack.c.l.b16 %v2840
        %v3129 = vunpack.c.h.b16 %v2840
        %v3130 = vunpack.c.l.b16 %v2841
        %v3131 = vunpack.c.h.b16 %v2841
        %v3132 = vunpack.c.l.b16 %v2842
        %v3133 = vunpack.c.h.b16 %v2842
        %v3134 = vunpack.c.l.b16 %v2843
        %v3135 = vunpack.c.h.b16 %v2843
        %v3136 = vunpack.c.l.b16 %v2844
        %v3137 = vunpack.c.h.b16 %v2844
        %v3138 = vunpack.c.l.b16 %v2845
        %v3139 = vunpack.c.h.b16 %v2845
        %v3140 = vunpack.c.l.b16 %v2846
        %v3141 = vunpack.c.h.b16 %v2846
        %v3142 = vunpack.c.l.b16 %v2847
        %v3143 = vunpack.c.h.b16 %v2847
        %v3144 = vunpack.c.l.b16 %v2848
        %v3145 = vunpack.c.h.b16 %v2848
        %v3146 = vunpack.c.l.b16 %v2849
        %v3147 = vunpack.c.h.b16 %v2849
        %v3148 = vunpack.c.l.b16 %v2850
        %v3149 = vunpack.c.h.b16 %v2850
        %v3150 = vunpack.c.l.b16 %v2851
        %v3151 = vunpack.c.h.b16 %v2851
        %v3152 = vunpack.c.l.b16 %v2852
        %v3153 = vunpack.c.h.b16 %v2852
        %v3154 = vunpack.c.l.b16 %v2853
        %v3155 = vunpack.c.h.b16 %v2853
        %v3156 = vunpack.c.l.b16 %v2854
        %v3157 = vunpack.c.h.b16 %v2854
        %v3158 = vunpack.c.l.b16 %v2855
        %v3159 = vunpack.c.h.b16 %v2855
        %v3160 = vunpack.c.l.b16 %v2856
        %v3161 = vunpack.c.h.b16 %v2856
        %v3162 = vunpack.c.l.b16 %v2857
        %v3163 = vunpack.c.h.b16 %v2857
        %v3164 = vunpack.c.l.b16 %v2858
        %v3165 = vunpack.c.h.b16 %v2858
        %v3166 = vunpack.c.l.b16 %v2859
        %v3167 = vunpack.c.h.b16 %v2859
        %v3168 = vunpack.c.l.b16 %v2860
        %v3169 = vunpack.c.h.b16 %v2860
        %v3170 = vunpack.c.l.b16 %v2861
        %v3171 = vunpack.c.h.b16 %v2861
        %v3172 = vunpack.c.l.b16 %v2862
        %v3173 = vunpack.c.h.b16 %v2862
        %v3174 = vunpack.c.l.b16 %v2863
        %v3175 = vunpack.c.h.b16 %v2863
        %v3176 = vunpack.c.l.b16 %v2864
        %v3177 = vunpack.c.h.b16 %v2864
        %v3178 = vunpack.c.l.b16 %v2865
        %v3179 = vunpack.c.h.b16 %v2865
        %v3180 = vunpack.c.l.b16 %v2866
        %v3181 = vunpack.c.h.b16 %v2866
        %v3182 = vunpack.c.l.b16 %v2867
        %v3183 = vunpack.c.h.b16 %v2867
        %v3184 = vunpack.c.l.b16 %v2868
        %v3185 = vunpack.c.h.b16 %v2868
        %v3186 = vunpack.c.l.b16 %v2869
        %v3187 = vunpack.c.h.b16 %v2869
        %v3188 = vunpack.c.l.b16 %v2870
        %v3189 = vunpack.c.h.b16 %v2870
        %v3190 = vunpack.c.l.b16 %v2871
        %v3191 = vunpack.c.h.b16 %v2871
        %v3192 = vunpack.c.l.b16 %v2872
        %v3193 = vunpack.c.h.b16 %v2872
        %v3194 = vunpack.c.l.b16 %v2873
        %v3195 = vunpack.c.h.b16 %v2873
        %v3196 = vunpack.c.l.b16 %v2874
        %v3197 = vunpack.c.h.b16 %v2874
        %v3198 = vunpack.c.l.b16 %v2875
        %v3199 = vunpack.c.h.b16 %v2875
        %v3200 = vunpack.c.l.b16 %v2876
        %v3201 = vunpack.c.h.b16 %v2876
        %v3202 = vunpack.c.l.b16 %v2877
        %v3203 = vunpack.c.h.b16 %v2877
        %v3204 = vunpack.c.l.b16 %v2878
        %v3205 = vunpack.c.h.b16 %v2878
        %v3206 = vunpack.c.l.b16 %v2879
        %v3207 = vunpack.c.h.b16 %v2879
        %v3208 = vunpack.c.l.b16 %v2880
        %v3209 = vunpack.c.h.b16 %v2880
        %v3210 = vunpack.c.l.b16 %v2881
        %v3211 = vunpack.c.h.b16 %v2881
        %v3212 = vunpack.c.l.b16 %v2882
        %v3213 = vunpack.c.h.b16 %v2882
        %v3214 = vunpack.c.l.b16 %v2883
        %v3215 = vunpack.c.h.b16 %v2883
        %v3216 = vunpack.c.l.b16 %v2884
        %v3217 = vunpack.c.h.b16 %v2884
        %v3218 = vunpack.c.l.b16 %v2885
        %v3219 = vunpack.c.h.b16 %v2885
        %v3220 = vunpack.c.l.b16 %v2886
        %v3221 = vunpack.c.h.b16 %v2886
        %v3222 = vunpack.c.l.b16 %v2887
        %v3223 = vunpack.c.h.b16 %v2887
        %v3224 = vunpack.c.l.b16 %v2888
        %v3225 = vunpack.c.h.b16 %v2888
        %v3226 = vunpack.c.l.b16 %v2889
        %v3227 = vunpack.c.h.b16 %v2889
        %v3228 = vunpack.c.l.b16 %v2890
        %v3229 = vunpack.c.h.b16 %v2890
        %v3230 = vunpack.c.l.b16 %v2891
        %v3231 = vunpack.c.h.b16 %v2891
        %v3232 = vunpack.c.l.b16 %v2892
        %v3233 = vunpack.c.h.b16 %v2892
        %v3234 = vunpack.c.l.b16 %v2893
        %v3235 = vunpack.c.h.b16 %v2893
        %v3236 = vunpack.c.l.b16 %v2894
        %v3237 = vunpack.c.h.b16 %v2894
        %v3238 = vunpack.c.l.b16 %v2895
        %v3239 = vunpack.c.h.b16 %v2895
        %v3240 = vunpack.c.l.b16 %v2896
        %v3241 = vunpack.c.h.b16 %v2896
        %v3242 = vpack.c.b16 %v3034, %v3026
        %v3243 = vpack.c.b16 %v3035, %v3027
        %v3244 = vpack.c.b16 %v3036, %v3028
        %v3245 = vpack.c.b16 %v3037, %v3029
        %v3246 = vpack.c.b16 %v3038, %v3030
        %v3247 = vpack.c.b16 %v3039, %v3031
        %v3248 = vpack.c.b16 %v3040, %v3032
        %v3249 = vpack.c.b16 %v3041, %v3033
        %v3250 = vpack.c.b16 %v3050, %v3042
        %v3251 = vpack.c.b16 %v3051, %v3043
        %v3252 = vpack.c.b16 %v3052, %v3044
        %v3253 = vpack.c.b16 %v3053, %v3045
        %v3254 = vpack.c.b16 %v3054, %v3046
        %v3255 = vpack.c.b16 %v3055, %v3047
        %v3256 = vpack.c.b16 %v3056, %v3048
        %v3257 = vpack.c.b16 %v3057, %v3049
        %v3258 = vpack.c.b16 %v3066, %v3058
        %v3259 = vpack.c.b16 %v3067, %v3059
        %v3260 = vpack.c.b16 %v3068, %v3060
        %v3261 = vpack.c.b16 %v3069, %v3061
        %v3262 = vpack.c.b16 %v3070, %v3062
        %v3263 = vpack.c.b16 %v3071, %v3063
        %v3264 = vpack.c.b16 %v3072, %v3064
        %v3265 = vpack.c.b16 %v3073, %v3065
        %v3266 = vpack.c.b16 %v3082, %v3074
        %v3267 = vpack.c.b16 %v3083, %v3075
        %v3268 = vpack.c.b16 %v3084, %v3076
        %v3269 = vpack.c.b16 %v3085, %v3077
        %v3270 = vpack.c.b16 %v3086, %v3078
        %v3271 = vpack.c.b16 %v3087, %v3079
        %v3272 = vpack.c.b16 %v3088, %v3080
        %v3273 = vpack.c.b16 %v3089, %v3081
        %v3274 = vpack.c.b16 %v3098, %v3090
        %v3275 = vpack.c.b16 %v3099, %v3091
        %v3276 = vpack.c.b16 %v3100, %v3092
        %v3277 = vpack.c.b16 %v3101, %v3093
        %v3278 = vpack.c.b16 %v3102, %v3094
        %v3279 = vpack.c.b16 %v3103, %v3095
        %v3280 = vpack.c.b16 %v3104, %v3096
        %v3281 = vpack.c.b16 %v3105, %v3097
        %v3282 = vpack.c.b16 %v3114, %v3106
        %v3283 = vpack.c.b16 %v3115, %v3107
        %v3284 = vpack.c.b16 %v3116, %v3108
        %v3285 = vpack.c.b16 %v3117, %v3109
        %v3286 = vpack.c.b16 %v3118, %v3110
        %v3287 = vpack.c.b16 %v3119, %v3111
        %v3288 = vpack.c.b16 %v3120, %v3112
        %v3289 = vpack.c.b16 %v3121, %v3113
        %v3290 = vpack.c.b16 %v3130, %v3122
        %v3291 = vpack.c.b16 %v3131, %v3123
        %v3292 = vpack.c.b16 %v3132, %v3124
        %v3293 = vpack.c.b16 %v3133, %v3125
        %v3294 = vpack.c.b16 %v3134, %v3126
        %v3295 = vpack.c.b16 %v3135, %v3127
        %v3296 = vpack.c.b16 %v3136, %v3128
        %v3297 = vpack.c.b16 %v3137, %v3129
        %v3298 = vpack.c.b16 %v3146, %v3138
        %v3299 = vpack.c.b16 %v3147, %v3139
        %v3300 = vpack.c.b16 %v3148, %v3140
        %v3301 = vpack.c.b16 %v3149, %v3141
        %v3302 = vpack.c.b16 %v3150, %v3142
        %v3303 = vpack.c.b16 %v3151, %v3143
        %v3304 = vpack.c.b16 %v3152, %v3144
        %v3305 = vpack.c.b16 %v3153, %v3145
        %v3306 = vpack.c.b16 %v3162, %v3154
        %v3307 = vpack.c.b16 %v3163, %v3155
        %v3308 = vpack.c.b16 %v3164, %v3156
        %v3309 = vpack.c.b16 %v3165, %v3157
        %v3310 = vpack.c.b16 %v3166, %v3158
        %v3311 = vpack.c.b16 %v3167, %v3159
        %v3312 = vpack.c.b16 %v3168, %v3160
        %v3313 = vpack.c.b16 %v3169, %v3161
        %v3314 = vpack.c.b16 %v3178, %v3170
        %v3315 = vpack.c.b16 %v3179, %v3171
        %v3316 = vpack.c.b16 %v3180, %v3172
        %v3317 = vpack.c.b16 %v3181, %v3173
        %v3318 = vpack.c.b16 %v3182, %v3174
        %v3319 = vpack.c.b16 %v3183, %v3175
        %v3320 = vpack.c.b16 %v3184, %v3176
        %v3321 = vpack.c.b16 %v3185, %v3177
        %v3322 = vpack.c.b16 %v3194, %v3186
        %v3323 = vpack.c.b16 %v3195, %v3187
        %v3324 = vpack.c.b16 %v3196, %v3188
        %v3325 = vpack.c.b16 %v3197, %v3189
        %v3326 = vpack.c.b16 %v3198, %v3190
        %v3327 = vpack.c.b16 %v3199, %v3191
        %v3328 = vpack.c.b16 %v3200, %v3192
        %v3329 = vpack.c.b16 %v3201, %v3193
        %v3330 = vpack.c.b16 %v3210, %v3202
        %v3331 = vpack.c.b16 %v3211, %v3203
        %v3332 = vpack.c.b16 %v3212, %v3204
        %v3333 = vpack.c.b16 %v3213, %v3205
        %v3334 = vpack.c.b16 %v3214, %v3206
        %v3335 = vpack.c.b16 %v3215, %v3207
        %v3336 = vpack.c.b16 %v3216, %v3208
        %v3337 = vpack.c.b16 %v3217, %v3209
        %v3338 = vpack.c.b16 %v3226, %v3218
        %v3339 = vpack.c.b16 %v3227, %v3219
        %v3340 = vpack.c.b16 %v3228, %v3220
        %v3341 = vpack.c.b16 %v3229, %v3221
        %v3342 = vpack.c.b16 %v3230, %v3222
        %v3343 = vpack.c.b16 %v3231, %v3223
        %v3344 = vpack.c.b16 %v3232, %v3224
        %v3345 = vpack.c.b16 %v3233, %v3225
        %v3346 = vpack.c.b16 %v3234, %v3234
        %v3347 = vpack.c.b16 %v3235, %v3235
        %v3348 = vpack.c.b16 %v3236, %v3236
        %v3349 = vpack.c.b16 %v3237, %v3237
        %v3350 = vpack.c.b16 %v3238, %v3238
        %v3351 = vpack.c.b16 %v3239, %v3239
        %v3352 = vpack.c.b16 %v3240, %v3240
        %v3353 = vpack.c.b16 %v3241, %v3241
        %vm3458 = vcmask 719872
        %v3460 = vsel %vm3458, %v2916, 0
        %v3463 = vsel %vm422, %v3346, 0
        %v3466 = vsel %vm422, %v3347, 0
        %v3469 = vsel %vm422, %v3348, 0
        %v3472 = vsel %vm422, %v3349, 0
        %v3475 = vsel %vm422, %v3350, 0
        %v3478 = vsel %vm422, %v3351, 0
        %v3481 = vsel %vm422, %v3352, 0
        %v3484 = vsel %vm422, %v3353, 0
        %3486 = vmatprep.subr.bf16.mxu0 %v3243
        %3487 = vmatpush1.bf16.msra.mxu0 %v3242
        %3488 = vmatprep.subr.bf16.mxu0 %v3251
        %3489 = vmatpush1.bf16.msra.mxu0 %v3250
        %3490 = vmatprep.subr.bf16.mxu0 %v3259
        %3491 = vmatpush1.bf16.msra.mxu0 %v3258
        %3492 = vmatprep.subr.bf16.mxu0 %v3267
        %3493 = vmatpush1.bf16.msra.mxu0 %v3266
        %3494 = vmatprep.subr.bf16.mxu0 %v3275
        %3495 = vmatpush1.bf16.msra.mxu0 %v3274
        %3496 = vmatprep.subr.bf16.mxu0 %v3283
        %3497 = vmatpush1.bf16.msra.mxu0 %v3282
        %3498 = vmatprep.subr.bf16.mxu0 %v3291
        %3499 = vmatpush1.bf16.msra.mxu0 %v3290
        %3500 = vmatprep.subr.bf16.mxu0 %v3299
        %3501 = vmatpush1.bf16.msra.mxu0 %v3298
        %3502 = vmatprep.subr.bf16.mxu0 %v3307
        %3503 = vmatpush1.bf16.msra.mxu0 %v3306
        %3504 = vmatprep.subr.bf16.mxu0 %v3315
        %3505 = vmatpush1.bf16.msra.mxu0 %v3314
        %3506 = vmatprep.subr.bf16.mxu0 %v3323
        %3507 = vmatpush1.bf16.msra.mxu0 %v3322
        %3508 = vmatprep.subr.bf16.mxu0 %v3331
        %3509 = vmatpush1.bf16.msra.mxu0 %v3330
        %3510 = vmatprep.subr.bf16.mxu0 %v3339
        %3511 = vmatpush1.bf16.msra.mxu0 %v3338
        %3512 = vmatprep.subr.bf16.mxu0 %v3466
        %3513 = vmatpush1.bf16.msra.mxu0 %v3463
        %3514 = vmatprep.subr.bf16.mxu0 0
        %3515 = vmatpush1.bf16.msra.mxu0 0
        %3516 = vmatprep.subr.bf16.mxu0 0
        %3517 = vmatpush1.bf16.msra.mxu0 0
        %3518 = vmatprep.mubr.bf16.mxu0 %v3460
        %3519 = vmatmul.mubr.bf16.gmra.mrb[0].mxu0 %v2915
        %v3520 = vpop.f32.mrb[0].mxu0
        %v3521 = vadd.f32 %v2902, %v3520
        %v3522 = vpop.f32.mrb[0].mxu0
        %v3523 = vadd.f32 %v2902, %v3522
        %v3524 = vpop.f32.mrb[0].mxu0
        %v3525 = vadd.f32 %v2907, %v3524
        %v3526 = vpop.f32.mrb[0].mxu0
        %v3527 = vadd.f32 %v2907, %v3526
        %3528 = vdwg.mxu0
        %3529 = vmatprep.subr.bf16.mxu0 %v3245
        %3530 = vmatpush1.bf16.msra.mxu0 %v3244
        %3531 = vmatprep.subr.bf16.mxu0 %v3253
        %3532 = vmatpush1.bf16.msra.mxu0 %v3252
        %3533 = vmatprep.subr.bf16.mxu0 %v3261
        %3534 = vmatpush1.bf16.msra.mxu0 %v3260
        %3535 = vmatprep.subr.bf16.mxu0 %v3269
        %3536 = vmatpush1.bf16.msra.mxu0 %v3268
        %3537 = vmatprep.subr.bf16.mxu0 %v3277
        %3538 = vmatpush1.bf16.msra.mxu0 %v3276
        %3539 = vmatprep.subr.bf16.mxu0 %v3285
        %3540 = vmatpush1.bf16.msra.mxu0 %v3284
        %3541 = vmatprep.subr.bf16.mxu0 %v3293
        %3542 = vmatpush1.bf16.msra.mxu0 %v3292
        %3543 = vmatprep.subr.bf16.mxu0 %v3301
        %3544 = vmatpush1.bf16.msra.mxu0 %v3300
        %3545 = vmatprep.subr.bf16.mxu0 %v3309
        %3546 = vmatpush1.bf16.msra.mxu0 %v3308
        %3547 = vmatprep.subr.bf16.mxu0 %v3317
        %3548 = vmatpush1.bf16.msra.mxu0 %v3316
        %3549 = vmatprep.subr.bf16.mxu0 %v3325
        %3550 = vmatpush1.bf16.msra.mxu0 %v3324
        %3551 = vmatprep.subr.bf16.mxu0 %v3333
        %3552 = vmatpush1.bf16.msra.mxu0 %v3332
        %3553 = vmatprep.subr.bf16.mxu0 %v3341
        %3554 = vmatpush1.bf16.msra.mxu0 %v3340
        %3555 = vmatprep.subr.bf16.mxu0 %v3472
        %3556 = vmatpush1.bf16.msra.mxu0 %v3469
        %3557 = vmatprep.subr.bf16.mxu0 0
        %3558 = vmatpush1.bf16.msra.mxu0 0
        %3559 = vmatprep.subr.bf16.mxu0 0
        %3560 = vmatpush1.bf16.msra.mxu0 0
        %3561 = vmatprep.mubr.bf16.mxu0 %v3460
        %3562 = vmatmul.mubr.bf16.gmra.mrb[0].mxu0 %v2915
        %v3563 = vpop.f32.mrb[0].mxu0
        %v3564 = vadd.f32 %v2902, %v3563
        %v3565 = vpop.f32.mrb[0].mxu0
        %v3566 = vadd.f32 %v2902, %v3565
        %v3567 = vpop.f32.mrb[0].mxu0
        %v3568 = vadd.f32 %v2907, %v3567
        %v3569 = vpop.f32.mrb[0].mxu0
        %v3570 = vadd.f32 %v2907, %v3569
        %3571 = vdwg.mxu0
        %3572 = vmatprep.subr.bf16.mxu0 %v3247
        %3573 = vmatpush1.bf16.msra.mxu0 %v3246
        %3574 = vmatprep.subr.bf16.mxu0 %v3255
        %3575 = vmatpush1.bf16.msra.mxu0 %v3254
        %3576 = vmatprep.subr.bf16.mxu0 %v3263
        %3577 = vmatpush1.bf16.msra.mxu0 %v3262
        %3578 = vmatprep.subr.bf16.mxu0 %v3271
        %3579 = vmatpush1.bf16.msra.mxu0 %v3270
        %3580 = vmatprep.subr.bf16.mxu0 %v3279
        %3581 = vmatpush1.bf16.msra.mxu0 %v3278
        %3582 = vmatprep.subr.bf16.mxu0 %v3287
        %3583 = vmatpush1.bf16.msra.mxu0 %v3286
        %3584 = vmatprep.subr.bf16.mxu0 %v3295
        %3585 = vmatpush1.bf16.msra.mxu0 %v3294
        %3586 = vmatprep.subr.bf16.mxu0 %v3303
        %3587 = vmatpush1.bf16.msra.mxu0 %v3302
        %3588 = vmatprep.subr.bf16.mxu0 %v3311
        %3589 = vmatpush1.bf16.msra.mxu0 %v3310
        %3590 = vmatprep.subr.bf16.mxu0 %v3319
        %3591 = vmatpush1.bf16.msra.mxu0 %v3318
        %3592 = vmatprep.subr.bf16.mxu0 %v3327
        %3593 = vmatpush1.bf16.msra.mxu0 %v3326
        %3594 = vmatprep.subr.bf16.mxu0 %v3335
        %3595 = vmatpush1.bf16.msra.mxu0 %v3334
        %3596 = vmatprep.subr.bf16.mxu0 %v3343
        %3597 = vmatpush1.bf16.msra.mxu0 %v3342
        %3598 = vmatprep.subr.bf16.mxu0 %v3478
        %3599 = vmatpush1.bf16.msra.mxu0 %v3475
        %3600 = vmatprep.subr.bf16.mxu0 0
        %3601 = vmatpush1.bf16.msra.mxu0 0
        %3602 = vmatprep.subr.bf16.mxu0 0
        %3603 = vmatpush1.bf16.msra.mxu0 0
        %3604 = vmatprep.mubr.bf16.mxu0 %v3460
        %3605 = vmatmul.mubr.bf16.gmra.mrb[0].mxu0 %v2915
        %v3606 = vpop.f32.mrb[0].mxu0
        %v3607 = vadd.f32 %v2902, %v3606
        %v3608 = vpop.f32.mrb[0].mxu0
        %v3609 = vadd.f32 %v2902, %v3608
        %v3610 = vpop.f32.mrb[0].mxu0
        %v3611 = vadd.f32 %v2907, %v3610
        %v3612 = vpop.f32.mrb[0].mxu0
        %v3613 = vadd.f32 %v2907, %v3612
        %3614 = vdwg.mxu0
        %3615 = vmatprep.subr.bf16.mxu0 %v3249
        %3616 = vmatpush1.bf16.msra.mxu0 %v3248
        %3617 = vmatprep.subr.bf16.mxu0 %v3257
        %3618 = vmatpush1.bf16.msra.mxu0 %v3256
        %3619 = vmatprep.subr.bf16.mxu0 %v3265
        %3620 = vmatpush1.bf16.msra.mxu0 %v3264
        %3621 = vmatprep.subr.bf16.mxu0 %v3273
        %3622 = vmatpush1.bf16.msra.mxu0 %v3272
        %3623 = vmatprep.subr.bf16.mxu0 %v3281
        %3624 = vmatpush1.bf16.msra.mxu0 %v3280
        %3625 = vmatprep.subr.bf16.mxu0 %v3289
        %3626 = vmatpush1.bf16.msra.mxu0 %v3288
        %3627 = vmatprep.subr.bf16.mxu0 %v3297
        %3628 = vmatpush1.bf16.msra.mxu0 %v3296
        %3629 = vmatprep.subr.bf16.mxu0 %v3305
        %3630 = vmatpush1.bf16.msra.mxu0 %v3304
        %3631 = vmatprep.subr.bf16.mxu0 %v3313
        %3632 = vmatpush1.bf16.msra.mxu0 %v3312
        %3633 = vmatprep.subr.bf16.mxu0 %v3321
        %3634 = vmatpush1.bf16.msra.mxu0 %v3320
        %3635 = vmatprep.subr.bf16.mxu0 %v3329
        %3636 = vmatpush1.bf16.msra.mxu0 %v3328
        %3637 = vmatprep.subr.bf16.mxu0 %v3337
        %3638 = vmatpush1.bf16.msra.mxu0 %v3336
        %3639 = vmatprep.subr.bf16.mxu0 %v3345
        %3640 = vmatpush1.bf16.msra.mxu0 %v3344
        %3641 = vmatprep.subr.bf16.mxu0 %v3484
        %3642 = vmatpush1.bf16.msra.mxu0 %v3481
        %3643 = vmatprep.subr.bf16.mxu0 0
        %3644 = vmatpush1.bf16.msra.mxu0 0
        %3645 = vmatprep.subr.bf16.mxu0 0
        %3646 = vmatpush1.bf16.msra.mxu0 0
        %3647 = vmatprep.mubr.bf16.mxu0 %v3460
        %3648 = vmatmul.mubr.bf16.gmra.mrb[0].mxu0 %v2915
        %v3649 = vpop.f32.mrb[0].mxu0
        %v3650 = vadd.f32 %v2902, %v3649
        %v3651 = vpop.f32.mrb[0].mxu0
        %v3652 = vadd.f32 %v2902, %v3651
        %v3653 = vpop.f32.mrb[0].mxu0
        %v3654 = vadd.f32 %v2907, %v3653
        %v3655 = vpop.f32.mrb[0].mxu0
        %v3656 = vadd.f32 %v2907, %v3655
        %3657 = vdwg.mxu0
        %v3658 = vxor.u32 %v3521, 2147483648
        %v3659 = vxor.u32 %v3523, 2147483648
        %v3660 = vxor.u32 %v3564, 2147483648
        %v3661 = vxor.u32 %v3566, 2147483648
        %v3662 = vxor.u32 %v3607, 2147483648
        %v3663 = vxor.u32 %v3609, 2147483648
        %v3664 = vxor.u32 %v3650, 2147483648
        %v3665 = vxor.u32 %v3652, 2147483648
        %v3666 = vxor.u32 %v3525, 2147483648
        %v3667 = vxor.u32 %v3527, 2147483648
        %v3668 = vxor.u32 %v3568, 2147483648
        %v3669 = vxor.u32 %v3570, 2147483648
        %v3670 = vxor.u32 %v3611, 2147483648
        %v3671 = vxor.u32 %v3613, 2147483648
        %v3672 = vxor.u32 %v3654, 2147483648
        %v3673 = vxor.u32 %v3656, 2147483648
        %v3674 = vmul.f32 %v3658, 1.442695
        %v3675 = vpow.pop %v3674
        %v3676 = vmul.f32 %v3659, 1.442695
        %v3677 = vpow.pop %v3676
        %v3678 = vmul.f32 %v3660, 1.442695
        %v3679 = vpow.pop %v3678
        %v3680 = vmul.f32 %v3661, 1.442695
        %v3681 = vpow.pop %v3680
        %v3682 = vmul.f32 %v3662, 1.442695
        %v3683 = vpow.pop %v3682
        %v3684 = vmul.f32 %v3663, 1.442695
        %v3685 = vpow.pop %v3684
        %v3686 = vmul.f32 %v3664, 1.442695
        %v3687 = vpow.pop %v3686
        %v3688 = vmul.f32 %v3665, 1.442695
        %v3689 = vpow.pop %v3688
        %v3690 = vmul.f32 %v3666, 1.442695
        %v3691 = vpow.pop %v3690
        %v3692 = vmul.f32 %v3667, 1.442695
        %v3693 = vpow.pop %v3692
        %v3694 = vmul.f32 %v3668, 1.442695
        %v3695 = vpow.pop %v3694
        %v3696 = vmul.f32 %v3669, 1.442695
        %v3697 = vpow.pop %v3696
        %v3698 = vmul.f32 %v3670, 1.442695
        %v3699 = vpow.pop %v3698
        %v3700 = vmul.f32 %v3671, 1.442695
        %v3701 = vpow.pop %v3700
        %v3702 = vmul.f32 %v3672, 1.442695
        %v3703 = vpow.pop %v3702
        %v3704 = vmul.f32 %v3673, 1.442695
        %v3705 = vpow.pop %v3704
        %v3706 = vadd.f32 %v3675, 1.0
        %v3707 = vadd.f32 %v3677, 1.0
        %v3708 = vadd.f32 %v3679, 1.0
        %v3709 = vadd.f32 %v3681, 1.0
        %v3710 = vadd.f32 %v3683, 1.0
        %v3711 = vadd.f32 %v3685, 1.0
        %v3712 = vadd.f32 %v3687, 1.0
        %v3713 = vadd.f32 %v3689, 1.0
        %v3714 = vadd.f32 %v3691, 1.0
        %v3715 = vadd.f32 %v3693, 1.0
        %v3716 = vadd.f32 %v3695, 1.0
        %v3717 = vadd.f32 %v3697, 1.0
        %v3718 = vadd.f32 %v3699, 1.0
        %v3719 = vadd.f32 %v3701, 1.0
        %v3720 = vadd.f32 %v3703, 1.0
        %v3721 = vadd.f32 %v3705, 1.0
        %v3722 = vrcp.pop %v3706
        %v3723 = vmul.f32 1.0, %v3722
        %v3724 = vrcp.pop %v3707
        %v3725 = vmul.f32 1.0, %v3724
        %v3726 = vrcp.pop %v3708
        %v3727 = vmul.f32 1.0, %v3726
        %v3728 = vrcp.pop %v3709
        %v3729 = vmul.f32 1.0, %v3728
        %v3730 = vrcp.pop %v3710
        %v3731 = vmul.f32 1.0, %v3730
        %v3732 = vrcp.pop %v3711
        %v3733 = vmul.f32 1.0, %v3732
        %v3734 = vrcp.pop %v3712
        %v3735 = vmul.f32 1.0, %v3734
        %v3736 = vrcp.pop %v3713
        %v3737 = vmul.f32 1.0, %v3736
        %v3738 = vrcp.pop %v3714
        %v3739 = vmul.f32 1.0, %v3738
        %v3740 = vrcp.pop %v3715
        %v3741 = vmul.f32 1.0, %v3740
        %v3742 = vrcp.pop %v3716
        %v3743 = vmul.f32 1.0, %v3742
        %v3744 = vrcp.pop %v3717
        %v3745 = vmul.f32 1.0, %v3744
        %v3746 = vrcp.pop %v3718
        %v3747 = vmul.f32 1.0, %v3746
        %v3748 = vrcp.pop %v3719
        %v3749 = vmul.f32 1.0, %v3748
        %v3750 = vrcp.pop %v3720
        %v3751 = vmul.f32 1.0, %v3750
        %v3752 = vrcp.pop %v3721
        %v3753 = vmul.f32 1.0, %v3752
        %v3754 = vtanh.pop %v3525
        %v3755 = vtanh.pop %v3527
        %v3756 = vtanh.pop %v3568
        %v3757 = vtanh.pop %v3570
        %v3758 = vtanh.pop %v3611
        %v3759 = vtanh.pop %v3613
        %v3760 = vtanh.pop %v3654
        %v3761 = vtanh.pop %v3656
        %v3766 = vcombine.low %v307, %v307
        %v3767 = vcombine.low %v308, %v308
        %v3768 = vcombine.low %v309, %v309
        %v3769 = vcombine.low %v310, %v310
        %v3774 = vmul.f32 %v3723, %v3766
        %v3775 = vmul.f32 %v3725, %v307
        %v3776 = vmul.f32 %v3727, %v3767
        %v3777 = vmul.f32 %v3729, %v308
        %v3778 = vmul.f32 %v3731, %v3768
        %v3779 = vmul.f32 %v3733, %v309
        %v3780 = vmul.f32 %v3735, %v3769
        %v3781 = vmul.f32 %v3737, %v310
        %v3790 = vrot.slane %v3754, 4
        %v3791 = vrot.slane %v3755, 4
        %v3792 = vrot.slane %v3756, 4
        %v3793 = vrot.slane %v3757, 4
        %v3794 = vrot.slane %v3758, 4
        %v3795 = vrot.slane %v3759, 4
        %v3796 = vrot.slane %v3760, 4
        %v3797 = vrot.slane %v3761, 4
        %v3806 = vmul.f32 %v3723, %v3790
        %v3807 = vmul.f32 %v3725, %v3791
        %v3808 = vmul.f32 %v3727, %v3792
        %v3809 = vmul.f32 %v3729, %v3793
        %v3810 = vmul.f32 %v3731, %v3794
        %v3811 = vmul.f32 %v3733, %v3795
        %v3812 = vmul.f32 %v3735, %v3796
        %v3813 = vmul.f32 %v3737, %v3797
        %v3822 = vrot.slane %v3806, 4
        %v3823 = vrot.slane %v3807, 4
        %v3824 = vrot.slane %v3808, 4
        %v3825 = vrot.slane %v3809, 4
        %v3826 = vrot.slane %v3810, 4
        %v3827 = vrot.slane %v3811, 4
        %v3828 = vrot.slane %v3812, 4
        %v3829 = vrot.slane %v3813, 4
        %v3838 = vadd.f32 %v3774, %v3822
        %v3839 = vadd.f32 %v3775, %v3823
        %v3840 = vadd.f32 %v3776, %v3824
        %v3841 = vadd.f32 %v3777, %v3825
        %v3842 = vadd.f32 %v3778, %v3826
        %v3843 = vadd.f32 %v3779, %v3827
        %v3844 = vadd.f32 %v3780, %v3828
        %v3845 = vadd.f32 %v3781, %v3829
        %v3846 = vtanh.pop %v3838
        %v3847 = vtanh.pop %v3839
        %v3848 = vtanh.pop %v3840
        %v3849 = vtanh.pop %v3841
        %v3850 = vtanh.pop %v3842
        %v3851 = vtanh.pop %v3843
        %v3852 = vtanh.pop %v3844
        %v3853 = vtanh.pop %v3845
        %v3862 = vrot.slane %v3846, 4
        %v3863 = vrot.slane %v3847, 4
        %v3864 = vrot.slane %v3848, 4
        %v3865 = vrot.slane %v3849, 4
        %v3866 = vrot.slane %v3850, 4
        %v3867 = vrot.slane %v3851, 4
        %v3868 = vrot.slane %v3852, 4
        %v3869 = vrot.slane %v3853, 4
        %v3878 = vmul.f32 %v3739, %v3862
        %v3879 = vmul.f32 %v3741, %v3863
        %v3880 = vmul.f32 %v3743, %v3864
        %v3881 = vmul.f32 %v3745, %v3865
        %v3882 = vmul.f32 %v3747, %v3866
        %v3883 = vmul.f32 %v3749, %v3867
        %v3884 = vmul.f32 %v3751, %v3868
        %v3885 = vmul.f32 %v3753, %v3869
        %v3887 = vlaneseq
        %v3888 = vshrl.u32 %v3887, 7
        %v3889 = vsub.s32 0, %v3888
        %v3890 = vrot.slane %v211, %v3889
        %v3891 = vlaneseq
        %v3892 = vshrl.u32 %v3891, 7
        %v3893 = vsub.s32 1, %v3892
        %v3894 = vrot.slane %v211, %v3893
        %v3895 = vlaneseq
        %v3896 = vshrl.u32 %v3895, 7
        %v3897 = vsub.s32 2, %v3896
        %v3898 = vrot.slane %v211, %v3897
        %v3899 = vlaneseq
        %v3900 = vshrl.u32 %v3899, 7
        %v3901 = vsub.s32 3, %v3900
        %v3902 = vrot.slane %v211, %v3901
        %v3903 = vlaneseq
        %v3904 = vshrl.u32 %v3903, 7
        %v3905 = vsub.s32 4, %v3904
        %v3906 = vrot.slane %v211, %v3905
        %v3907 = vlaneseq
        %v3908 = vshrl.u32 %v3907, 7
        %v3909 = vsub.s32 5, %v3908
        %v3910 = vrot.slane %v211, %v3909
        %v3911 = vlaneseq
        %v3912 = vshrl.u32 %v3911, 7
        %v3913 = vsub.s32 6, %v3912
        %v3914 = vrot.slane %v211, %v3913
        %v3915 = vlaneseq
        %v3916 = vshrl.u32 %v3915, 7
        %v3917 = vsub.s32 7, %v3916
        %v3918 = vrot.slane %v211, %v3917
        %v3927 = vmul.f32 %v3878, %v3890
        %v3928 = vmul.f32 %v3879, %v3894
        %v3929 = vmul.f32 %v3880, %v3898
        %v3930 = vmul.f32 %v3881, %v3902
        %v3931 = vmul.f32 %v3882, %v3906
        %v3932 = vmul.f32 %v3883, %v3910
        %v3933 = vmul.f32 %v3884, %v3914
        %v3934 = vmul.f32 %v3885, %v3918
        %v3943 = vcombine.low %v3927, %v3928
        %v3944 = vcombine.low %v3929, %v3930
        %v3945 = vcombine.low %v3931, %v3932
        %v3946 = vcombine.low %v3933, %v3934
        %3951 = vst [vmem:[#allocation2] sm:$0xff] %v3943
        %3952 = vst [vmem:[#allocation2 + $0x8] sm:$0xff] %v3944
        %3953 = vst [vmem:[#allocation2 + $0x10] sm:$0xff] %v3945
        %3954 = vst [vmem:[#allocation2 + $0x18] sm:$0xff] %v3946
        %v3963 = vcombine.high %v3838, %v3839
        %v3964 = vcombine.high %v3840, %v3841
        %v3965 = vcombine.high %v3842, %v3843
        %v3966 = vcombine.high %v3844, %v3845
        %3971 = vst [vmem:[#allocation3] sm:$0xff] %v3963
        %3972 = vst [vmem:[#allocation3 + $0x8] sm:$0xff] %v3964
        %3973 = vst [vmem:[#allocation3 + $0x10] sm:$0xff] %v3965
        %3974 = vst [vmem:[#allocation3 + $0x18] sm:$0xff] %v3966
        %v3975 = vsel %vm422, %v3927, %v3838
        %v3976 = vsel %vm422, %v3928, %v3839
        %v3977 = vsel %vm422, %v3929, %v3840
        %v3978 = vsel %vm422, %v3930, %v3841
        %v3979 = vsel %vm422, %v3931, %v3842
        %v3980 = vsel %vm422, %v3932, %v3843
        %v3981 = vsel %vm422, %v3933, %v3844
        %v3982 = vsel %vm422, %v3934, %v3845
        %s3983 = smul.u32 %s225, 8
        %s3984 = smul.addr %s3983, 8
        %s3985 = scalar_lea.vmem %s209, %s3984
        %3986 = vst [vmem:[%s3985] sm:$0xff] %v3975
        %3987 = vst [vmem:[%s3985 + $0x8] sm:$0xff] %v3976
        %3988 = vst [vmem:[%s3985 + $0x10] sm:$0xff] %v3977
        %3989 = vst [vmem:[%s3985 + $0x18] sm:$0xff] %v3978
        %3990 = vst [vmem:[%s3985 + $0x20] sm:$0xff] %v3979
        %3991 = vst [vmem:[%s3985 + $0x28] sm:$0xff] %v3980
        %3992 = vst [vmem:[%s3985 + $0x30] sm:$0xff] %v3981
        %3993 = vst [vmem:[%s3985 + $0x38] sm:$0xff] %v3982
      $region41: #{_convlstm3d_fused.1} parent=35 // loop_footer
        %s229 = sadd.s32 1, %s225
      $region42: #{_convlstm3d_fused.1} parent=35 // loop_footer_branch
        %224 = sbr.rel target = $region38
      $region43: #{_convlstm3d_fused.1} parent=35 // loop_exit
        _
      %p3994 = scmp.lt.s32.totalorder %s27, 1
      %s3995 = scalar_select %p3994, %s27, 1
      %s3996 = smul.addr %s3995, 32
      %s3997 = smul.addr %s3996, 8
      %s3998 = scalar_lea.vmem %s6, %s3997
      // Predicated region
      $region44: #{_convlstm3d_fused.1} parent=35 // pred_check
        %p3999 = pneg %p134
      $region45: #{_convlstm3d_fused.1} parent=35 // pred_check_branch
        %4001 = sbr.rel (%p3999) target = $region47
      $region46: #{_convlstm3d_fused.1} parent=35 // pred_region
        _
      $region47: #{_convlstm3d_fused.1} parent=35 // pred_fallthru
        _
    $region36: #{_convlstm3d_fused.1} parent=5 // pred_fallthru
      _
    %p4002 = scmp.le.s32.totalorder 2, %s22
    // Predicated region
    $region48: #{_convlstm3d_fused.1} parent=5 // pred_check
      %p4003 = pneg %p4002
    $region49: #{_convlstm3d_fused.1} parent=5 // pred_check_branch
      %4005 = sbr.rel (%p4003) target = $region51
    $region50: #{_convlstm3d_fused.1} parent=5 // pred_region
      %s4006 = ssub.s32 %s22, 2
      // Predicated region
      $region52: #{_convlstm3d_fused.1} parent=50 // pred_check
        %p4007 = pneg %p140
      $region53: #{_convlstm3d_fused.1} parent=50 // pred_check_branch
        %4009 = sbr.rel (%p4007) target = $region55
      $region54: #{_convlstm3d_fused.1} parent=50 // pred_region
        %p4010 = scmp.lt.s32.totalorder %s28, 1
        %s4011 = scalar_select %p4010, %s28, 1
        %s4012 = smul.addr %s4011, 32
        %s4013 = smul.addr %s4012, 8
        %s4014 = scalar_lea.vmem %s6, %s4013
      $region55: #{_convlstm3d_fused.1} parent=50 // pred_fallthru
        _
    $region51: #{_convlstm3d_fused.1} parent=5 // pred_fallthru
      _
  $region6: #{_convlstm3d_fused.1} parent=0 // loop_footer
    %s26 = sadd.s32 1, %s22
  $region7: #{_convlstm3d_fused.1} parent=0 // loop_footer_branch
    %21 = sbr.rel target = $region3
  $region8: #{_convlstm3d_fused.1} parent=0 // loop_exit
    _

</llo_original>
